<compile_context>
chip_gen: v6e
topology: v6e:2x2x1
jax: 0.10.0
libtpu: 0.0.40
codegen_flags: <defaults>
</compile_context>

<pallas_src>
import functools

import jax
import jax.numpy as jnp
from jax.experimental import pallas as pl
from jax.experimental.pallas import tpu as pltpu


def _mish(v):
    # numerically-stable mish: x * tanh(softplus(x))
    sp = jnp.maximum(v, 0.0) + jnp.log(1.0 + jnp.exp(-jnp.abs(v)))
    return v * jnp.tanh(sp)


def _misr_kernel(x_ref, win_ref, bin_ref, w1_ref, b1_ref, w2_ref, b2_ref,
                 wout_ref, bout_ref, o_ref, *, C, L, K, dilations):
    """One batch element per grid step. All data is (channels, length)."""
    n_d = len(dilations)
    pad2 = (K - 1) // 2
    pads1 = tuple(d * (K - 1) // 2 for d in dilations)
    max_pad1 = max(pads1)
    P0 = max_pad1 + pad2            # left/right margin of the x / h buffers
    W0 = L + 2 * P0                 # width of x_ext / h
    W1 = L + 2 * pad2               # width of the conv1 output (conv2 input)

    x = x_ref[0].astype(jnp.float32)                       # (C, W0)

    # Column masks that enforce PyTorch's zero padding of the intermediates.
    col0 = jax.lax.broadcasted_iota(jnp.int32, (1, W0), 1)
    mask_h = ((col0 >= P0) & (col0 < P0 + L)).astype(jnp.float32)
    col1 = jax.lax.broadcasted_iota(jnp.int32, (1, W1), 1)
    mask_a = ((col1 >= pad2) & (col1 < pad2 + L)).astype(jnp.float32)

    y = jnp.zeros((C, L), jnp.float32)
    for i in range(n_d):
        # in_conv[i] (1x1): (C, C) @ (C, W0); mask so padded columns are 0.
        h = (jnp.dot(win_ref[i], x, preferred_element_type=jnp.float32)
             + bin_ref[i]) * mask_h                         # (C, W0)

        r = jnp.zeros((C, L), jnp.float32)
        for j in range(n_d):
            d = dilations[j]
            p1 = pads1[j]
            # conv1_j (dilated) via im2col: one (C, K*C) @ (K*C, W1) matmul.
            cols1 = jnp.concatenate(
                [h[:, (max_pad1 - p1) + k * d:(max_pad1 - p1) + k * d + W1]
                 for k in range(K)], axis=0)                # (K*C, W1)
            a = jnp.dot(w1_ref[j], cols1,
                        preferred_element_type=jnp.float32) + b1_ref[j]
            a = _mish(a) * mask_a                           # zero outside [0, L)

            # conv2_j (dilation 1): (C, K*C) @ (K*C, L).
            cols2 = jnp.concatenate(
                [a[:, k:k + L] for k in range(K)], axis=0)  # (K*C, L)
            c2 = jnp.dot(w2_ref[j], cols2,
                         preferred_element_type=jnp.float32) + b2_ref[j]
            r = r + _mish(c2)

        r = r * (1.0 / n_d)                                 # ResBlock mean

        # out_conv contribution of block i: W_out[:, i*C:(i+1)*C] @ r_i
        y = y + jnp.dot(wout_ref[:, i * C:(i + 1) * C], r,
                        preferred_element_type=jnp.float32)

    o_ref[0] = (y + bout_ref[...]).astype(o_ref.dtype)


def misr_pallas(x, params, *, kernel_size, dilations):
    """MISR forward. x: (N, C, L) NCL (PyTorch layout). Returns (N, C, L)."""
    N, C, L = x.shape
    K = kernel_size
    n_d = len(dilations)
    assert K % 2 == 1, "odd resblock kernel size assumed ('same' padding)"
    pad2 = (K - 1) // 2
    max_pad1 = max(d * (K - 1) // 2 for d in dilations)
    P0 = max_pad1 + pad2
    W0 = L + 2 * P0

    # Host-side glue: pad input once (zeros are never re-materialized in HBM
    # beyond this single margin), and flatten weights for the im2col matmuls.
    x_ext = jnp.pad(x, ((0, 0), (0, 0), (P0, P0)))          # (N, C, W0)

    win = params["w_in"][:, :, :, 0]                        # (n_d, C, C)
    b_in = params["b_in"][:, :, None]                       # (n_d, C, 1)
    # w1f[j, co, k*C + ci] = w1[j, co, ci, k]
    w1f = jnp.transpose(params["w1"], (0, 1, 3, 2)).reshape(n_d, C, K * C)
    b1 = params["b1"][:, :, None]
    w2f = jnp.transpose(params["w2"], (0, 1, 3, 2)).reshape(n_d, C, K * C)
    b2 = params["b2"][:, :, None]
    wout = params["w_out"][:, :, 0]                         # (C, n_d*C)
    bout = params["b_out"][:, None]                         # (C, 1)

    kernel = functools.partial(_misr_kernel, C=C, L=L, K=K,
                               dilations=tuple(dilations))

    return pl.pallas_call(
        kernel,
        out_shape=jax.ShapeDtypeStruct((N, C, L), x.dtype),
        grid=(N,),
        in_specs=[
            pl.BlockSpec((1, C, W0), lambda n: (n, 0, 0)),          # x_ext
            pl.BlockSpec((n_d, C, C), lambda n: (0, 0, 0)),         # win
            pl.BlockSpec((n_d, C, 1), lambda n: (0, 0, 0)),         # b_in
            pl.BlockSpec((n_d, C, K * C), lambda n: (0, 0, 0)),     # w1f
            pl.BlockSpec((n_d, C, 1), lambda n: (0, 0, 0)),         # b1
            pl.BlockSpec((n_d, C, K * C), lambda n: (0, 0, 0)),     # w2f
            pl.BlockSpec((n_d, C, 1), lambda n: (0, 0, 0)),         # b2
            pl.BlockSpec((C, n_d * C), lambda n: (0, 0)),           # wout
            pl.BlockSpec((C, 1), lambda n: (0, 0)),                 # bout
        ],
        out_specs=pl.BlockSpec((1, C, L), lambda n: (n, 0, 0)),
        compiler_params=pltpu.CompilerParams(
            dimension_semantics=("parallel",)),
    )(x_ext, win, b_in, w1f, b1, w2f, b2, wout, bout)


def misr_reference(x, params, *, kernel_size, dilations):
    """Pure-JAX reference with identical PyTorch MISR semantics."""
    K = kernel_size
    n_d = len(dilations)

    def conv1d(xx, w, b, dilation, padding):
        N, Ci, L = xx.shape
        Co = w.shape[0]
        xp = jnp.pad(xx, ((0, 0), (0, 0), (padding, padding)))
        y = jnp.zeros((N, Co, L), jnp.float32)
        for k in range(w.shape[2]):
            y = y + jnp.einsum("oi,nil->nol", w[:, :, k],
                               xp[:, :, k * dilation:k * dilation + L])
        return y + b[None, :, None]

    def mish(v):
        return v * jnp.tanh(jax.nn.softplus(v))

    blocks = []
    for i in range(n_d):
        h = conv1d(x, params["w_in"][i], params["b_in"][i], 1, 0)
        r = 0.0
        for j in range(n_d):
            d = dilations[j]
            a = mish(conv1d(h, params["w1"][j], params["b1"][j],
                            d, d * (K - 1) // 2))
            r = r + mish(conv1d(a, params["w2"][j], params["b2"][j],
                                1, (K - 1) // 2))
        blocks.append(r / n_d)
    cat = jnp.concatenate(blocks, axis=1)
    return conv1d(cat, params["w_out"], params["b_out"], 1, 0)


if __name__ == "__main__":
    # MISR(in_channel=8, resblock_kernel_size=3, resblock_dilation_sizes=(1,3,5))
    in_channel = 8
    resblock_kernel_size = 3
    resblock_dilation_sizes = (1, 3, 5)   # len == 3, matching out_conv(3*C -> C)
    batch, seq = 2, 16

    C, K, n_d = in_channel, resblock_kernel_size, len(resblock_dilation_sizes)

    key = jax.random.PRNGKey(0)
    keys = jax.random.split(key, 9)

    def u(k, shape, fan_in):
        bound = 1.0 / (fan_in ** 0.5)
        return jax.random.uniform(k, shape, jnp.float32,
                                  minval=-bound, maxval=bound)

    params = {
        "w_in":  u(keys[0], (n_d, C, C, 1), C * 1),          # Conv1d(C, C, 1)
        "b_in":  u(keys[1], (n_d, C), C * 1),
        "w1":    u(keys[2], (n_d, C, C, K), C * K),          # dilated convs
        "b1":    u(keys[3], (n_d, C), C * K),
        "w2":    u(keys[4], (n_d, C, C, K), C * K),          # dilation-1 convs
        "b2":    u(keys[5], (n_d, C), C * K),
        "w_out": u(keys[6], (C, n_d * C, 1), n_d * C * 1),   # Conv1d(3C, C, 1)
        "b_out": u(keys[7], (C,), n_d * C * 1),
    }

    x = jax.random.normal(keys[8], (batch, in_channel, seq), jnp.float32)

    y = misr_pallas(x, params, kernel_size=K, dilations=resblock_dilation_sizes)
    y = jax.block_until_ready(y)

    y_ref = misr_reference(x, params, kernel_size=K,
                           dilations=resblock_dilation_sizes)

    assert y.shape == (batch, in_channel, seq), y.shape
    max_err = float(jnp.max(jnp.abs(y - y_ref)))
    assert jnp.allclose(y, y_ref, atol=1e-4, rtol=1e-4), max_err

    print("KERNEL_OK")
</pallas_src>

<mosaic_0001>
module attributes {stable_mosaic.version = 11 : i64} {
  func.func @_misr_kernel(%arg0: i32, %arg1: memref<1x8x28xf32, #tpu.memory_space<vmem>>, %arg2: memref<3x8x8xf32, #tpu.memory_space<vmem>>, %arg3: memref<3x8x1xf32, #tpu.memory_space<vmem>>, %arg4: memref<3x8x24xf32, #tpu.memory_space<vmem>>, %arg5: memref<3x8x1xf32, #tpu.memory_space<vmem>>, %arg6: memref<3x8x24xf32, #tpu.memory_space<vmem>>, %arg7: memref<3x8x1xf32, #tpu.memory_space<vmem>>, %arg8: memref<8x24xf32, #tpu.memory_space<vmem>>, %arg9: memref<8x1xf32, #tpu.memory_space<vmem>>, %arg10: memref<1x8x16xf32, #tpu.memory_space<vmem>>) attributes {dimension_semantics = [#tpu.dimension_semantics<parallel>], iteration_bounds = array<i64: 2>, scalar_prefetch = 0 : i64, scratch_operands = 0 : i64, tpu.core_type = #tpu.core_type<tc>, window_params = [{transform_indices = @transform_0, window_bounds = array<i64: 1, 8, 28>}, {pipeline_mode = #tpu.pipeline_mode<synchronous>, transform_indices = @transform_1, window_bounds = array<i64: 3, 8, 8>}, {pipeline_mode = #tpu.pipeline_mode<synchronous>, transform_indices = @transform_2, window_bounds = array<i64: 3, 8, 1>}, {pipeline_mode = #tpu.pipeline_mode<synchronous>, transform_indices = @transform_3, window_bounds = array<i64: 3, 8, 24>}, {pipeline_mode = #tpu.pipeline_mode<synchronous>, transform_indices = @transform_4, window_bounds = array<i64: 3, 8, 1>}, {pipeline_mode = #tpu.pipeline_mode<synchronous>, transform_indices = @transform_5, window_bounds = array<i64: 3, 8, 24>}, {pipeline_mode = #tpu.pipeline_mode<synchronous>, transform_indices = @transform_6, window_bounds = array<i64: 3, 8, 1>}, {pipeline_mode = #tpu.pipeline_mode<synchronous>, transform_indices = @transform_7, window_bounds = array<i64: 8, 24>}, {pipeline_mode = #tpu.pipeline_mode<synchronous>, transform_indices = @transform_8, window_bounds = array<i64: 8, 1>}, {transform_indices = @transform_9, window_bounds = array<i64: 1, 8, 16>}]} {
    %c0 = arith.constant 0 : index
    %c0_0 = arith.constant 0 : index
    %c0_1 = arith.constant 0 : index
    %0 = vector.load %arg1[%c0, %c0_0, %c0_1] : memref<1x8x28xf32, #tpu.memory_space<vmem>>, vector<1x8x28xf32>
    %1 = vector.shape_cast %0 : vector<1x8x28xf32> to vector<8x28xf32>
    %2 = tpu.iota {dimensions = array<i32: 1>} : vector<1x28xi32>
    %c6_i32 = arith.constant 6 : i32
    %3 = vector.broadcast %c6_i32 : i32 to vector<1x28xi32>
    %4 = arith.cmpi sge, %2, %3 : vector<1x28xi32>
    %c22_i32 = arith.constant 22 : i32
    %5 = vector.broadcast %c22_i32 : i32 to vector<1x28xi32>
    %6 = arith.cmpi slt, %2, %5 : vector<1x28xi32>
    %7 = arith.andi %4, %6 : vector<1x28xi1>
    %8 = arith.extui %7 : vector<1x28xi1> to vector<1x28xi32>
    %9 = arith.sitofp %8 : vector<1x28xi32> to vector<1x28xf32>
    %10 = tpu.iota {dimensions = array<i32: 1>} : vector<1x18xi32>
    %c1_i32 = arith.constant 1 : i32
    %11 = vector.broadcast %c1_i32 : i32 to vector<1x18xi32>
    %12 = arith.cmpi sge, %10, %11 : vector<1x18xi32>
    %c17_i32 = arith.constant 17 : i32
    %13 = vector.broadcast %c17_i32 : i32 to vector<1x18xi32>
    %14 = arith.cmpi slt, %10, %13 : vector<1x18xi32>
    %15 = arith.andi %12, %14 : vector<1x18xi1>
    %16 = arith.extui %15 : vector<1x18xi1> to vector<1x18xi32>
    %17 = arith.sitofp %16 : vector<1x18xi32> to vector<1x18xf32>
    %cst = arith.constant 0.000000e+00 : f32
    %18 = vector.broadcast %cst : f32 to vector<8x16xf32>
    %c0_2 = arith.constant 0 : index
    %c0_3 = arith.constant 0 : index
    %c0_4 = arith.constant 0 : index
    %19 = vector.load %arg2[%c0_2, %c0_3, %c0_4] : memref<3x8x8xf32, #tpu.memory_space<vmem>>, vector<1x8x8xf32>
    %20 = vector.shape_cast %19 : vector<1x8x8xf32> to vector<8x8xf32>
    %cst_5 = arith.constant dense<0.000000e+00> : vector<8x28xf32>
    %21 = tpu.matmul %20, %1, %cst_5 {dimension_numbers = #tpu.dot_dimension_numbers<[1], [0], [0], [1], [0, 0, 1, 1], [], []>} : vector<8x8xf32>, vector<8x28xf32>, vector<8x28xf32> -> vector<8x28xf32>
    %c0_6 = arith.constant 0 : index
    %c0_7 = arith.constant 0 : index
    %c0_8 = arith.constant 0 : index
    %22 = vector.load %arg3[%c0_6, %c0_7, %c0_8] : memref<3x8x1xf32, #tpu.memory_space<vmem>>, vector<1x8x1xf32>
    %23 = vector.shape_cast %22 : vector<1x8x1xf32> to vector<8x1xf32>
    %24 = vector.broadcast %23 : vector<8x1xf32> to vector<8x28xf32>
    %25 = arith.addf %21, %24 : vector<8x28xf32>
    %26 = vector.broadcast %9 : vector<1x28xf32> to vector<8x28xf32>
    %27 = arith.mulf %25, %26 : vector<8x28xf32>
    %cst_9 = arith.constant 0.000000e+00 : f32
    %28 = vector.broadcast %cst_9 : f32 to vector<8x16xf32>
    %29 = vector.extract_strided_slice %27 {offsets = [0, 4], sizes = [8, 18], strides = [1, 1]} : vector<8x28xf32> to vector<8x18xf32>
    %30 = vector.extract_strided_slice %27 {offsets = [0, 5], sizes = [8, 18], strides = [1, 1]} : vector<8x28xf32> to vector<8x18xf32>
    %31 = vector.extract_strided_slice %27 {offsets = [0, 6], sizes = [8, 18], strides = [1, 1]} : vector<8x28xf32> to vector<8x18xf32>
    %32 = tpu.concatenate %29, %30, %31 in 0 : vector<8x18xf32>, vector<8x18xf32>, vector<8x18xf32> -> vector<24x18xf32>
    %c0_10 = arith.constant 0 : index
    %c0_11 = arith.constant 0 : index
    %c0_12 = arith.constant 0 : index
    %33 = vector.load %arg4[%c0_10, %c0_11, %c0_12] : memref<3x8x24xf32, #tpu.memory_space<vmem>>, vector<1x8x24xf32>
    %34 = vector.shape_cast %33 : vector<1x8x24xf32> to vector<8x24xf32>
    %cst_13 = arith.constant dense<0.000000e+00> : vector<8x18xf32>
    %35 = tpu.matmul %34, %32, %cst_13 {dimension_numbers = #tpu.dot_dimension_numbers<[1], [0], [0], [1], [0, 0, 1, 1], [], []>} : vector<8x24xf32>, vector<24x18xf32>, vector<8x18xf32> -> vector<8x18xf32>
    %c0_14 = arith.constant 0 : index
    %c0_15 = arith.constant 0 : index
    %c0_16 = arith.constant 0 : index
    %36 = vector.load %arg5[%c0_14, %c0_15, %c0_16] : memref<3x8x1xf32, #tpu.memory_space<vmem>>, vector<1x8x1xf32>
    %37 = vector.shape_cast %36 : vector<1x8x1xf32> to vector<8x1xf32>
    %38 = vector.broadcast %37 : vector<8x1xf32> to vector<8x18xf32>
    %39 = arith.addf %35, %38 : vector<8x18xf32>
    %cst_17 = arith.constant 0.000000e+00 : f32
    %40 = vector.broadcast %cst_17 : f32 to vector<8x18xf32>
    %41 = arith.maximumf %39, %40 : vector<8x18xf32>
    %42 = math.absf %39 : vector<8x18xf32>
    %cst_18 = arith.constant 0.000000e+00 : f32
    %43 = vector.broadcast %cst_18 : f32 to vector<8x18xf32>
    %44 = arith.subf %43, %42 : vector<8x18xf32>
    %45 = math.exp %44 : vector<8x18xf32>
    %cst_19 = arith.constant 1.000000e+00 : f32
    %46 = vector.broadcast %cst_19 : f32 to vector<8x18xf32>
    %47 = arith.addf %46, %45 : vector<8x18xf32>
    %48 = math.log %47 : vector<8x18xf32>
    %49 = arith.addf %41, %48 : vector<8x18xf32>
    %50 = math.tanh %49 : vector<8x18xf32>
    %51 = arith.mulf %39, %50 : vector<8x18xf32>
    %52 = vector.broadcast %17 : vector<1x18xf32> to vector<8x18xf32>
    %53 = arith.mulf %51, %52 : vector<8x18xf32>
    %54 = vector.extract_strided_slice %53 {offsets = [0, 0], sizes = [8, 16], strides = [1, 1]} : vector<8x18xf32> to vector<8x16xf32>
    %55 = vector.extract_strided_slice %53 {offsets = [0, 1], sizes = [8, 16], strides = [1, 1]} : vector<8x18xf32> to vector<8x16xf32>
    %56 = vector.extract_strided_slice %53 {offsets = [0, 2], sizes = [8, 16], strides = [1, 1]} : vector<8x18xf32> to vector<8x16xf32>
    %57 = tpu.concatenate %54, %55, %56 in 0 : vector<8x16xf32>, vector<8x16xf32>, vector<8x16xf32> -> vector<24x16xf32>
    %c0_20 = arith.constant 0 : index
    %c0_21 = arith.constant 0 : index
    %c0_22 = arith.constant 0 : index
    %58 = vector.load %arg6[%c0_20, %c0_21, %c0_22] : memref<3x8x24xf32, #tpu.memory_space<vmem>>, vector<1x8x24xf32>
    %59 = vector.shape_cast %58 : vector<1x8x24xf32> to vector<8x24xf32>
    %cst_23 = arith.constant dense<0.000000e+00> : vector<8x16xf32>
    %60 = tpu.matmul %59, %57, %cst_23 {dimension_numbers = #tpu.dot_dimension_numbers<[1], [0], [0], [1], [0, 0, 1, 1], [], []>} : vector<8x24xf32>, vector<24x16xf32>, vector<8x16xf32> -> vector<8x16xf32>
    %c0_24 = arith.constant 0 : index
    %c0_25 = arith.constant 0 : index
    %c0_26 = arith.constant 0 : index
    %61 = vector.load %arg7[%c0_24, %c0_25, %c0_26] : memref<3x8x1xf32, #tpu.memory_space<vmem>>, vector<1x8x1xf32>
    %62 = vector.shape_cast %61 : vector<1x8x1xf32> to vector<8x1xf32>
    %63 = vector.broadcast %62 : vector<8x1xf32> to vector<8x16xf32>
    %64 = arith.addf %60, %63 : vector<8x16xf32>
    %cst_27 = arith.constant 0.000000e+00 : f32
    %65 = vector.broadcast %cst_27 : f32 to vector<8x16xf32>
    %66 = arith.maximumf %64, %65 : vector<8x16xf32>
    %67 = math.absf %64 : vector<8x16xf32>
    %cst_28 = arith.constant 0.000000e+00 : f32
    %68 = vector.broadcast %cst_28 : f32 to vector<8x16xf32>
    %69 = arith.subf %68, %67 : vector<8x16xf32>
    %70 = math.exp %69 : vector<8x16xf32>
    %cst_29 = arith.constant 1.000000e+00 : f32
    %71 = vector.broadcast %cst_29 : f32 to vector<8x16xf32>
    %72 = arith.addf %71, %70 : vector<8x16xf32>
    %73 = math.log %72 : vector<8x16xf32>
    %74 = arith.addf %66, %73 : vector<8x16xf32>
    %75 = math.tanh %74 : vector<8x16xf32>
    %76 = arith.mulf %64, %75 : vector<8x16xf32>
    %77 = arith.addf %28, %76 : vector<8x16xf32>
    %78 = vector.extract_strided_slice %27 {offsets = [0, 2], sizes = [8, 18], strides = [1, 1]} : vector<8x28xf32> to vector<8x18xf32>
    %79 = vector.extract_strided_slice %27 {offsets = [0, 5], sizes = [8, 18], strides = [1, 1]} : vector<8x28xf32> to vector<8x18xf32>
    %80 = vector.extract_strided_slice %27 {offsets = [0, 8], sizes = [8, 18], strides = [1, 1]} : vector<8x28xf32> to vector<8x18xf32>
    %81 = tpu.concatenate %78, %79, %80 in 0 : vector<8x18xf32>, vector<8x18xf32>, vector<8x18xf32> -> vector<24x18xf32>
    %c1 = arith.constant 1 : index
    %c0_30 = arith.constant 0 : index
    %c0_31 = arith.constant 0 : index
    %82 = vector.load %arg4[%c1, %c0_30, %c0_31] : memref<3x8x24xf32, #tpu.memory_space<vmem>>, vector<1x8x24xf32>
    %83 = vector.shape_cast %82 : vector<1x8x24xf32> to vector<8x24xf32>
    %cst_32 = arith.constant dense<0.000000e+00> : vector<8x18xf32>
    %84 = tpu.matmul %83, %81, %cst_32 {dimension_numbers = #tpu.dot_dimension_numbers<[1], [0], [0], [1], [0, 0, 1, 1], [], []>} : vector<8x24xf32>, vector<24x18xf32>, vector<8x18xf32> -> vector<8x18xf32>
    %c1_33 = arith.constant 1 : index
    %c0_34 = arith.constant 0 : index
    %c0_35 = arith.constant 0 : index
    %85 = vector.load %arg5[%c1_33, %c0_34, %c0_35] : memref<3x8x1xf32, #tpu.memory_space<vmem>>, vector<1x8x1xf32>
    %86 = vector.shape_cast %85 : vector<1x8x1xf32> to vector<8x1xf32>
    %87 = vector.broadcast %86 : vector<8x1xf32> to vector<8x18xf32>
    %88 = arith.addf %84, %87 : vector<8x18xf32>
    %cst_36 = arith.constant 0.000000e+00 : f32
    %89 = vector.broadcast %cst_36 : f32 to vector<8x18xf32>
    %90 = arith.maximumf %88, %89 : vector<8x18xf32>
    %91 = math.absf %88 : vector<8x18xf32>
    %cst_37 = arith.constant 0.000000e+00 : f32
    %92 = vector.broadcast %cst_37 : f32 to vector<8x18xf32>
    %93 = arith.subf %92, %91 : vector<8x18xf32>
    %94 = math.exp %93 : vector<8x18xf32>
    %cst_38 = arith.constant 1.000000e+00 : f32
    %95 = vector.broadcast %cst_38 : f32 to vector<8x18xf32>
    %96 = arith.addf %95, %94 : vector<8x18xf32>
    %97 = math.log %96 : vector<8x18xf32>
    %98 = arith.addf %90, %97 : vector<8x18xf32>
    %99 = math.tanh %98 : vector<8x18xf32>
    %100 = arith.mulf %88, %99 : vector<8x18xf32>
    %101 = vector.broadcast %17 : vector<1x18xf32> to vector<8x18xf32>
    %102 = arith.mulf %100, %101 : vector<8x18xf32>
    %103 = vector.extract_strided_slice %102 {offsets = [0, 0], sizes = [8, 16], strides = [1, 1]} : vector<8x18xf32> to vector<8x16xf32>
    %104 = vector.extract_strided_slice %102 {offsets = [0, 1], sizes = [8, 16], strides = [1, 1]} : vector<8x18xf32> to vector<8x16xf32>
    %105 = vector.extract_strided_slice %102 {offsets = [0, 2], sizes = [8, 16], strides = [1, 1]} : vector<8x18xf32> to vector<8x16xf32>
    %106 = tpu.concatenate %103, %104, %105 in 0 : vector<8x16xf32>, vector<8x16xf32>, vector<8x16xf32> -> vector<24x16xf32>
    %c1_39 = arith.constant 1 : index
    %c0_40 = arith.constant 0 : index
    %c0_41 = arith.constant 0 : index
    %107 = vector.load %arg6[%c1_39, %c0_40, %c0_41] : memref<3x8x24xf32, #tpu.memory_space<vmem>>, vector<1x8x24xf32>
    %108 = vector.shape_cast %107 : vector<1x8x24xf32> to vector<8x24xf32>
    %cst_42 = arith.constant dense<0.000000e+00> : vector<8x16xf32>
    %109 = tpu.matmul %108, %106, %cst_42 {dimension_numbers = #tpu.dot_dimension_numbers<[1], [0], [0], [1], [0, 0, 1, 1], [], []>} : vector<8x24xf32>, vector<24x16xf32>, vector<8x16xf32> -> vector<8x16xf32>
    %c1_43 = arith.constant 1 : index
    %c0_44 = arith.constant 0 : index
    %c0_45 = arith.constant 0 : index
    %110 = vector.load %arg7[%c1_43, %c0_44, %c0_45] : memref<3x8x1xf32, #tpu.memory_space<vmem>>, vector<1x8x1xf32>
    %111 = vector.shape_cast %110 : vector<1x8x1xf32> to vector<8x1xf32>
    %112 = vector.broadcast %111 : vector<8x1xf32> to vector<8x16xf32>
    %113 = arith.addf %109, %112 : vector<8x16xf32>
    %cst_46 = arith.constant 0.000000e+00 : f32
    %114 = vector.broadcast %cst_46 : f32 to vector<8x16xf32>
    %115 = arith.maximumf %113, %114 : vector<8x16xf32>
    %116 = math.absf %113 : vector<8x16xf32>
    %cst_47 = arith.constant 0.000000e+00 : f32
    %117 = vector.broadcast %cst_47 : f32 to vector<8x16xf32>
    %118 = arith.subf %117, %116 : vector<8x16xf32>
    %119 = math.exp %118 : vector<8x16xf32>
    %cst_48 = arith.constant 1.000000e+00 : f32
    %120 = vector.broadcast %cst_48 : f32 to vector<8x16xf32>
    %121 = arith.addf %120, %119 : vector<8x16xf32>
    %122 = math.log %121 : vector<8x16xf32>
    %123 = arith.addf %115, %122 : vector<8x16xf32>
    %124 = math.tanh %123 : vector<8x16xf32>
    %125 = arith.mulf %113, %124 : vector<8x16xf32>
    %126 = arith.addf %77, %125 : vector<8x16xf32>
    %127 = vector.extract_strided_slice %27 {offsets = [0, 0], sizes = [8, 18], strides = [1, 1]} : vector<8x28xf32> to vector<8x18xf32>
    %128 = vector.extract_strided_slice %27 {offsets = [0, 5], sizes = [8, 18], strides = [1, 1]} : vector<8x28xf32> to vector<8x18xf32>
    %129 = vector.extract_strided_slice %27 {offsets = [0, 10], sizes = [8, 18], strides = [1, 1]} : vector<8x28xf32> to vector<8x18xf32>
    %130 = tpu.concatenate %127, %128, %129 in 0 : vector<8x18xf32>, vector<8x18xf32>, vector<8x18xf32> -> vector<24x18xf32>
    %c2 = arith.constant 2 : index
    %c0_49 = arith.constant 0 : index
    %c0_50 = arith.constant 0 : index
    %131 = vector.load %arg4[%c2, %c0_49, %c0_50] : memref<3x8x24xf32, #tpu.memory_space<vmem>>, vector<1x8x24xf32>
    %132 = vector.shape_cast %131 : vector<1x8x24xf32> to vector<8x24xf32>
    %cst_51 = arith.constant dense<0.000000e+00> : vector<8x18xf32>
    %133 = tpu.matmul %132, %130, %cst_51 {dimension_numbers = #tpu.dot_dimension_numbers<[1], [0], [0], [1], [0, 0, 1, 1], [], []>} : vector<8x24xf32>, vector<24x18xf32>, vector<8x18xf32> -> vector<8x18xf32>
    %c2_52 = arith.constant 2 : index
    %c0_53 = arith.constant 0 : index
    %c0_54 = arith.constant 0 : index
    %134 = vector.load %arg5[%c2_52, %c0_53, %c0_54] : memref<3x8x1xf32, #tpu.memory_space<vmem>>, vector<1x8x1xf32>
    %135 = vector.shape_cast %134 : vector<1x8x1xf32> to vector<8x1xf32>
    %136 = vector.broadcast %135 : vector<8x1xf32> to vector<8x18xf32>
    %137 = arith.addf %133, %136 : vector<8x18xf32>
    %cst_55 = arith.constant 0.000000e+00 : f32
    %138 = vector.broadcast %cst_55 : f32 to vector<8x18xf32>
    %139 = arith.maximumf %137, %138 : vector<8x18xf32>
    %140 = math.absf %137 : vector<8x18xf32>
    %cst_56 = arith.constant 0.000000e+00 : f32
    %141 = vector.broadcast %cst_56 : f32 to vector<8x18xf32>
    %142 = arith.subf %141, %140 : vector<8x18xf32>
    %143 = math.exp %142 : vector<8x18xf32>
    %cst_57 = arith.constant 1.000000e+00 : f32
    %144 = vector.broadcast %cst_57 : f32 to vector<8x18xf32>
    %145 = arith.addf %144, %143 : vector<8x18xf32>
    %146 = math.log %145 : vector<8x18xf32>
    %147 = arith.addf %139, %146 : vector<8x18xf32>
    %148 = math.tanh %147 : vector<8x18xf32>
    %149 = arith.mulf %137, %148 : vector<8x18xf32>
    %150 = vector.broadcast %17 : vector<1x18xf32> to vector<8x18xf32>
    %151 = arith.mulf %149, %150 : vector<8x18xf32>
    %152 = vector.extract_strided_slice %151 {offsets = [0, 0], sizes = [8, 16], strides = [1, 1]} : vector<8x18xf32> to vector<8x16xf32>
    %153 = vector.extract_strided_slice %151 {offsets = [0, 1], sizes = [8, 16], strides = [1, 1]} : vector<8x18xf32> to vector<8x16xf32>
    %154 = vector.extract_strided_slice %151 {offsets = [0, 2], sizes = [8, 16], strides = [1, 1]} : vector<8x18xf32> to vector<8x16xf32>
    %155 = tpu.concatenate %152, %153, %154 in 0 : vector<8x16xf32>, vector<8x16xf32>, vector<8x16xf32> -> vector<24x16xf32>
    %c2_58 = arith.constant 2 : index
    %c0_59 = arith.constant 0 : index
    %c0_60 = arith.constant 0 : index
    %156 = vector.load %arg6[%c2_58, %c0_59, %c0_60] : memref<3x8x24xf32, #tpu.memory_space<vmem>>, vector<1x8x24xf32>
    %157 = vector.shape_cast %156 : vector<1x8x24xf32> to vector<8x24xf32>
    %cst_61 = arith.constant dense<0.000000e+00> : vector<8x16xf32>
    %158 = tpu.matmul %157, %155, %cst_61 {dimension_numbers = #tpu.dot_dimension_numbers<[1], [0], [0], [1], [0, 0, 1, 1], [], []>} : vector<8x24xf32>, vector<24x16xf32>, vector<8x16xf32> -> vector<8x16xf32>
    %c2_62 = arith.constant 2 : index
    %c0_63 = arith.constant 0 : index
    %c0_64 = arith.constant 0 : index
    %159 = vector.load %arg7[%c2_62, %c0_63, %c0_64] : memref<3x8x1xf32, #tpu.memory_space<vmem>>, vector<1x8x1xf32>
    %160 = vector.shape_cast %159 : vector<1x8x1xf32> to vector<8x1xf32>
    %161 = vector.broadcast %160 : vector<8x1xf32> to vector<8x16xf32>
    %162 = arith.addf %158, %161 : vector<8x16xf32>
    %cst_65 = arith.constant 0.000000e+00 : f32
    %163 = vector.broadcast %cst_65 : f32 to vector<8x16xf32>
    %164 = arith.maximumf %162, %163 : vector<8x16xf32>
    %165 = math.absf %162 : vector<8x16xf32>
    %cst_66 = arith.constant 0.000000e+00 : f32
    %166 = vector.broadcast %cst_66 : f32 to vector<8x16xf32>
    %167 = arith.subf %166, %165 : vector<8x16xf32>
    %168 = math.exp %167 : vector<8x16xf32>
    %cst_67 = arith.constant 1.000000e+00 : f32
    %169 = vector.broadcast %cst_67 : f32 to vector<8x16xf32>
    %170 = arith.addf %169, %168 : vector<8x16xf32>
    %171 = math.log %170 : vector<8x16xf32>
    %172 = arith.addf %164, %171 : vector<8x16xf32>
    %173 = math.tanh %172 : vector<8x16xf32>
    %174 = arith.mulf %162, %173 : vector<8x16xf32>
    %175 = arith.addf %126, %174 : vector<8x16xf32>
    %cst_68 = arith.constant 0.333333343 : f32
    %176 = vector.broadcast %cst_68 : f32 to vector<8x16xf32>
    %177 = arith.mulf %175, %176 : vector<8x16xf32>
    %c0_69 = arith.constant 0 : index
    %c0_70 = arith.constant 0 : index
    %178 = vector.load %arg8[%c0_69, %c0_70] : memref<8x24xf32, #tpu.memory_space<vmem>>, vector<8x8xf32>
    %cst_71 = arith.constant dense<0.000000e+00> : vector<8x16xf32>
    %179 = tpu.matmul %178, %177, %cst_71 {dimension_numbers = #tpu.dot_dimension_numbers<[1], [0], [0], [1], [0, 0, 1, 1], [], []>} : vector<8x8xf32>, vector<8x16xf32>, vector<8x16xf32> -> vector<8x16xf32>
    %180 = arith.addf %18, %179 : vector<8x16xf32>
    %c1_72 = arith.constant 1 : index
    %c0_73 = arith.constant 0 : index
    %c0_74 = arith.constant 0 : index
    %181 = vector.load %arg2[%c1_72, %c0_73, %c0_74] : memref<3x8x8xf32, #tpu.memory_space<vmem>>, vector<1x8x8xf32>
    %182 = vector.shape_cast %181 : vector<1x8x8xf32> to vector<8x8xf32>
    %cst_75 = arith.constant dense<0.000000e+00> : vector<8x28xf32>
    %183 = tpu.matmul %182, %1, %cst_75 {dimension_numbers = #tpu.dot_dimension_numbers<[1], [0], [0], [1], [0, 0, 1, 1], [], []>} : vector<8x8xf32>, vector<8x28xf32>, vector<8x28xf32> -> vector<8x28xf32>
    %c1_76 = arith.constant 1 : index
    %c0_77 = arith.constant 0 : index
    %c0_78 = arith.constant 0 : index
    %184 = vector.load %arg3[%c1_76, %c0_77, %c0_78] : memref<3x8x1xf32, #tpu.memory_space<vmem>>, vector<1x8x1xf32>
    %185 = vector.shape_cast %184 : vector<1x8x1xf32> to vector<8x1xf32>
    %186 = vector.broadcast %185 : vector<8x1xf32> to vector<8x28xf32>
    %187 = arith.addf %183, %186 : vector<8x28xf32>
    %188 = vector.broadcast %9 : vector<1x28xf32> to vector<8x28xf32>
    %189 = arith.mulf %187, %188 : vector<8x28xf32>
    %cst_79 = arith.constant 0.000000e+00 : f32
    %190 = vector.broadcast %cst_79 : f32 to vector<8x16xf32>
    %191 = vector.extract_strided_slice %189 {offsets = [0, 4], sizes = [8, 18], strides = [1, 1]} : vector<8x28xf32> to vector<8x18xf32>
    %192 = vector.extract_strided_slice %189 {offsets = [0, 5], sizes = [8, 18], strides = [1, 1]} : vector<8x28xf32> to vector<8x18xf32>
    %193 = vector.extract_strided_slice %189 {offsets = [0, 6], sizes = [8, 18], strides = [1, 1]} : vector<8x28xf32> to vector<8x18xf32>
    %194 = tpu.concatenate %191, %192, %193 in 0 : vector<8x18xf32>, vector<8x18xf32>, vector<8x18xf32> -> vector<24x18xf32>
    %c0_80 = arith.constant 0 : index
    %c0_81 = arith.constant 0 : index
    %c0_82 = arith.constant 0 : index
    %195 = vector.load %arg4[%c0_80, %c0_81, %c0_82] : memref<3x8x24xf32, #tpu.memory_space<vmem>>, vector<1x8x24xf32>
    %196 = vector.shape_cast %195 : vector<1x8x24xf32> to vector<8x24xf32>
    %cst_83 = arith.constant dense<0.000000e+00> : vector<8x18xf32>
    %197 = tpu.matmul %196, %194, %cst_83 {dimension_numbers = #tpu.dot_dimension_numbers<[1], [0], [0], [1], [0, 0, 1, 1], [], []>} : vector<8x24xf32>, vector<24x18xf32>, vector<8x18xf32> -> vector<8x18xf32>
    %c0_84 = arith.constant 0 : index
    %c0_85 = arith.constant 0 : index
    %c0_86 = arith.constant 0 : index
    %198 = vector.load %arg5[%c0_84, %c0_85, %c0_86] : memref<3x8x1xf32, #tpu.memory_space<vmem>>, vector<1x8x1xf32>
    %199 = vector.shape_cast %198 : vector<1x8x1xf32> to vector<8x1xf32>
    %200 = vector.broadcast %199 : vector<8x1xf32> to vector<8x18xf32>
    %201 = arith.addf %197, %200 : vector<8x18xf32>
    %cst_87 = arith.constant 0.000000e+00 : f32
    %202 = vector.broadcast %cst_87 : f32 to vector<8x18xf32>
    %203 = arith.maximumf %201, %202 : vector<8x18xf32>
    %204 = math.absf %201 : vector<8x18xf32>
    %cst_88 = arith.constant 0.000000e+00 : f32
    %205 = vector.broadcast %cst_88 : f32 to vector<8x18xf32>
    %206 = arith.subf %205, %204 : vector<8x18xf32>
    %207 = math.exp %206 : vector<8x18xf32>
    %cst_89 = arith.constant 1.000000e+00 : f32
    %208 = vector.broadcast %cst_89 : f32 to vector<8x18xf32>
    %209 = arith.addf %208, %207 : vector<8x18xf32>
    %210 = math.log %209 : vector<8x18xf32>
    %211 = arith.addf %203, %210 : vector<8x18xf32>
    %212 = math.tanh %211 : vector<8x18xf32>
    %213 = arith.mulf %201, %212 : vector<8x18xf32>
    %214 = vector.broadcast %17 : vector<1x18xf32> to vector<8x18xf32>
    %215 = arith.mulf %213, %214 : vector<8x18xf32>
    %216 = vector.extract_strided_slice %215 {offsets = [0, 0], sizes = [8, 16], strides = [1, 1]} : vector<8x18xf32> to vector<8x16xf32>
    %217 = vector.extract_strided_slice %215 {offsets = [0, 1], sizes = [8, 16], strides = [1, 1]} : vector<8x18xf32> to vector<8x16xf32>
    %218 = vector.extract_strided_slice %215 {offsets = [0, 2], sizes = [8, 16], strides = [1, 1]} : vector<8x18xf32> to vector<8x16xf32>
    %219 = tpu.concatenate %216, %217, %218 in 0 : vector<8x16xf32>, vector<8x16xf32>, vector<8x16xf32> -> vector<24x16xf32>
    %c0_90 = arith.constant 0 : index
    %c0_91 = arith.constant 0 : index
    %c0_92 = arith.constant 0 : index
    %220 = vector.load %arg6[%c0_90, %c0_91, %c0_92] : memref<3x8x24xf32, #tpu.memory_space<vmem>>, vector<1x8x24xf32>
    %221 = vector.shape_cast %220 : vector<1x8x24xf32> to vector<8x24xf32>
    %cst_93 = arith.constant dense<0.000000e+00> : vector<8x16xf32>
    %222 = tpu.matmul %221, %219, %cst_93 {dimension_numbers = #tpu.dot_dimension_numbers<[1], [0], [0], [1], [0, 0, 1, 1], [], []>} : vector<8x24xf32>, vector<24x16xf32>, vector<8x16xf32> -> vector<8x16xf32>
    %c0_94 = arith.constant 0 : index
    %c0_95 = arith.constant 0 : index
    %c0_96 = arith.constant 0 : index
    %223 = vector.load %arg7[%c0_94, %c0_95, %c0_96] : memref<3x8x1xf32, #tpu.memory_space<vmem>>, vector<1x8x1xf32>
    %224 = vector.shape_cast %223 : vector<1x8x1xf32> to vector<8x1xf32>
    %225 = vector.broadcast %224 : vector<8x1xf32> to vector<8x16xf32>
    %226 = arith.addf %222, %225 : vector<8x16xf32>
    %cst_97 = arith.constant 0.000000e+00 : f32
    %227 = vector.broadcast %cst_97 : f32 to vector<8x16xf32>
    %228 = arith.maximumf %226, %227 : vector<8x16xf32>
    %229 = math.absf %226 : vector<8x16xf32>
    %cst_98 = arith.constant 0.000000e+00 : f32
    %230 = vector.broadcast %cst_98 : f32 to vector<8x16xf32>
    %231 = arith.subf %230, %229 : vector<8x16xf32>
    %232 = math.exp %231 : vector<8x16xf32>
    %cst_99 = arith.constant 1.000000e+00 : f32
    %233 = vector.broadcast %cst_99 : f32 to vector<8x16xf32>
    %234 = arith.addf %233, %232 : vector<8x16xf32>
    %235 = math.log %234 : vector<8x16xf32>
    %236 = arith.addf %228, %235 : vector<8x16xf32>
    %237 = math.tanh %236 : vector<8x16xf32>
    %238 = arith.mulf %226, %237 : vector<8x16xf32>
    %239 = arith.addf %190, %238 : vector<8x16xf32>
    %240 = vector.extract_strided_slice %189 {offsets = [0, 2], sizes = [8, 18], strides = [1, 1]} : vector<8x28xf32> to vector<8x18xf32>
    %241 = vector.extract_strided_slice %189 {offsets = [0, 5], sizes = [8, 18], strides = [1, 1]} : vector<8x28xf32> to vector<8x18xf32>
    %242 = vector.extract_strided_slice %189 {offsets = [0, 8], sizes = [8, 18], strides = [1, 1]} : vector<8x28xf32> to vector<8x18xf32>
    %243 = tpu.concatenate %240, %241, %242 in 0 : vector<8x18xf32>, vector<8x18xf32>, vector<8x18xf32> -> vector<24x18xf32>
    %c1_100 = arith.constant 1 : index
    %c0_101 = arith.constant 0 : index
    %c0_102 = arith.constant 0 : index
    %244 = vector.load %arg4[%c1_100, %c0_101, %c0_102] : memref<3x8x24xf32, #tpu.memory_space<vmem>>, vector<1x8x24xf32>
    %245 = vector.shape_cast %244 : vector<1x8x24xf32> to vector<8x24xf32>
    %cst_103 = arith.constant dense<0.000000e+00> : vector<8x18xf32>
    %246 = tpu.matmul %245, %243, %cst_103 {dimension_numbers = #tpu.dot_dimension_numbers<[1], [0], [0], [1], [0, 0, 1, 1], [], []>} : vector<8x24xf32>, vector<24x18xf32>, vector<8x18xf32> -> vector<8x18xf32>
    %c1_104 = arith.constant 1 : index
    %c0_105 = arith.constant 0 : index
    %c0_106 = arith.constant 0 : index
    %247 = vector.load %arg5[%c1_104, %c0_105, %c0_106] : memref<3x8x1xf32, #tpu.memory_space<vmem>>, vector<1x8x1xf32>
    %248 = vector.shape_cast %247 : vector<1x8x1xf32> to vector<8x1xf32>
    %249 = vector.broadcast %248 : vector<8x1xf32> to vector<8x18xf32>
    %250 = arith.addf %246, %249 : vector<8x18xf32>
    %cst_107 = arith.constant 0.000000e+00 : f32
    %251 = vector.broadcast %cst_107 : f32 to vector<8x18xf32>
    %252 = arith.maximumf %250, %251 : vector<8x18xf32>
    %253 = math.absf %250 : vector<8x18xf32>
    %cst_108 = arith.constant 0.000000e+00 : f32
    %254 = vector.broadcast %cst_108 : f32 to vector<8x18xf32>
    %255 = arith.subf %254, %253 : vector<8x18xf32>
    %256 = math.exp %255 : vector<8x18xf32>
    %cst_109 = arith.constant 1.000000e+00 : f32
    %257 = vector.broadcast %cst_109 : f32 to vector<8x18xf32>
    %258 = arith.addf %257, %256 : vector<8x18xf32>
    %259 = math.log %258 : vector<8x18xf32>
    %260 = arith.addf %252, %259 : vector<8x18xf32>
    %261 = math.tanh %260 : vector<8x18xf32>
    %262 = arith.mulf %250, %261 : vector<8x18xf32>
    %263 = vector.broadcast %17 : vector<1x18xf32> to vector<8x18xf32>
    %264 = arith.mulf %262, %263 : vector<8x18xf32>
    %265 = vector.extract_strided_slice %264 {offsets = [0, 0], sizes = [8, 16], strides = [1, 1]} : vector<8x18xf32> to vector<8x16xf32>
    %266 = vector.extract_strided_slice %264 {offsets = [0, 1], sizes = [8, 16], strides = [1, 1]} : vector<8x18xf32> to vector<8x16xf32>
    %267 = vector.extract_strided_slice %264 {offsets = [0, 2], sizes = [8, 16], strides = [1, 1]} : vector<8x18xf32> to vector<8x16xf32>
    %268 = tpu.concatenate %265, %266, %267 in 0 : vector<8x16xf32>, vector<8x16xf32>, vector<8x16xf32> -> vector<24x16xf32>
    %c1_110 = arith.constant 1 : index
    %c0_111 = arith.constant 0 : index
    %c0_112 = arith.constant 0 : index
    %269 = vector.load %arg6[%c1_110, %c0_111, %c0_112] : memref<3x8x24xf32, #tpu.memory_space<vmem>>, vector<1x8x24xf32>
    %270 = vector.shape_cast %269 : vector<1x8x24xf32> to vector<8x24xf32>
    %cst_113 = arith.constant dense<0.000000e+00> : vector<8x16xf32>
    %271 = tpu.matmul %270, %268, %cst_113 {dimension_numbers = #tpu.dot_dimension_numbers<[1], [0], [0], [1], [0, 0, 1, 1], [], []>} : vector<8x24xf32>, vector<24x16xf32>, vector<8x16xf32> -> vector<8x16xf32>
    %c1_114 = arith.constant 1 : index
    %c0_115 = arith.constant 0 : index
    %c0_116 = arith.constant 0 : index
    %272 = vector.load %arg7[%c1_114, %c0_115, %c0_116] : memref<3x8x1xf32, #tpu.memory_space<vmem>>, vector<1x8x1xf32>
    %273 = vector.shape_cast %272 : vector<1x8x1xf32> to vector<8x1xf32>
    %274 = vector.broadcast %273 : vector<8x1xf32> to vector<8x16xf32>
    %275 = arith.addf %271, %274 : vector<8x16xf32>
    %cst_117 = arith.constant 0.000000e+00 : f32
    %276 = vector.broadcast %cst_117 : f32 to vector<8x16xf32>
    %277 = arith.maximumf %275, %276 : vector<8x16xf32>
    %278 = math.absf %275 : vector<8x16xf32>
    %cst_118 = arith.constant 0.000000e+00 : f32
    %279 = vector.broadcast %cst_118 : f32 to vector<8x16xf32>
    %280 = arith.subf %279, %278 : vector<8x16xf32>
    %281 = math.exp %280 : vector<8x16xf32>
    %cst_119 = arith.constant 1.000000e+00 : f32
    %282 = vector.broadcast %cst_119 : f32 to vector<8x16xf32>
    %283 = arith.addf %282, %281 : vector<8x16xf32>
    %284 = math.log %283 : vector<8x16xf32>
    %285 = arith.addf %277, %284 : vector<8x16xf32>
    %286 = math.tanh %285 : vector<8x16xf32>
    %287 = arith.mulf %275, %286 : vector<8x16xf32>
    %288 = arith.addf %239, %287 : vector<8x16xf32>
    %289 = vector.extract_strided_slice %189 {offsets = [0, 0], sizes = [8, 18], strides = [1, 1]} : vector<8x28xf32> to vector<8x18xf32>
    %290 = vector.extract_strided_slice %189 {offsets = [0, 5], sizes = [8, 18], strides = [1, 1]} : vector<8x28xf32> to vector<8x18xf32>
    %291 = vector.extract_strided_slice %189 {offsets = [0, 10], sizes = [8, 18], strides = [1, 1]} : vector<8x28xf32> to vector<8x18xf32>
    %292 = tpu.concatenate %289, %290, %291 in 0 : vector<8x18xf32>, vector<8x18xf32>, vector<8x18xf32> -> vector<24x18xf32>
    %c2_120 = arith.constant 2 : index
    %c0_121 = arith.constant 0 : index
    %c0_122 = arith.constant 0 : index
    %293 = vector.load %arg4[%c2_120, %c0_121, %c0_122] : memref<3x8x24xf32, #tpu.memory_space<vmem>>, vector<1x8x24xf32>
    %294 = vector.shape_cast %293 : vector<1x8x24xf32> to vector<8x24xf32>
    %cst_123 = arith.constant dense<0.000000e+00> : vector<8x18xf32>
    %295 = tpu.matmul %294, %292, %cst_123 {dimension_numbers = #tpu.dot_dimension_numbers<[1], [0], [0], [1], [0, 0, 1, 1], [], []>} : vector<8x24xf32>, vector<24x18xf32>, vector<8x18xf32> -> vector<8x18xf32>
    %c2_124 = arith.constant 2 : index
    %c0_125 = arith.constant 0 : index
    %c0_126 = arith.constant 0 : index
    %296 = vector.load %arg5[%c2_124, %c0_125, %c0_126] : memref<3x8x1xf32, #tpu.memory_space<vmem>>, vector<1x8x1xf32>
    %297 = vector.shape_cast %296 : vector<1x8x1xf32> to vector<8x1xf32>
    %298 = vector.broadcast %297 : vector<8x1xf32> to vector<8x18xf32>
    %299 = arith.addf %295, %298 : vector<8x18xf32>
    %cst_127 = arith.constant 0.000000e+00 : f32
    %300 = vector.broadcast %cst_127 : f32 to vector<8x18xf32>
    %301 = arith.maximumf %299, %300 : vector<8x18xf32>
    %302 = math.absf %299 : vector<8x18xf32>
    %cst_128 = arith.constant 0.000000e+00 : f32
    %303 = vector.broadcast %cst_128 : f32 to vector<8x18xf32>
    %304 = arith.subf %303, %302 : vector<8x18xf32>
    %305 = math.exp %304 : vector<8x18xf32>
    %cst_129 = arith.constant 1.000000e+00 : f32
    %306 = vector.broadcast %cst_129 : f32 to vector<8x18xf32>
    %307 = arith.addf %306, %305 : vector<8x18xf32>
    %308 = math.log %307 : vector<8x18xf32>
    %309 = arith.addf %301, %308 : vector<8x18xf32>
    %310 = math.tanh %309 : vector<8x18xf32>
    %311 = arith.mulf %299, %310 : vector<8x18xf32>
    %312 = vector.broadcast %17 : vector<1x18xf32> to vector<8x18xf32>
    %313 = arith.mulf %311, %312 : vector<8x18xf32>
    %314 = vector.extract_strided_slice %313 {offsets = [0, 0], sizes = [8, 16], strides = [1, 1]} : vector<8x18xf32> to vector<8x16xf32>
    %315 = vector.extract_strided_slice %313 {offsets = [0, 1], sizes = [8, 16], strides = [1, 1]} : vector<8x18xf32> to vector<8x16xf32>
    %316 = vector.extract_strided_slice %313 {offsets = [0, 2], sizes = [8, 16], strides = [1, 1]} : vector<8x18xf32> to vector<8x16xf32>
    %317 = tpu.concatenate %314, %315, %316 in 0 : vector<8x16xf32>, vector<8x16xf32>, vector<8x16xf32> -> vector<24x16xf32>
    %c2_130 = arith.constant 2 : index
    %c0_131 = arith.constant 0 : index
    %c0_132 = arith.constant 0 : index
    %318 = vector.load %arg6[%c2_130, %c0_131, %c0_132] : memref<3x8x24xf32, #tpu.memory_space<vmem>>, vector<1x8x24xf32>
    %319 = vector.shape_cast %318 : vector<1x8x24xf32> to vector<8x24xf32>
    %cst_133 = arith.constant dense<0.000000e+00> : vector<8x16xf32>
    %320 = tpu.matmul %319, %317, %cst_133 {dimension_numbers = #tpu.dot_dimension_numbers<[1], [0], [0], [1], [0, 0, 1, 1], [], []>} : vector<8x24xf32>, vector<24x16xf32>, vector<8x16xf32> -> vector<8x16xf32>
    %c2_134 = arith.constant 2 : index
    %c0_135 = arith.constant 0 : index
    %c0_136 = arith.constant 0 : index
    %321 = vector.load %arg7[%c2_134, %c0_135, %c0_136] : memref<3x8x1xf32, #tpu.memory_space<vmem>>, vector<1x8x1xf32>
    %322 = vector.shape_cast %321 : vector<1x8x1xf32> to vector<8x1xf32>
    %323 = vector.broadcast %322 : vector<8x1xf32> to vector<8x16xf32>
    %324 = arith.addf %320, %323 : vector<8x16xf32>
    %cst_137 = arith.constant 0.000000e+00 : f32
    %325 = vector.broadcast %cst_137 : f32 to vector<8x16xf32>
    %326 = arith.maximumf %324, %325 : vector<8x16xf32>
    %327 = math.absf %324 : vector<8x16xf32>
    %cst_138 = arith.constant 0.000000e+00 : f32
    %328 = vector.broadcast %cst_138 : f32 to vector<8x16xf32>
    %329 = arith.subf %328, %327 : vector<8x16xf32>
    %330 = math.exp %329 : vector<8x16xf32>
    %cst_139 = arith.constant 1.000000e+00 : f32
    %331 = vector.broadcast %cst_139 : f32 to vector<8x16xf32>
    %332 = arith.addf %331, %330 : vector<8x16xf32>
    %333 = math.log %332 : vector<8x16xf32>
    %334 = arith.addf %326, %333 : vector<8x16xf32>
    %335 = math.tanh %334 : vector<8x16xf32>
    %336 = arith.mulf %324, %335 : vector<8x16xf32>
    %337 = arith.addf %288, %336 : vector<8x16xf32>
    %cst_140 = arith.constant 0.333333343 : f32
    %338 = vector.broadcast %cst_140 : f32 to vector<8x16xf32>
    %339 = arith.mulf %337, %338 : vector<8x16xf32>
    %c0_141 = arith.constant 0 : index
    %c8 = arith.constant 8 : index
    %340 = vector.load %arg8[%c0_141, %c8] : memref<8x24xf32, #tpu.memory_space<vmem>>, vector<8x8xf32>
    %cst_142 = arith.constant dense<0.000000e+00> : vector<8x16xf32>
    %341 = tpu.matmul %340, %339, %cst_142 {dimension_numbers = #tpu.dot_dimension_numbers<[1], [0], [0], [1], [0, 0, 1, 1], [], []>} : vector<8x8xf32>, vector<8x16xf32>, vector<8x16xf32> -> vector<8x16xf32>
    %342 = arith.addf %180, %341 : vector<8x16xf32>
    %c2_143 = arith.constant 2 : index
    %c0_144 = arith.constant 0 : index
    %c0_145 = arith.constant 0 : index
    %343 = vector.load %arg2[%c2_143, %c0_144, %c0_145] : memref<3x8x8xf32, #tpu.memory_space<vmem>>, vector<1x8x8xf32>
    %344 = vector.shape_cast %343 : vector<1x8x8xf32> to vector<8x8xf32>
    %cst_146 = arith.constant dense<0.000000e+00> : vector<8x28xf32>
    %345 = tpu.matmul %344, %1, %cst_146 {dimension_numbers = #tpu.dot_dimension_numbers<[1], [0], [0], [1], [0, 0, 1, 1], [], []>} : vector<8x8xf32>, vector<8x28xf32>, vector<8x28xf32> -> vector<8x28xf32>
    %c2_147 = arith.constant 2 : index
    %c0_148 = arith.constant 0 : index
    %c0_149 = arith.constant 0 : index
    %346 = vector.load %arg3[%c2_147, %c0_148, %c0_149] : memref<3x8x1xf32, #tpu.memory_space<vmem>>, vector<1x8x1xf32>
    %347 = vector.shape_cast %346 : vector<1x8x1xf32> to vector<8x1xf32>
    %348 = vector.broadcast %347 : vector<8x1xf32> to vector<8x28xf32>
    %349 = arith.addf %345, %348 : vector<8x28xf32>
    %350 = vector.broadcast %9 : vector<1x28xf32> to vector<8x28xf32>
    %351 = arith.mulf %349, %350 : vector<8x28xf32>
    %cst_150 = arith.constant 0.000000e+00 : f32
    %352 = vector.broadcast %cst_150 : f32 to vector<8x16xf32>
    %353 = vector.extract_strided_slice %351 {offsets = [0, 4], sizes = [8, 18], strides = [1, 1]} : vector<8x28xf32> to vector<8x18xf32>
    %354 = vector.extract_strided_slice %351 {offsets = [0, 5], sizes = [8, 18], strides = [1, 1]} : vector<8x28xf32> to vector<8x18xf32>
    %355 = vector.extract_strided_slice %351 {offsets = [0, 6], sizes = [8, 18], strides = [1, 1]} : vector<8x28xf32> to vector<8x18xf32>
    %356 = tpu.concatenate %353, %354, %355 in 0 : vector<8x18xf32>, vector<8x18xf32>, vector<8x18xf32> -> vector<24x18xf32>
    %c0_151 = arith.constant 0 : index
    %c0_152 = arith.constant 0 : index
    %c0_153 = arith.constant 0 : index
    %357 = vector.load %arg4[%c0_151, %c0_152, %c0_153] : memref<3x8x24xf32, #tpu.memory_space<vmem>>, vector<1x8x24xf32>
    %358 = vector.shape_cast %357 : vector<1x8x24xf32> to vector<8x24xf32>
    %cst_154 = arith.constant dense<0.000000e+00> : vector<8x18xf32>
    %359 = tpu.matmul %358, %356, %cst_154 {dimension_numbers = #tpu.dot_dimension_numbers<[1], [0], [0], [1], [0, 0, 1, 1], [], []>} : vector<8x24xf32>, vector<24x18xf32>, vector<8x18xf32> -> vector<8x18xf32>
    %c0_155 = arith.constant 0 : index
    %c0_156 = arith.constant 0 : index
    %c0_157 = arith.constant 0 : index
    %360 = vector.load %arg5[%c0_155, %c0_156, %c0_157] : memref<3x8x1xf32, #tpu.memory_space<vmem>>, vector<1x8x1xf32>
    %361 = vector.shape_cast %360 : vector<1x8x1xf32> to vector<8x1xf32>
    %362 = vector.broadcast %361 : vector<8x1xf32> to vector<8x18xf32>
    %363 = arith.addf %359, %362 : vector<8x18xf32>
    %cst_158 = arith.constant 0.000000e+00 : f32
    %364 = vector.broadcast %cst_158 : f32 to vector<8x18xf32>
    %365 = arith.maximumf %363, %364 : vector<8x18xf32>
    %366 = math.absf %363 : vector<8x18xf32>
    %cst_159 = arith.constant 0.000000e+00 : f32
    %367 = vector.broadcast %cst_159 : f32 to vector<8x18xf32>
    %368 = arith.subf %367, %366 : vector<8x18xf32>
    %369 = math.exp %368 : vector<8x18xf32>
    %cst_160 = arith.constant 1.000000e+00 : f32
    %370 = vector.broadcast %cst_160 : f32 to vector<8x18xf32>
    %371 = arith.addf %370, %369 : vector<8x18xf32>
    %372 = math.log %371 : vector<8x18xf32>
    %373 = arith.addf %365, %372 : vector<8x18xf32>
    %374 = math.tanh %373 : vector<8x18xf32>
    %375 = arith.mulf %363, %374 : vector<8x18xf32>
    %376 = vector.broadcast %17 : vector<1x18xf32> to vector<8x18xf32>
    %377 = arith.mulf %375, %376 : vector<8x18xf32>
    %378 = vector.extract_strided_slice %377 {offsets = [0, 0], sizes = [8, 16], strides = [1, 1]} : vector<8x18xf32> to vector<8x16xf32>
    %379 = vector.extract_strided_slice %377 {offsets = [0, 1], sizes = [8, 16], strides = [1, 1]} : vector<8x18xf32> to vector<8x16xf32>
    %380 = vector.extract_strided_slice %377 {offsets = [0, 2], sizes = [8, 16], strides = [1, 1]} : vector<8x18xf32> to vector<8x16xf32>
    %381 = tpu.concatenate %378, %379, %380 in 0 : vector<8x16xf32>, vector<8x16xf32>, vector<8x16xf32> -> vector<24x16xf32>
    %c0_161 = arith.constant 0 : index
    %c0_162 = arith.constant 0 : index
    %c0_163 = arith.constant 0 : index
    %382 = vector.load %arg6[%c0_161, %c0_162, %c0_163] : memref<3x8x24xf32, #tpu.memory_space<vmem>>, vector<1x8x24xf32>
    %383 = vector.shape_cast %382 : vector<1x8x24xf32> to vector<8x24xf32>
    %cst_164 = arith.constant dense<0.000000e+00> : vector<8x16xf32>
    %384 = tpu.matmul %383, %381, %cst_164 {dimension_numbers = #tpu.dot_dimension_numbers<[1], [0], [0], [1], [0, 0, 1, 1], [], []>} : vector<8x24xf32>, vector<24x16xf32>, vector<8x16xf32> -> vector<8x16xf32>
    %c0_165 = arith.constant 0 : index
    %c0_166 = arith.constant 0 : index
    %c0_167 = arith.constant 0 : index
    %385 = vector.load %arg7[%c0_165, %c0_166, %c0_167] : memref<3x8x1xf32, #tpu.memory_space<vmem>>, vector<1x8x1xf32>
    %386 = vector.shape_cast %385 : vector<1x8x1xf32> to vector<8x1xf32>
    %387 = vector.broadcast %386 : vector<8x1xf32> to vector<8x16xf32>
    %388 = arith.addf %384, %387 : vector<8x16xf32>
    %cst_168 = arith.constant 0.000000e+00 : f32
    %389 = vector.broadcast %cst_168 : f32 to vector<8x16xf32>
    %390 = arith.maximumf %388, %389 : vector<8x16xf32>
    %391 = math.absf %388 : vector<8x16xf32>
    %cst_169 = arith.constant 0.000000e+00 : f32
    %392 = vector.broadcast %cst_169 : f32 to vector<8x16xf32>
    %393 = arith.subf %392, %391 : vector<8x16xf32>
    %394 = math.exp %393 : vector<8x16xf32>
    %cst_170 = arith.constant 1.000000e+00 : f32
    %395 = vector.broadcast %cst_170 : f32 to vector<8x16xf32>
    %396 = arith.addf %395, %394 : vector<8x16xf32>
    %397 = math.log %396 : vector<8x16xf32>
    %398 = arith.addf %390, %397 : vector<8x16xf32>
    %399 = math.tanh %398 : vector<8x16xf32>
    %400 = arith.mulf %388, %399 : vector<8x16xf32>
    %401 = arith.addf %352, %400 : vector<8x16xf32>
    %402 = vector.extract_strided_slice %351 {offsets = [0, 2], sizes = [8, 18], strides = [1, 1]} : vector<8x28xf32> to vector<8x18xf32>
    %403 = vector.extract_strided_slice %351 {offsets = [0, 5], sizes = [8, 18], strides = [1, 1]} : vector<8x28xf32> to vector<8x18xf32>
    %404 = vector.extract_strided_slice %351 {offsets = [0, 8], sizes = [8, 18], strides = [1, 1]} : vector<8x28xf32> to vector<8x18xf32>
    %405 = tpu.concatenate %402, %403, %404 in 0 : vector<8x18xf32>, vector<8x18xf32>, vector<8x18xf32> -> vector<24x18xf32>
    %c1_171 = arith.constant 1 : index
    %c0_172 = arith.constant 0 : index
    %c0_173 = arith.constant 0 : index
    %406 = vector.load %arg4[%c1_171, %c0_172, %c0_173] : memref<3x8x24xf32, #tpu.memory_space<vmem>>, vector<1x8x24xf32>
    %407 = vector.shape_cast %406 : vector<1x8x24xf32> to vector<8x24xf32>
    %cst_174 = arith.constant dense<0.000000e+00> : vector<8x18xf32>
    %408 = tpu.matmul %407, %405, %cst_174 {dimension_numbers = #tpu.dot_dimension_numbers<[1], [0], [0], [1], [0, 0, 1, 1], [], []>} : vector<8x24xf32>, vector<24x18xf32>, vector<8x18xf32> -> vector<8x18xf32>
    %c1_175 = arith.constant 1 : index
    %c0_176 = arith.constant 0 : index
    %c0_177 = arith.constant 0 : index
    %409 = vector.load %arg5[%c1_175, %c0_176, %c0_177] : memref<3x8x1xf32, #tpu.memory_space<vmem>>, vector<1x8x1xf32>
    %410 = vector.shape_cast %409 : vector<1x8x1xf32> to vector<8x1xf32>
    %411 = vector.broadcast %410 : vector<8x1xf32> to vector<8x18xf32>
    %412 = arith.addf %408, %411 : vector<8x18xf32>
    %cst_178 = arith.constant 0.000000e+00 : f32
    %413 = vector.broadcast %cst_178 : f32 to vector<8x18xf32>
    %414 = arith.maximumf %412, %413 : vector<8x18xf32>
    %415 = math.absf %412 : vector<8x18xf32>
    %cst_179 = arith.constant 0.000000e+00 : f32
    %416 = vector.broadcast %cst_179 : f32 to vector<8x18xf32>
    %417 = arith.subf %416, %415 : vector<8x18xf32>
    %418 = math.exp %417 : vector<8x18xf32>
    %cst_180 = arith.constant 1.000000e+00 : f32
    %419 = vector.broadcast %cst_180 : f32 to vector<8x18xf32>
    %420 = arith.addf %419, %418 : vector<8x18xf32>
    %421 = math.log %420 : vector<8x18xf32>
    %422 = arith.addf %414, %421 : vector<8x18xf32>
    %423 = math.tanh %422 : vector<8x18xf32>
    %424 = arith.mulf %412, %423 : vector<8x18xf32>
    %425 = vector.broadcast %17 : vector<1x18xf32> to vector<8x18xf32>
    %426 = arith.mulf %424, %425 : vector<8x18xf32>
    %427 = vector.extract_strided_slice %426 {offsets = [0, 0], sizes = [8, 16], strides = [1, 1]} : vector<8x18xf32> to vector<8x16xf32>
    %428 = vector.extract_strided_slice %426 {offsets = [0, 1], sizes = [8, 16], strides = [1, 1]} : vector<8x18xf32> to vector<8x16xf32>
    %429 = vector.extract_strided_slice %426 {offsets = [0, 2], sizes = [8, 16], strides = [1, 1]} : vector<8x18xf32> to vector<8x16xf32>
    %430 = tpu.concatenate %427, %428, %429 in 0 : vector<8x16xf32>, vector<8x16xf32>, vector<8x16xf32> -> vector<24x16xf32>
    %c1_181 = arith.constant 1 : index
    %c0_182 = arith.constant 0 : index
    %c0_183 = arith.constant 0 : index
    %431 = vector.load %arg6[%c1_181, %c0_182, %c0_183] : memref<3x8x24xf32, #tpu.memory_space<vmem>>, vector<1x8x24xf32>
    %432 = vector.shape_cast %431 : vector<1x8x24xf32> to vector<8x24xf32>
    %cst_184 = arith.constant dense<0.000000e+00> : vector<8x16xf32>
    %433 = tpu.matmul %432, %430, %cst_184 {dimension_numbers = #tpu.dot_dimension_numbers<[1], [0], [0], [1], [0, 0, 1, 1], [], []>} : vector<8x24xf32>, vector<24x16xf32>, vector<8x16xf32> -> vector<8x16xf32>
    %c1_185 = arith.constant 1 : index
    %c0_186 = arith.constant 0 : index
    %c0_187 = arith.constant 0 : index
    %434 = vector.load %arg7[%c1_185, %c0_186, %c0_187] : memref<3x8x1xf32, #tpu.memory_space<vmem>>, vector<1x8x1xf32>
    %435 = vector.shape_cast %434 : vector<1x8x1xf32> to vector<8x1xf32>
    %436 = vector.broadcast %435 : vector<8x1xf32> to vector<8x16xf32>
    %437 = arith.addf %433, %436 : vector<8x16xf32>
    %cst_188 = arith.constant 0.000000e+00 : f32
    %438 = vector.broadcast %cst_188 : f32 to vector<8x16xf32>
    %439 = arith.maximumf %437, %438 : vector<8x16xf32>
    %440 = math.absf %437 : vector<8x16xf32>
    %cst_189 = arith.constant 0.000000e+00 : f32
    %441 = vector.broadcast %cst_189 : f32 to vector<8x16xf32>
    %442 = arith.subf %441, %440 : vector<8x16xf32>
    %443 = math.exp %442 : vector<8x16xf32>
    %cst_190 = arith.constant 1.000000e+00 : f32
    %444 = vector.broadcast %cst_190 : f32 to vector<8x16xf32>
    %445 = arith.addf %444, %443 : vector<8x16xf32>
    %446 = math.log %445 : vector<8x16xf32>
    %447 = arith.addf %439, %446 : vector<8x16xf32>
    %448 = math.tanh %447 : vector<8x16xf32>
    %449 = arith.mulf %437, %448 : vector<8x16xf32>
    %450 = arith.addf %401, %449 : vector<8x16xf32>
    %451 = vector.extract_strided_slice %351 {offsets = [0, 0], sizes = [8, 18], strides = [1, 1]} : vector<8x28xf32> to vector<8x18xf32>
    %452 = vector.extract_strided_slice %351 {offsets = [0, 5], sizes = [8, 18], strides = [1, 1]} : vector<8x28xf32> to vector<8x18xf32>
    %453 = vector.extract_strided_slice %351 {offsets = [0, 10], sizes = [8, 18], strides = [1, 1]} : vector<8x28xf32> to vector<8x18xf32>
    %454 = tpu.concatenate %451, %452, %453 in 0 : vector<8x18xf32>, vector<8x18xf32>, vector<8x18xf32> -> vector<24x18xf32>
    %c2_191 = arith.constant 2 : index
    %c0_192 = arith.constant 0 : index
    %c0_193 = arith.constant 0 : index
    %455 = vector.load %arg4[%c2_191, %c0_192, %c0_193] : memref<3x8x24xf32, #tpu.memory_space<vmem>>, vector<1x8x24xf32>
    %456 = vector.shape_cast %455 : vector<1x8x24xf32> to vector<8x24xf32>
    %cst_194 = arith.constant dense<0.000000e+00> : vector<8x18xf32>
    %457 = tpu.matmul %456, %454, %cst_194 {dimension_numbers = #tpu.dot_dimension_numbers<[1], [0], [0], [1], [0, 0, 1, 1], [], []>} : vector<8x24xf32>, vector<24x18xf32>, vector<8x18xf32> -> vector<8x18xf32>
    %c2_195 = arith.constant 2 : index
    %c0_196 = arith.constant 0 : index
    %c0_197 = arith.constant 0 : index
    %458 = vector.load %arg5[%c2_195, %c0_196, %c0_197] : memref<3x8x1xf32, #tpu.memory_space<vmem>>, vector<1x8x1xf32>
    %459 = vector.shape_cast %458 : vector<1x8x1xf32> to vector<8x1xf32>
    %460 = vector.broadcast %459 : vector<8x1xf32> to vector<8x18xf32>
    %461 = arith.addf %457, %460 : vector<8x18xf32>
    %cst_198 = arith.constant 0.000000e+00 : f32
    %462 = vector.broadcast %cst_198 : f32 to vector<8x18xf32>
    %463 = arith.maximumf %461, %462 : vector<8x18xf32>
    %464 = math.absf %461 : vector<8x18xf32>
    %cst_199 = arith.constant 0.000000e+00 : f32
    %465 = vector.broadcast %cst_199 : f32 to vector<8x18xf32>
    %466 = arith.subf %465, %464 : vector<8x18xf32>
    %467 = math.exp %466 : vector<8x18xf32>
    %cst_200 = arith.constant 1.000000e+00 : f32
    %468 = vector.broadcast %cst_200 : f32 to vector<8x18xf32>
    %469 = arith.addf %468, %467 : vector<8x18xf32>
    %470 = math.log %469 : vector<8x18xf32>
    %471 = arith.addf %463, %470 : vector<8x18xf32>
    %472 = math.tanh %471 : vector<8x18xf32>
    %473 = arith.mulf %461, %472 : vector<8x18xf32>
    %474 = vector.broadcast %17 : vector<1x18xf32> to vector<8x18xf32>
    %475 = arith.mulf %473, %474 : vector<8x18xf32>
    %476 = vector.extract_strided_slice %475 {offsets = [0, 0], sizes = [8, 16], strides = [1, 1]} : vector<8x18xf32> to vector<8x16xf32>
    %477 = vector.extract_strided_slice %475 {offsets = [0, 1], sizes = [8, 16], strides = [1, 1]} : vector<8x18xf32> to vector<8x16xf32>
    %478 = vector.extract_strided_slice %475 {offsets = [0, 2], sizes = [8, 16], strides = [1, 1]} : vector<8x18xf32> to vector<8x16xf32>
    %479 = tpu.concatenate %476, %477, %478 in 0 : vector<8x16xf32>, vector<8x16xf32>, vector<8x16xf32> -> vector<24x16xf32>
    %c2_201 = arith.constant 2 : index
    %c0_202 = arith.constant 0 : index
    %c0_203 = arith.constant 0 : index
    %480 = vector.load %arg6[%c2_201, %c0_202, %c0_203] : memref<3x8x24xf32, #tpu.memory_space<vmem>>, vector<1x8x24xf32>
    %481 = vector.shape_cast %480 : vector<1x8x24xf32> to vector<8x24xf32>
    %cst_204 = arith.constant dense<0.000000e+00> : vector<8x16xf32>
    %482 = tpu.matmul %481, %479, %cst_204 {dimension_numbers = #tpu.dot_dimension_numbers<[1], [0], [0], [1], [0, 0, 1, 1], [], []>} : vector<8x24xf32>, vector<24x16xf32>, vector<8x16xf32> -> vector<8x16xf32>
    %c2_205 = arith.constant 2 : index
    %c0_206 = arith.constant 0 : index
    %c0_207 = arith.constant 0 : index
    %483 = vector.load %arg7[%c2_205, %c0_206, %c0_207] : memref<3x8x1xf32, #tpu.memory_space<vmem>>, vector<1x8x1xf32>
    %484 = vector.shape_cast %483 : vector<1x8x1xf32> to vector<8x1xf32>
    %485 = vector.broadcast %484 : vector<8x1xf32> to vector<8x16xf32>
    %486 = arith.addf %482, %485 : vector<8x16xf32>
    %cst_208 = arith.constant 0.000000e+00 : f32
    %487 = vector.broadcast %cst_208 : f32 to vector<8x16xf32>
    %488 = arith.maximumf %486, %487 : vector<8x16xf32>
    %489 = math.absf %486 : vector<8x16xf32>
    %cst_209 = arith.constant 0.000000e+00 : f32
    %490 = vector.broadcast %cst_209 : f32 to vector<8x16xf32>
    %491 = arith.subf %490, %489 : vector<8x16xf32>
    %492 = math.exp %491 : vector<8x16xf32>
    %cst_210 = arith.constant 1.000000e+00 : f32
    %493 = vector.broadcast %cst_210 : f32 to vector<8x16xf32>
    %494 = arith.addf %493, %492 : vector<8x16xf32>
    %495 = math.log %494 : vector<8x16xf32>
    %496 = arith.addf %488, %495 : vector<8x16xf32>
    %497 = math.tanh %496 : vector<8x16xf32>
    %498 = arith.mulf %486, %497 : vector<8x16xf32>
    %499 = arith.addf %450, %498 : vector<8x16xf32>
    %cst_211 = arith.constant 0.333333343 : f32
    %500 = vector.broadcast %cst_211 : f32 to vector<8x16xf32>
    %501 = arith.mulf %499, %500 : vector<8x16xf32>
    %c0_212 = arith.constant 0 : index
    %c16 = arith.constant 16 : index
    %502 = vector.load %arg8[%c0_212, %c16] : memref<8x24xf32, #tpu.memory_space<vmem>>, vector<8x8xf32>
    %cst_213 = arith.constant dense<0.000000e+00> : vector<8x16xf32>
    %503 = tpu.matmul %502, %501, %cst_213 {dimension_numbers = #tpu.dot_dimension_numbers<[1], [0], [0], [1], [0, 0, 1, 1], [], []>} : vector<8x8xf32>, vector<8x16xf32>, vector<8x16xf32> -> vector<8x16xf32>
    %504 = arith.addf %342, %503 : vector<8x16xf32>
    %c0_214 = arith.constant 0 : index
    %c0_215 = arith.constant 0 : index
    %505 = vector.load %arg9[%c0_214, %c0_215] : memref<8x1xf32, #tpu.memory_space<vmem>>, vector<8x1xf32>
    %506 = vector.broadcast %505 : vector<8x1xf32> to vector<8x16xf32>
    %507 = arith.addf %504, %506 : vector<8x16xf32>
    %c0_216 = arith.constant 0 : index
    %c0_217 = arith.constant 0 : index
    %c0_218 = arith.constant 0 : index
    %508 = vector.load %arg10[%c0_216, %c0_217, %c0_218] : memref<1x8x16xf32, #tpu.memory_space<vmem>>, vector<1x8x16xf32>
    %509 = vector.shape_cast %508 : vector<1x8x16xf32> to vector<8x16xf32>
    %510 = vector.shape_cast %507 : vector<8x16xf32> to vector<1x8x16xf32>
    tpu.vector_store %arg10[%c0_216, %c0_217, %c0_218], %510 {strides = array<i32>} : memref<1x8x16xf32, #tpu.memory_space<vmem>>, vector<1x8x16xf32>,
    return
  }
  func.func @transform_0(%arg0: i32) -> (i32, i32, i32) {
    %c0_i32 = arith.constant 0 : i32
    %c0_i32_0 = arith.constant 0 : i32
    %c0_i32_1 = arith.constant 0 : i32
    return %arg0, %c0_i32, %c0_i32_0 : i32, i32, i32
  }
  func.func @transform_1(%arg0: i32) -> (i32, i32, i32) {
    %c0_i32 = arith.constant 0 : i32
    %c0_i32_0 = arith.constant 0 : i32
    %c0_i32_1 = arith.constant 0 : i32
    %c0_i32_2 = arith.constant 0 : i32
    return %c0_i32, %c0_i32_0, %c0_i32_1 : i32, i32, i32
  }
  func.func @transform_2(%arg0: i32) -> (i32, i32, i32) {
    %c0_i32 = arith.constant 0 : i32
    %c0_i32_0 = arith.constant 0 : i32
    %c0_i32_1 = arith.constant 0 : i32
    %c0_i32_2 = arith.constant 0 : i32
    return %c0_i32, %c0_i32_0, %c0_i32_1 : i32, i32, i32
  }
  func.func @transform_3(%arg0: i32) -> (i32, i32, i32) {
    %c0_i32 = arith.constant 0 : i32
    %c0_i32_0 = arith.constant 0 : i32
    %c0_i32_1 = arith.constant 0 : i32
    %c0_i32_2 = arith.constant 0 : i32
    return %c0_i32, %c0_i32_0, %c0_i32_1 : i32, i32, i32
  }
  func.func @transform_4(%arg0: i32) -> (i32, i32, i32) {
    %c0_i32 = arith.constant 0 : i32
    %c0_i32_0 = arith.constant 0 : i32
    %c0_i32_1 = arith.constant 0 : i32
    %c0_i32_2 = arith.constant 0 : i32
    return %c0_i32, %c0_i32_0, %c0_i32_1 : i32, i32, i32
  }
  func.func @transform_5(%arg0: i32) -> (i32, i32, i32) {
    %c0_i32 = arith.constant 0 : i32
    %c0_i32_0 = arith.constant 0 : i32
    %c0_i32_1 = arith.constant 0 : i32
    %c0_i32_2 = arith.constant 0 : i32
    return %c0_i32, %c0_i32_0, %c0_i32_1 : i32, i32, i32
  }
  func.func @transform_6(%arg0: i32) -> (i32, i32, i32) {
    %c0_i32 = arith.constant 0 : i32
    %c0_i32_0 = arith.constant 0 : i32
    %c0_i32_1 = arith.constant 0 : i32
    %c0_i32_2 = arith.constant 0 : i32
    return %c0_i32, %c0_i32_0, %c0_i32_1 : i32, i32, i32
  }
  func.func @transform_7(%arg0: i32) -> (i32, i32) {
    %c0_i32 = arith.constant 0 : i32
    %c0_i32_0 = arith.constant 0 : i32
    %c0_i32_1 = arith.constant 0 : i32
    return %c0_i32, %c0_i32_0 : i32, i32
  }
  func.func @transform_8(%arg0: i32) -> (i32, i32) {
    %c0_i32 = arith.constant 0 : i32
    %c0_i32_0 = arith.constant 0 : i32
    %c0_i32_1 = arith.constant 0 : i32
    return %c0_i32, %c0_i32_0 : i32, i32
  }
  func.func @transform_9(%arg0: i32) -> (i32, i32, i32) {
    %c0_i32 = arith.constant 0 : i32
    %c0_i32_0 = arith.constant 0 : i32
    %c0_i32_1 = arith.constant 0 : i32
    return %arg0, %c0_i32, %c0_i32_0 : i32, i32, i32
  }
}

</mosaic_0001>

<llo_original>
// kernel: tpu_custom_call.1
$region0: #{tpu_custom_call.1}
  #allocation0 [shape = 'u32[]', space=smem, size = 0x4, offset = 0x4, fixed_abs, tag = 'smem constant byte address 0x4 - core index']
  #allocation1 [shape = 'u32[144,128]{1,0:T(1,128)}', space=vmem, size = 0x12000, scoped, tag = 'internal scratch']
  %s0 = inlined_call_operand.vmem [shape: f32[2,8,28], index: 0, kind: input, shape index: {}]
  %s1 = inlined_call_operand.vmem [shape: f32[3,8,8], index: 1, kind: input, shape index: {}]
  %s2 = inlined_call_operand.vmem [shape: f32[3,8,1], index: 2, kind: input, shape index: {}]
  %s3 = inlined_call_operand.vmem [shape: f32[3,8,24], index: 3, kind: input, shape index: {}]
  %s4 = inlined_call_operand.vmem [shape: f32[3,8,1], index: 4, kind: input, shape index: {}]
  %s5 = inlined_call_operand.vmem [shape: f32[3,8,24], index: 5, kind: input, shape index: {}]
  %s6 = inlined_call_operand.vmem [shape: f32[3,8,1], index: 6, kind: input, shape index: {}]
  %s7 = inlined_call_operand.vmem [shape: f32[8,24], index: 7, kind: input, shape index: {}]
  %s8 = inlined_call_operand.vmem [shape: f32[8,1], index: 8, kind: input, shape index: {}]
  %s9 = inlined_call_operand.hbm [shape: f32[2,8,16], index: 9, kind: output, shape index: {}]
  %s10 = sld [smem:[#allocation0]]
  $region69: #{tpu_custom_call.1} parent=0
    _
  %s12 = ssub.s32 1, %s10
  %s13 = scalar_select 0, %s12, %s10
  $region1: #{tpu_custom_call.1} parent=0
    #allocation2 [shape = 'u8[8192]{0}', space=vmem, size = 0x2000, scoped, tag = 'output window, operand 0']
    #allocation3 [shape = 's32[2]{0}', space=sflag, size = 0x8, scoped, tag = 'scoped memory for tpu_custom_call.1']
    %14 = vsyncpa [#allocation3], 0
    %s15 = scalar_lea.sflag [#allocation3], 1
    %16 = vsyncpa %s15, 0
    loop: start=0, step=1, limit=4
    $region2: #{tpu_custom_call.1} parent=1 // loop_pre_header
      _
    $region3: #{tpu_custom_call.1} parent=1 // loop_header
      %s18 = sphi 0, %s22
      %p19 = scmp.ge.s32.totalorder %s18, 4
      %s28 = sphi 0, %s30
      %s31 = sphi 0, %s28
      %s32 = sphi 0, %s31
      %s48 = sphi 0, %s32
      %s52 = sphi 0, %s52
      %s54 = sphi 0, %s52
      %s55 = sphi 0, %s54
      %s69 = sphi 0, %s55
      %s73 = sphi 0, %s73
      %s75 = sphi 0, %s73
      %s76 = sphi 0, %s75
      %s90 = sphi 0, %s76
      %s94 = sphi 0, %s94
      %s96 = sphi 0, %s94
      %s97 = sphi 0, %s96
      %s111 = sphi 0, %s97
      %s115 = sphi 0, %s115
      %s117 = sphi 0, %s115
      %s118 = sphi 0, %s117
      %s132 = sphi 0, %s118
      %s136 = sphi 0, %s136
      %s138 = sphi 0, %s136
      %s139 = sphi 0, %s138
      %s153 = sphi 0, %s139
      %s157 = sphi 0, %s157
      %s159 = sphi 0, %s157
      %s160 = sphi 0, %s159
      %s174 = sphi 0, %s160
      %s178 = sphi 0, %s178
      %s180 = sphi 0, %s178
      %s181 = sphi 0, %s180
      %s195 = sphi 0, %s181
      %s199 = sphi 0, %s199
      %s201 = sphi 0, %s199
      %s202 = sphi 0, %s201
      %s216 = sphi 0, %s202
      %s222 = sphi 0, %s224
      %s225 = sphi 0, %s222
      %s226 = sphi 0, %s225
      %s242 = sphi 0, %s226
    $region4: #{tpu_custom_call.1} parent=1 // loop_header_branch
      %21 = sbr.rel (%p19) target = $region8
    $region5: #{tpu_custom_call.1} parent=1 // loop_body
      %s23 = ssub.s32 %s18, 1
      %s24 = ssub.s32 %s18, 2
      %s25 = sadd.s32 %s18, 1
      %s26 = ssub.s32 %s18, %s25
      %p27 = scmp.eq.s32.totalorder %s26, 0
      %s29 = sadd.s32 %s28, 1
      %s30 = scalar_select %p27, %s28, %s29
      %p33 = pneg %p27
      %p34 = scmp.eq.s32.totalorder %s18, 1
      %p35 = por %p33, %p34
      %p36 = scmp.ne.s32.totalorder %s28, %s31
      %p37 = scmp.eq.s32.totalorder %s18, 0
      %p38 = por %p36, %p37
      %p39 = scmp.ne.s32.totalorder %s28, %s31
      %p40 = scmp.eq.s32.totalorder %s23, 1
      %p41 = por %p39, %p40
      %p42 = scmp.ne.s32.totalorder %s31, %s32
      %p43 = scmp.eq.s32.totalorder %s23, 0
      %p44 = por %p42, %p43
      %p45 = scmp.ne.s32.totalorder %s31, %s32
      %p46 = scmp.eq.s32.totalorder %s24, 1
      %p47 = por %p45, %p46
      %p49 = scmp.ne.s32.totalorder %s32, %s48
      %p50 = scmp.eq.s32.totalorder %s24, 0
      %p51 = por %p49, %p50
      %s53 = sadd.s32 %s52, 1
      %p56 = scmp.eq.s32.totalorder %s18, 1
      %p57 = scmp.ne.s32.totalorder %s52, %s54
      %p58 = scmp.eq.s32.totalorder %s18, 0
      %p59 = por %p57, %p58
      %p60 = scmp.ne.s32.totalorder %s52, %s54
      %p61 = scmp.eq.s32.totalorder %s23, 1
      %p62 = por %p60, %p61
      %p63 = scmp.ne.s32.totalorder %s54, %s55
      %p64 = scmp.eq.s32.totalorder %s23, 0
      %p65 = por %p63, %p64
      %p66 = scmp.ne.s32.totalorder %s54, %s55
      %p67 = scmp.eq.s32.totalorder %s24, 1
      %p68 = por %p66, %p67
      %p70 = scmp.ne.s32.totalorder %s55, %s69
      %p71 = scmp.eq.s32.totalorder %s24, 0
      %p72 = por %p70, %p71
      %s74 = sadd.s32 %s73, 1
      %p77 = scmp.eq.s32.totalorder %s18, 1
      %p78 = scmp.ne.s32.totalorder %s73, %s75
      %p79 = scmp.eq.s32.totalorder %s18, 0
      %p80 = por %p78, %p79
      %p81 = scmp.ne.s32.totalorder %s73, %s75
      %p82 = scmp.eq.s32.totalorder %s23, 1
      %p83 = por %p81, %p82
      %p84 = scmp.ne.s32.totalorder %s75, %s76
      %p85 = scmp.eq.s32.totalorder %s23, 0
      %p86 = por %p84, %p85
      %p87 = scmp.ne.s32.totalorder %s75, %s76
      %p88 = scmp.eq.s32.totalorder %s24, 1
      %p89 = por %p87, %p88
      %p91 = scmp.ne.s32.totalorder %s76, %s90
      %p92 = scmp.eq.s32.totalorder %s24, 0
      %p93 = por %p91, %p92
      %s95 = sadd.s32 %s94, 1
      %p98 = scmp.eq.s32.totalorder %s18, 1
      %p99 = scmp.ne.s32.totalorder %s94, %s96
      %p100 = scmp.eq.s32.totalorder %s18, 0
      %p101 = por %p99, %p100
      %p102 = scmp.ne.s32.totalorder %s94, %s96
      %p103 = scmp.eq.s32.totalorder %s23, 1
      %p104 = por %p102, %p103
      %p105 = scmp.ne.s32.totalorder %s96, %s97
      %p106 = scmp.eq.s32.totalorder %s23, 0
      %p107 = por %p105, %p106
      %p108 = scmp.ne.s32.totalorder %s96, %s97
      %p109 = scmp.eq.s32.totalorder %s24, 1
      %p110 = por %p108, %p109
      %p112 = scmp.ne.s32.totalorder %s97, %s111
      %p113 = scmp.eq.s32.totalorder %s24, 0
      %p114 = por %p112, %p113
      %s116 = sadd.s32 %s115, 1
      %p119 = scmp.eq.s32.totalorder %s18, 1
      %p120 = scmp.ne.s32.totalorder %s115, %s117
      %p121 = scmp.eq.s32.totalorder %s18, 0
      %p122 = por %p120, %p121
      %p123 = scmp.ne.s32.totalorder %s115, %s117
      %p124 = scmp.eq.s32.totalorder %s23, 1
      %p125 = por %p123, %p124
      %p126 = scmp.ne.s32.totalorder %s117, %s118
      %p127 = scmp.eq.s32.totalorder %s23, 0
      %p128 = por %p126, %p127
      %p129 = scmp.ne.s32.totalorder %s117, %s118
      %p130 = scmp.eq.s32.totalorder %s24, 1
      %p131 = por %p129, %p130
      %p133 = scmp.ne.s32.totalorder %s118, %s132
      %p134 = scmp.eq.s32.totalorder %s24, 0
      %p135 = por %p133, %p134
      %s137 = sadd.s32 %s136, 1
      %p140 = scmp.eq.s32.totalorder %s18, 1
      %p141 = scmp.ne.s32.totalorder %s136, %s138
      %p142 = scmp.eq.s32.totalorder %s18, 0
      %p143 = por %p141, %p142
      %p144 = scmp.ne.s32.totalorder %s136, %s138
      %p145 = scmp.eq.s32.totalorder %s23, 1
      %p146 = por %p144, %p145
      %p147 = scmp.ne.s32.totalorder %s138, %s139
      %p148 = scmp.eq.s32.totalorder %s23, 0
      %p149 = por %p147, %p148
      %p150 = scmp.ne.s32.totalorder %s138, %s139
      %p151 = scmp.eq.s32.totalorder %s24, 1
      %p152 = por %p150, %p151
      %p154 = scmp.ne.s32.totalorder %s139, %s153
      %p155 = scmp.eq.s32.totalorder %s24, 0
      %p156 = por %p154, %p155
      %s158 = sadd.s32 %s157, 1
      %p161 = scmp.eq.s32.totalorder %s18, 1
      %p162 = scmp.ne.s32.totalorder %s157, %s159
      %p163 = scmp.eq.s32.totalorder %s18, 0
      %p164 = por %p162, %p163
      %p165 = scmp.ne.s32.totalorder %s157, %s159
      %p166 = scmp.eq.s32.totalorder %s23, 1
      %p167 = por %p165, %p166
      %p168 = scmp.ne.s32.totalorder %s159, %s160
      %p169 = scmp.eq.s32.totalorder %s23, 0
      %p170 = por %p168, %p169
      %p171 = scmp.ne.s32.totalorder %s159, %s160
      %p172 = scmp.eq.s32.totalorder %s24, 1
      %p173 = por %p171, %p172
      %p175 = scmp.ne.s32.totalorder %s160, %s174
      %p176 = scmp.eq.s32.totalorder %s24, 0
      %p177 = por %p175, %p176
      %s179 = sadd.s32 %s178, 1
      %p182 = scmp.eq.s32.totalorder %s18, 1
      %p183 = scmp.ne.s32.totalorder %s178, %s180
      %p184 = scmp.eq.s32.totalorder %s18, 0
      %p185 = por %p183, %p184
      %p186 = scmp.ne.s32.totalorder %s178, %s180
      %p187 = scmp.eq.s32.totalorder %s23, 1
      %p188 = por %p186, %p187
      %p189 = scmp.ne.s32.totalorder %s180, %s181
      %p190 = scmp.eq.s32.totalorder %s23, 0
      %p191 = por %p189, %p190
      %p192 = scmp.ne.s32.totalorder %s180, %s181
      %p193 = scmp.eq.s32.totalorder %s24, 1
      %p194 = por %p192, %p193
      %p196 = scmp.ne.s32.totalorder %s181, %s195
      %p197 = scmp.eq.s32.totalorder %s24, 0
      %p198 = por %p196, %p197
      %s200 = sadd.s32 %s199, 1
      %p203 = scmp.eq.s32.totalorder %s18, 1
      %p204 = scmp.ne.s32.totalorder %s199, %s201
      %p205 = scmp.eq.s32.totalorder %s18, 0
      %p206 = por %p204, %p205
      %p207 = scmp.ne.s32.totalorder %s199, %s201
      %p208 = scmp.eq.s32.totalorder %s23, 1
      %p209 = por %p207, %p208
      %p210 = scmp.ne.s32.totalorder %s201, %s202
      %p211 = scmp.eq.s32.totalorder %s23, 0
      %p212 = por %p210, %p211
      %p213 = scmp.ne.s32.totalorder %s201, %s202
      %p214 = scmp.eq.s32.totalorder %s24, 1
      %p215 = por %p213, %p214
      %p217 = scmp.ne.s32.totalorder %s202, %s216
      %p218 = scmp.eq.s32.totalorder %s24, 0
      %p219 = por %p217, %p218
      %s220 = ssub.s32 %s18, %s25
      %p221 = scmp.eq.s32.totalorder %s220, 0
      %s223 = sadd.s32 %s222, 1
      %s224 = scalar_select %p221, %s222, %s223
      %p227 = pneg %p221
      %p228 = scmp.eq.s32.totalorder %s18, 1
      %p229 = por %p227, %p228
      %p230 = scmp.ne.s32.totalorder %s222, %s225
      %p231 = scmp.eq.s32.totalorder %s18, 0
      %p232 = por %p230, %p231
      %p233 = scmp.ne.s32.totalorder %s222, %s225
      %p234 = scmp.eq.s32.totalorder %s23, 1
      %p235 = por %p233, %p234
      %p236 = scmp.ne.s32.totalorder %s225, %s226
      %p237 = scmp.eq.s32.totalorder %s23, 0
      %p238 = por %p236, %p237
      %p239 = scmp.ne.s32.totalorder %s225, %s226
      %p240 = scmp.eq.s32.totalorder %s24, 1
      %p241 = por %p239, %p240
      %p243 = scmp.ne.s32.totalorder %s226, %s242
      %p244 = scmp.eq.s32.totalorder %s24, 0
      %p245 = por %p243, %p244
      %p246 = scmp.le.s32.totalorder 1, %s18
      %p247 = scmp.lt.s32.totalorder %s18, 3
      %p248 = pnand %p246, %p247
      %p249 = pneg %p248
      // Predicated region
      $region9: #{tpu_custom_call.1} parent=5 // pred_check
        _
      $region10: #{tpu_custom_call.1} parent=5 // pred_check_branch
        %251 = sbr.rel (%p248) target = $region12
      $region11: #{tpu_custom_call.1} parent=5 // pred_region
        %s252 = ssub.s32 %s18, 1
        // Predicated region
        $region13: #{tpu_custom_call.1} parent=11 // pred_check
          %p253 = pneg %p65
        $region14: #{tpu_custom_call.1} parent=11 // pred_check_branch
          %255 = sbr.rel (%p253) target = $region16
        $region15: #{tpu_custom_call.1} parent=11 // pred_region
          _
        $region16: #{tpu_custom_call.1} parent=11 // pred_fallthru
          _
        // Predicated region
        $region17: #{tpu_custom_call.1} parent=11 // pred_check
          %p256 = pneg %p86
        $region18: #{tpu_custom_call.1} parent=11 // pred_check_branch
          %258 = sbr.rel (%p256) target = $region20
        $region19: #{tpu_custom_call.1} parent=11 // pred_region
          _
        $region20: #{tpu_custom_call.1} parent=11 // pred_fallthru
          _
        // Predicated region
        $region21: #{tpu_custom_call.1} parent=11 // pred_check
          %p259 = pneg %p107
        $region22: #{tpu_custom_call.1} parent=11 // pred_check_branch
          %261 = sbr.rel (%p259) target = $region24
        $region23: #{tpu_custom_call.1} parent=11 // pred_region
          _
        $region24: #{tpu_custom_call.1} parent=11 // pred_fallthru
          _
        // Predicated region
        $region25: #{tpu_custom_call.1} parent=11 // pred_check
          %p262 = pneg %p128
        $region26: #{tpu_custom_call.1} parent=11 // pred_check_branch
          %264 = sbr.rel (%p262) target = $region28
        $region27: #{tpu_custom_call.1} parent=11 // pred_region
          _
        $region28: #{tpu_custom_call.1} parent=11 // pred_fallthru
          _
        // Predicated region
        $region29: #{tpu_custom_call.1} parent=11 // pred_check
          %p265 = pneg %p149
        $region30: #{tpu_custom_call.1} parent=11 // pred_check_branch
          %267 = sbr.rel (%p265) target = $region32
        $region31: #{tpu_custom_call.1} parent=11 // pred_region
          _
        $region32: #{tpu_custom_call.1} parent=11 // pred_fallthru
          _
        // Predicated region
        $region33: #{tpu_custom_call.1} parent=11 // pred_check
          %p268 = pneg %p170
        $region34: #{tpu_custom_call.1} parent=11 // pred_check_branch
          %270 = sbr.rel (%p268) target = $region36
        $region35: #{tpu_custom_call.1} parent=11 // pred_region
          _
        $region36: #{tpu_custom_call.1} parent=11 // pred_fallthru
          _
        // Predicated region
        $region37: #{tpu_custom_call.1} parent=11 // pred_check
          %p271 = pneg %p191
        $region38: #{tpu_custom_call.1} parent=11 // pred_check_branch
          %273 = sbr.rel (%p271) target = $region40
        $region39: #{tpu_custom_call.1} parent=11 // pred_region
          _
        $region40: #{tpu_custom_call.1} parent=11 // pred_fallthru
          _
        // Predicated region
        $region41: #{tpu_custom_call.1} parent=11 // pred_check
          %p274 = pneg %p212
        $region42: #{tpu_custom_call.1} parent=11 // pred_check_branch
          %276 = sbr.rel (%p274) target = $region44
        $region43: #{tpu_custom_call.1} parent=11 // pred_region
          _
        $region44: #{tpu_custom_call.1} parent=11 // pred_fallthru
          _
      $region12: #{tpu_custom_call.1} parent=5 // pred_fallthru
        _
      %p277 = scmp.lt.s32.totalorder %s18, 2
      // Predicated region
      $region45: #{tpu_custom_call.1} parent=5 // pred_check
        %p278 = pneg %p277
      $region46: #{tpu_custom_call.1} parent=5 // pred_check_branch
        %280 = sbr.rel (%p278) target = $region48
      $region47: #{tpu_custom_call.1} parent=5 // pred_region
        // Predicated region
        $region49: #{tpu_custom_call.1} parent=47 // pred_check
          %p281 = pneg %p38
        $region50: #{tpu_custom_call.1} parent=47 // pred_check_branch
          %283 = sbr.rel (%p281) target = $region52
        $region51: #{tpu_custom_call.1} parent=47 // pred_region
          %p284 = scmp.lt.s32.totalorder %s18, 1
          %s285 = scalar_select %p284, %s18, 1
          %s286 = smul.addr %s285, 8
          %s287 = scalar_lea.vmem %s0, %s286
        $region52: #{tpu_custom_call.1} parent=47 // pred_fallthru
          _
      $region48: #{tpu_custom_call.1} parent=5 // pred_fallthru
        _
      %p288 = scmp.le.s32.totalorder 1, %s18
      %p289 = scmp.lt.s32.totalorder %s18, 3
      %p290 = pnand %p288, %p289
      %p291 = pneg %p290
      // Predicated region
      $region53: #{tpu_custom_call.1} parent=5 // pred_check
        _
      $region54: #{tpu_custom_call.1} parent=5 // pred_check_branch
        %293 = sbr.rel (%p290) target = $region56
      $region55: #{tpu_custom_call.1} parent=5 // pred_region
        %s294 = ssub.s32 %s18, 1
        %p295 = scmp.lt.s32.totalorder %s23, 1
        %s296 = scalar_select %p295, %s23, 1
        %s297 = smul.addr %s296, 8
        %s298 = scalar_lea.vmem %s0, %s297
        %p299 = pneg %p44
        %p300 = pneg %p41
        %p301 = pneg %p65
        %p302 = pneg %p62
        %p303 = pneg %p86
        %p304 = pneg %p83
        %p305 = pneg %p107
        %p306 = pneg %p104
        %p307 = pneg %p128
        %p308 = pneg %p125
        %p309 = pneg %p149
        %p310 = pneg %p146
        %p311 = pneg %p170
        %p312 = pneg %p167
        %p313 = pneg %p191
        %p314 = pneg %p188
        %p315 = pneg %p212
        %p316 = pneg %p209
        %p317 = pneg %p238
        %p318 = pneg %p235
        %s319 = sand.u32 %s225, 1
        %s320 = scalar_lea.sflag [#allocation3], %s319
        %s321 = sand.u32 %s225, 1
        %s322 = smul.addr %s321, 8
        %s323 = scalar_lea.vmem [#allocation2], %s322
        %p324 = scmp.lt.s32.totalorder %s23, 1
        %s325 = scalar_select %p324, %s23, 1
        %s326 = smul.addr %s325, 8
        %s327 = scalar_lea.vmem %s0, %s326
        %v328 = vld [vmem:[%s327] sm:$0xff]
        %v329 = vlaneseq
        %v330 = vand.u32 %v329, 127
        %vm331 = vcmp.ge.s32.totalorder %v330, 6
        %vm332 = vcmp.lt.s32.totalorder %v330, 22
        %vm333 = vmand %vm331, %vm332
        %v334 = vsel %vm333, 1, 0
        %v335 = vcvt.s32.f32 %v334
        %vm336 = vcmp.ge.s32.totalorder %v330, 1
        %vm337 = vcmp.lt.s32.totalorder %v330, 17
        %vm338 = vmand %vm336, %vm337
        %v339 = vsel %vm338, 1, 0
        %v340 = vcvt.s32.f32 %v339
        %v341 = vld [vmem:[%s1] sm:$0xff]
        %v342 = vld [vmem:[%s2] sm:$0xff]
        %344 = vset.pattern.permute.xlu0 0
        %345 = vperm.xlu0 %344, %v342
        %v346 = vpop.permute.xlu0 %345
        %vm348 = vcmask 64512
        %v350 = vsel %vm348, %v341, 0
        %352 = vmatprep.subr.mxu0 0.0
        %353 = vmatpush1.msra.mxu0 0.0
        %354 = vmatprep.subr.mxu0 0.0
        %355 = vmatpush1.msra.mxu0 0.0
        %356 = vmatprep.subr.mxu0 0.0
        %357 = vmatpush1.msra.mxu0 0.0
        %358 = vmatprep.subr.mxu0 0.0
        %359 = vmatpush1.msra.mxu0 0.0
        %360 = vmatprep.subr.mxu0 0.0
        %361 = vmatpush1.msra.mxu0 0.0
        %362 = vmatprep.subr.mxu0 0.0
        %363 = vmatpush1.msra.mxu0 0.0
        %364 = vmatprep.subr.mxu0 0.0
        %365 = vmatpush1.msra.mxu0 0.0
        %366 = vmatprep.subr.mxu0 0.0
        %367 = vmatpush1.msra.mxu0 0.0
        %368 = vmatprep.subr.mxu0 0.0
        %369 = vmatpush1.msra.mxu0 0.0
        %370 = vmatprep.subr.mxu0 0.0
        %371 = vmatpush1.msra.mxu0 0.0
        %372 = vmatprep.subr.mxu0 0.0
        %373 = vmatpush1.msra.mxu0 0.0
        %374 = vmatprep.subr.mxu0 0.0
        %375 = vmatpush1.msra.mxu0 0.0
        %376 = vmatprep.subr.mxu0 0.0
        %377 = vmatpush1.msra.mxu0 0.0
        %378 = vmatprep.subr.mxu0 0.0
        %379 = vmatpush1.msra.mxu0 0.0
        %380 = vmatprep.subr.mxu0 0.0
        %381 = vmatpush1.msra.mxu0 0.0
        %382 = vmatprep.subr.mxu0 0.0
        %383 = vmatpush1.msra.mxu0 %v328
        %384 = vmatprep.subr.mxu0 0.0
        %385 = vmatpush2.msra.mxu0 0.0
        %386 = vmatprep.subr.mxu0 0.0
        %387 = vmatpush2.msra.mxu0 0.0
        %388 = vmatprep.subr.mxu0 0.0
        %389 = vmatpush2.msra.mxu0 0.0
        %390 = vmatprep.subr.mxu0 0.0
        %391 = vmatpush2.msra.mxu0 0.0
        %392 = vmatprep.subr.mxu0 0.0
        %393 = vmatpush2.msra.mxu0 0.0
        %394 = vmatprep.subr.mxu0 0.0
        %395 = vmatpush2.msra.mxu0 0.0
        %396 = vmatprep.subr.mxu0 0.0
        %397 = vmatpush2.msra.mxu0 0.0
        %398 = vmatprep.subr.mxu0 0.0
        %399 = vmatpush2.msra.mxu0 0.0
        %400 = vmatprep.subr.mxu0 0.0
        %401 = vmatpush2.msra.mxu0 0.0
        %402 = vmatprep.subr.mxu0 0.0
        %403 = vmatpush2.msra.mxu0 0.0
        %404 = vmatprep.subr.mxu0 0.0
        %405 = vmatpush2.msra.mxu0 0.0
        %406 = vmatprep.subr.mxu0 0.0
        %407 = vmatpush2.msra.mxu0 0.0
        %408 = vmatprep.subr.mxu0 0.0
        %409 = vmatpush2.msra.mxu0 0.0
        %410 = vmatprep.subr.mxu0 0.0
        %411 = vmatpush2.msra.mxu0 0.0
        %412 = vmatprep.subr.mxu0 0.0
        %413 = vmatpush2.msra.mxu0 0.0
        %414 = vmatprep.subr.mxu0 0.0
        %415 = vmatpush2.msra.mxu0 0.0
        %416 = vmatprep.mubr.f32.mxu0 0.0
        %417 = vmatmul.mubr.f32.gmra.mxu0 %v350
        %v418 = vpop.f32.mrf.mxu0
        %v419 = vadd.f32 %v346, %v418
        %v420 = vpop.f32.mrf.mxu0
        %421 = vdwg.mxu0
        %v422 = vmul.f32 %v419, %v335
        %424 = vrot.lane.b32.xlu0 %v422, 127
        %v425 = vpop.permute.xlu0 %424
        %426 = vrot.lane.b32.xlu0 %v422, 126
        %v427 = vpop.permute.xlu0 %426
        %v428 = vld [vmem:[%s3] sm:$0xff]
        %v429 = vld [vmem:[%s4] sm:$0xff]
        %431 = vset.pattern.permute.xlu0 0
        %432 = vperm.xlu0 %431, %v429
        %v433 = vpop.permute.xlu0 %432
        %435 = vrot.lane.b32.xlu0 %v422, 124
        %v436 = vpop.permute.xlu0 %435
        %437 = vrot.lane.b32.xlu0 %v425, 124
        %v438 = vpop.permute.xlu0 %437
        %439 = vrot.lane.b32.xlu0 %v427, 124
        %v440 = vpop.permute.xlu0 %439
        %vm444 = vcmask 195584
        %v446 = vsel %vm444, %v428, 0
        %448 = vmatprep.subr.mxu0 0.0
        %449 = vmatpush1.msra.mxu0 0.0
        %450 = vmatprep.subr.mxu0 0.0
        %451 = vmatpush1.msra.mxu0 0.0
        %452 = vmatprep.subr.mxu0 0.0
        %453 = vmatpush1.msra.mxu0 0.0
        %454 = vmatprep.subr.mxu0 0.0
        %455 = vmatpush1.msra.mxu0 0.0
        %456 = vmatprep.subr.mxu0 0.0
        %457 = vmatpush1.msra.mxu0 0.0
        %458 = vmatprep.subr.mxu0 0.0
        %459 = vmatpush1.msra.mxu0 0.0
        %460 = vmatprep.subr.mxu0 0.0
        %461 = vmatpush1.msra.mxu0 0.0
        %462 = vmatprep.subr.mxu0 0.0
        %463 = vmatpush1.msra.mxu0 0.0
        %464 = vmatprep.subr.mxu0 0.0
        %465 = vmatpush1.msra.mxu0 0.0
        %466 = vmatprep.subr.mxu0 0.0
        %467 = vmatpush1.msra.mxu0 0.0
        %468 = vmatprep.subr.mxu0 0.0
        %469 = vmatpush1.msra.mxu0 0.0
        %470 = vmatprep.subr.mxu0 0.0
        %471 = vmatpush1.msra.mxu0 0.0
        %472 = vmatprep.subr.mxu0 0.0
        %473 = vmatpush1.msra.mxu0 0.0
        %474 = vmatprep.subr.mxu0 0.0
        %475 = vmatpush1.msra.mxu0 %v440
        %476 = vmatprep.subr.mxu0 0.0
        %477 = vmatpush1.msra.mxu0 %v438
        %478 = vmatprep.subr.mxu0 0.0
        %479 = vmatpush1.msra.mxu0 %v436
        %480 = vmatprep.subr.mxu0 0.0
        %481 = vmatpush2.msra.mxu0 0.0
        %482 = vmatprep.subr.mxu0 0.0
        %483 = vmatpush2.msra.mxu0 0.0
        %484 = vmatprep.subr.mxu0 0.0
        %485 = vmatpush2.msra.mxu0 0.0
        %486 = vmatprep.subr.mxu0 0.0
        %487 = vmatpush2.msra.mxu0 0.0
        %488 = vmatprep.subr.mxu0 0.0
        %489 = vmatpush2.msra.mxu0 0.0
        %490 = vmatprep.subr.mxu0 0.0
        %491 = vmatpush2.msra.mxu0 0.0
        %492 = vmatprep.subr.mxu0 0.0
        %493 = vmatpush2.msra.mxu0 0.0
        %494 = vmatprep.subr.mxu0 0.0
        %495 = vmatpush2.msra.mxu0 0.0
        %496 = vmatprep.subr.mxu0 0.0
        %497 = vmatpush2.msra.mxu0 0.0
        %498 = vmatprep.subr.mxu0 0.0
        %499 = vmatpush2.msra.mxu0 0.0
        %500 = vmatprep.subr.mxu0 0.0
        %501 = vmatpush2.msra.mxu0 0.0
        %502 = vmatprep.subr.mxu0 0.0
        %503 = vmatpush2.msra.mxu0 0.0
        %504 = vmatprep.subr.mxu0 0.0
        %505 = vmatpush2.msra.mxu0 0.0
        %506 = vmatprep.subr.mxu0 0.0
        %507 = vmatpush2.msra.mxu0 0.0
        %508 = vmatprep.subr.mxu0 0.0
        %509 = vmatpush2.msra.mxu0 0.0
        %510 = vmatprep.subr.mxu0 0.0
        %511 = vmatpush2.msra.mxu0 0.0
        %512 = vmatprep.mubr.f32.mxu0 0.0
        %513 = vmatmul.mubr.f32.gmra.mxu0 %v446
        %v514 = vpop.f32.mrf.mxu0
        %v515 = vadd.f32 %v433, %v514
        %v516 = vpop.f32.mrf.mxu0
        %517 = vdwg.mxu0
        %v518 = vmax.f32 %v515, 0.0
        %v519 = vand.u32 2147483647, %v515
        %v520 = vsub.f32 0.0, %v519
        %v521 = vmul.f32 %v520, 1.442695
        %v522 = vpow.pop %v521
        %v523 = vadd.f32 %v522, 1.0
        %v524 = vlog2.pop %v523
        %v525 = vmul.f32 %v524, 0.6931472
        %v526 = vadd.f32 %v518, %v525
        %v527 = vtanh.pop %v526
        %v528 = vmul.f32 %v515, %v527
        %v529 = vmul.f32 %v528, %v340
        %531 = vrot.lane.b32.xlu0 %v529, 127
        %v532 = vpop.permute.xlu0 %531
        %534 = vrot.lane.b32.xlu0 %v529, 126
        %v535 = vpop.permute.xlu0 %534
        %v537 = vld [vmem:[%s5] sm:$0xff]
        %v538 = vld [vmem:[%s6] sm:$0xff]
        %540 = vset.pattern.permute.xlu0 0
        %541 = vperm.xlu0 %540, %v538
        %v542 = vpop.permute.xlu0 %541
        %v545 = vsel %vm444, %v537, 0
        %547 = vmatprep.subr.mxu0 0.0
        %548 = vmatpush1.msra.mxu0 0.0
        %549 = vmatprep.subr.mxu0 0.0
        %550 = vmatpush1.msra.mxu0 0.0
        %551 = vmatprep.subr.mxu0 0.0
        %552 = vmatpush1.msra.mxu0 0.0
        %553 = vmatprep.subr.mxu0 0.0
        %554 = vmatpush1.msra.mxu0 0.0
        %555 = vmatprep.subr.mxu0 0.0
        %556 = vmatpush1.msra.mxu0 0.0
        %557 = vmatprep.subr.mxu0 0.0
        %558 = vmatpush1.msra.mxu0 0.0
        %559 = vmatprep.subr.mxu0 0.0
        %560 = vmatpush1.msra.mxu0 0.0
        %561 = vmatprep.subr.mxu0 0.0
        %562 = vmatpush1.msra.mxu0 0.0
        %563 = vmatprep.subr.mxu0 0.0
        %564 = vmatpush1.msra.mxu0 0.0
        %565 = vmatprep.subr.mxu0 0.0
        %566 = vmatpush1.msra.mxu0 0.0
        %567 = vmatprep.subr.mxu0 0.0
        %568 = vmatpush1.msra.mxu0 0.0
        %569 = vmatprep.subr.mxu0 0.0
        %570 = vmatpush1.msra.mxu0 0.0
        %571 = vmatprep.subr.mxu0 0.0
        %572 = vmatpush1.msra.mxu0 0.0
        %573 = vmatprep.subr.mxu0 0.0
        %574 = vmatpush1.msra.mxu0 %v535
        %575 = vmatprep.subr.mxu0 0.0
        %576 = vmatpush1.msra.mxu0 %v532
        %577 = vmatprep.subr.mxu0 0.0
        %578 = vmatpush1.msra.mxu0 %v529
        %579 = vmatprep.subr.mxu0 0.0
        %580 = vmatpush2.msra.mxu0 0.0
        %581 = vmatprep.subr.mxu0 0.0
        %582 = vmatpush2.msra.mxu0 0.0
        %583 = vmatprep.subr.mxu0 0.0
        %584 = vmatpush2.msra.mxu0 0.0
        %585 = vmatprep.subr.mxu0 0.0
        %586 = vmatpush2.msra.mxu0 0.0
        %587 = vmatprep.subr.mxu0 0.0
        %588 = vmatpush2.msra.mxu0 0.0
        %589 = vmatprep.subr.mxu0 0.0
        %590 = vmatpush2.msra.mxu0 0.0
        %591 = vmatprep.subr.mxu0 0.0
        %592 = vmatpush2.msra.mxu0 0.0
        %593 = vmatprep.subr.mxu0 0.0
        %594 = vmatpush2.msra.mxu0 0.0
        %595 = vmatprep.subr.mxu0 0.0
        %596 = vmatpush2.msra.mxu0 0.0
        %597 = vmatprep.subr.mxu0 0.0
        %598 = vmatpush2.msra.mxu0 0.0
        %599 = vmatprep.subr.mxu0 0.0
        %600 = vmatpush2.msra.mxu0 0.0
        %601 = vmatprep.subr.mxu0 0.0
        %602 = vmatpush2.msra.mxu0 0.0
        %603 = vmatprep.subr.mxu0 0.0
        %604 = vmatpush2.msra.mxu0 0.0
        %605 = vmatprep.subr.mxu0 0.0
        %606 = vmatpush2.msra.mxu0 0.0
        %607 = vmatprep.subr.mxu0 0.0
        %608 = vmatpush2.msra.mxu0 0.0
        %609 = vmatprep.subr.mxu0 0.0
        %610 = vmatpush2.msra.mxu0 0.0
        %611 = vmatprep.mubr.f32.mxu0 0.0
        %612 = vmatmul.mubr.f32.gmra.mxu0 %v545
        %v613 = vpop.f32.mrf.mxu0
        %v614 = vadd.f32 %v542, %v613
        %v615 = vpop.f32.mrf.mxu0
        %616 = vdwg.mxu0
        %v617 = vmax.f32 %v614, 0.0
        %v618 = vand.u32 2147483647, %v614
        %v619 = vsub.f32 0.0, %v618
        %v620 = vmul.f32 %v619, 1.442695
        %v621 = vpow.pop %v620
        %v622 = vadd.f32 %v621, 1.0
        %v623 = vlog2.pop %v622
        %v624 = vmul.f32 %v623, 0.6931472
        %v625 = vadd.f32 %v617, %v624
        %v626 = vtanh.pop %v625
        %v627 = vmul.f32 %v614, %v626
        %v628 = vadd.f32 %v627, 0.0
        %629 = vrot.lane.b32.xlu0 %v422, 125
        %v630 = vpop.permute.xlu0 %629
        %631 = vrot.lane.b32.xlu0 %v422, 122
        %v632 = vpop.permute.xlu0 %631
        %s633 = scalar_lea.vmem %s3, 8
        %v634 = vld [vmem:[%s633] sm:$0xff]
        %s635 = scalar_lea.vmem %s4, 8
        %v636 = vld [vmem:[%s635] sm:$0xff]
        %638 = vset.pattern.permute.xlu0 0
        %639 = vperm.xlu0 %638, %v636
        %v640 = vpop.permute.xlu0 %639
        %642 = vrot.lane.b32.xlu0 %v630, 126
        %v643 = vpop.permute.xlu0 %642
        %644 = vrot.lane.b32.xlu0 %v632, 126
        %v645 = vpop.permute.xlu0 %644
        %v650 = vsel %vm444, %v634, 0
        %652 = vmatprep.subr.mxu0 0.0
        %653 = vmatpush1.msra.mxu0 0.0
        %654 = vmatprep.subr.mxu0 0.0
        %655 = vmatpush1.msra.mxu0 0.0
        %656 = vmatprep.subr.mxu0 0.0
        %657 = vmatpush1.msra.mxu0 0.0
        %658 = vmatprep.subr.mxu0 0.0
        %659 = vmatpush1.msra.mxu0 0.0
        %660 = vmatprep.subr.mxu0 0.0
        %661 = vmatpush1.msra.mxu0 0.0
        %662 = vmatprep.subr.mxu0 0.0
        %663 = vmatpush1.msra.mxu0 0.0
        %664 = vmatprep.subr.mxu0 0.0
        %665 = vmatpush1.msra.mxu0 0.0
        %666 = vmatprep.subr.mxu0 0.0
        %667 = vmatpush1.msra.mxu0 0.0
        %668 = vmatprep.subr.mxu0 0.0
        %669 = vmatpush1.msra.mxu0 0.0
        %670 = vmatprep.subr.mxu0 0.0
        %671 = vmatpush1.msra.mxu0 0.0
        %672 = vmatprep.subr.mxu0 0.0
        %673 = vmatpush1.msra.mxu0 0.0
        %674 = vmatprep.subr.mxu0 0.0
        %675 = vmatpush1.msra.mxu0 0.0
        %676 = vmatprep.subr.mxu0 0.0
        %677 = vmatpush1.msra.mxu0 0.0
        %678 = vmatprep.subr.mxu0 0.0
        %679 = vmatpush1.msra.mxu0 %v645
        %680 = vmatprep.subr.mxu0 0.0
        %681 = vmatpush1.msra.mxu0 %v643
        %682 = vmatprep.subr.mxu0 0.0
        %683 = vmatpush1.msra.mxu0 %v427
        %684 = vmatprep.subr.mxu0 0.0
        %685 = vmatpush2.msra.mxu0 0.0
        %686 = vmatprep.subr.mxu0 0.0
        %687 = vmatpush2.msra.mxu0 0.0
        %688 = vmatprep.subr.mxu0 0.0
        %689 = vmatpush2.msra.mxu0 0.0
        %690 = vmatprep.subr.mxu0 0.0
        %691 = vmatpush2.msra.mxu0 0.0
        %692 = vmatprep.subr.mxu0 0.0
        %693 = vmatpush2.msra.mxu0 0.0
        %694 = vmatprep.subr.mxu0 0.0
        %695 = vmatpush2.msra.mxu0 0.0
        %696 = vmatprep.subr.mxu0 0.0
        %697 = vmatpush2.msra.mxu0 0.0
        %698 = vmatprep.subr.mxu0 0.0
        %699 = vmatpush2.msra.mxu0 0.0
        %700 = vmatprep.subr.mxu0 0.0
        %701 = vmatpush2.msra.mxu0 0.0
        %702 = vmatprep.subr.mxu0 0.0
        %703 = vmatpush2.msra.mxu0 0.0
        %704 = vmatprep.subr.mxu0 0.0
        %705 = vmatpush2.msra.mxu0 0.0
        %706 = vmatprep.subr.mxu0 0.0
        %707 = vmatpush2.msra.mxu0 0.0
        %708 = vmatprep.subr.mxu0 0.0
        %709 = vmatpush2.msra.mxu0 0.0
        %710 = vmatprep.subr.mxu0 0.0
        %711 = vmatpush2.msra.mxu0 0.0
        %712 = vmatprep.subr.mxu0 0.0
        %713 = vmatpush2.msra.mxu0 0.0
        %714 = vmatprep.subr.mxu0 0.0
        %715 = vmatpush2.msra.mxu0 0.0
        %716 = vmatprep.mubr.f32.mxu0 0.0
        %717 = vmatmul.mubr.f32.gmra.mxu0 %v650
        %v718 = vpop.f32.mrf.mxu0
        %v719 = vadd.f32 %v640, %v718
        %v720 = vpop.f32.mrf.mxu0
        %721 = vdwg.mxu0
        %v722 = vmax.f32 %v719, 0.0
        %v723 = vand.u32 2147483647, %v719
        %v724 = vsub.f32 0.0, %v723
        %v725 = vmul.f32 %v724, 1.442695
        %v726 = vpow.pop %v725
        %v727 = vadd.f32 %v726, 1.0
        %v728 = vlog2.pop %v727
        %v729 = vmul.f32 %v728, 0.6931472
        %v730 = vadd.f32 %v722, %v729
        %v731 = vtanh.pop %v730
        %v732 = vmul.f32 %v719, %v731
        %v733 = vmul.f32 %v732, %v340
        %735 = vrot.lane.b32.xlu0 %v733, 127
        %v736 = vpop.permute.xlu0 %735
        %738 = vrot.lane.b32.xlu0 %v733, 126
        %v739 = vpop.permute.xlu0 %738
        %s741 = scalar_lea.vmem %s5, 8
        %v742 = vld [vmem:[%s741] sm:$0xff]
        %s743 = scalar_lea.vmem %s6, 8
        %v744 = vld [vmem:[%s743] sm:$0xff]
        %746 = vset.pattern.permute.xlu0 0
        %747 = vperm.xlu0 %746, %v744
        %v748 = vpop.permute.xlu0 %747
        %v751 = vsel %vm444, %v742, 0
        %753 = vmatprep.subr.mxu0 0.0
        %754 = vmatpush1.msra.mxu0 0.0
        %755 = vmatprep.subr.mxu0 0.0
        %756 = vmatpush1.msra.mxu0 0.0
        %757 = vmatprep.subr.mxu0 0.0
        %758 = vmatpush1.msra.mxu0 0.0
        %759 = vmatprep.subr.mxu0 0.0
        %760 = vmatpush1.msra.mxu0 0.0
        %761 = vmatprep.subr.mxu0 0.0
        %762 = vmatpush1.msra.mxu0 0.0
        %763 = vmatprep.subr.mxu0 0.0
        %764 = vmatpush1.msra.mxu0 0.0
        %765 = vmatprep.subr.mxu0 0.0
        %766 = vmatpush1.msra.mxu0 0.0
        %767 = vmatprep.subr.mxu0 0.0
        %768 = vmatpush1.msra.mxu0 0.0
        %769 = vmatprep.subr.mxu0 0.0
        %770 = vmatpush1.msra.mxu0 0.0
        %771 = vmatprep.subr.mxu0 0.0
        %772 = vmatpush1.msra.mxu0 0.0
        %773 = vmatprep.subr.mxu0 0.0
        %774 = vmatpush1.msra.mxu0 0.0
        %775 = vmatprep.subr.mxu0 0.0
        %776 = vmatpush1.msra.mxu0 0.0
        %777 = vmatprep.subr.mxu0 0.0
        %778 = vmatpush1.msra.mxu0 0.0
        %779 = vmatprep.subr.mxu0 0.0
        %780 = vmatpush1.msra.mxu0 %v739
        %781 = vmatprep.subr.mxu0 0.0
        %782 = vmatpush1.msra.mxu0 %v736
        %783 = vmatprep.subr.mxu0 0.0
        %784 = vmatpush1.msra.mxu0 %v733
        %785 = vmatprep.subr.mxu0 0.0
        %786 = vmatpush2.msra.mxu0 0.0
        %787 = vmatprep.subr.mxu0 0.0
        %788 = vmatpush2.msra.mxu0 0.0
        %789 = vmatprep.subr.mxu0 0.0
        %790 = vmatpush2.msra.mxu0 0.0
        %791 = vmatprep.subr.mxu0 0.0
        %792 = vmatpush2.msra.mxu0 0.0
        %793 = vmatprep.subr.mxu0 0.0
        %794 = vmatpush2.msra.mxu0 0.0
        %795 = vmatprep.subr.mxu0 0.0
        %796 = vmatpush2.msra.mxu0 0.0
        %797 = vmatprep.subr.mxu0 0.0
        %798 = vmatpush2.msra.mxu0 0.0
        %799 = vmatprep.subr.mxu0 0.0
        %800 = vmatpush2.msra.mxu0 0.0
        %801 = vmatprep.subr.mxu0 0.0
        %802 = vmatpush2.msra.mxu0 0.0
        %803 = vmatprep.subr.mxu0 0.0
        %804 = vmatpush2.msra.mxu0 0.0
        %805 = vmatprep.subr.mxu0 0.0
        %806 = vmatpush2.msra.mxu0 0.0
        %807 = vmatprep.subr.mxu0 0.0
        %808 = vmatpush2.msra.mxu0 0.0
        %809 = vmatprep.subr.mxu0 0.0
        %810 = vmatpush2.msra.mxu0 0.0
        %811 = vmatprep.subr.mxu0 0.0
        %812 = vmatpush2.msra.mxu0 0.0
        %813 = vmatprep.subr.mxu0 0.0
        %814 = vmatpush2.msra.mxu0 0.0
        %815 = vmatprep.subr.mxu0 0.0
        %816 = vmatpush2.msra.mxu0 0.0
        %817 = vmatprep.mubr.f32.mxu0 0.0
        %818 = vmatmul.mubr.f32.gmra.mxu0 %v751
        %v819 = vpop.f32.mrf.mxu0
        %v820 = vadd.f32 %v748, %v819
        %v821 = vpop.f32.mrf.mxu0
        %822 = vdwg.mxu0
        %v823 = vmax.f32 %v820, 0.0
        %v824 = vand.u32 2147483647, %v820
        %v825 = vsub.f32 0.0, %v824
        %v826 = vmul.f32 %v825, 1.442695
        %v827 = vpow.pop %v826
        %v828 = vadd.f32 %v827, 1.0
        %v829 = vlog2.pop %v828
        %v830 = vmul.f32 %v829, 0.6931472
        %v831 = vadd.f32 %v823, %v830
        %v832 = vtanh.pop %v831
        %v833 = vmul.f32 %v820, %v832
        %v834 = vadd.f32 %v628, %v833
        %835 = vrot.lane.b32.xlu0 %v422, 123
        %v836 = vpop.permute.xlu0 %835
        %838 = vrot.lane.b32.xlu0 %v422, 118
        %v839 = vpop.permute.xlu0 %838
        %s841 = scalar_lea.vmem %s3, 16
        %v842 = vld [vmem:[%s841] sm:$0xff]
        %s843 = scalar_lea.vmem %s4, 16
        %v844 = vld [vmem:[%s843] sm:$0xff]
        %846 = vset.pattern.permute.xlu0 0
        %847 = vperm.xlu0 %846, %v844
        %v848 = vpop.permute.xlu0 %847
        %v851 = vsel %vm444, %v842, 0
        %853 = vmatprep.subr.mxu0 0.0
        %854 = vmatpush1.msra.mxu0 0.0
        %855 = vmatprep.subr.mxu0 0.0
        %856 = vmatpush1.msra.mxu0 0.0
        %857 = vmatprep.subr.mxu0 0.0
        %858 = vmatpush1.msra.mxu0 0.0
        %859 = vmatprep.subr.mxu0 0.0
        %860 = vmatpush1.msra.mxu0 0.0
        %861 = vmatprep.subr.mxu0 0.0
        %862 = vmatpush1.msra.mxu0 0.0
        %863 = vmatprep.subr.mxu0 0.0
        %864 = vmatpush1.msra.mxu0 0.0
        %865 = vmatprep.subr.mxu0 0.0
        %866 = vmatpush1.msra.mxu0 0.0
        %867 = vmatprep.subr.mxu0 0.0
        %868 = vmatpush1.msra.mxu0 0.0
        %869 = vmatprep.subr.mxu0 0.0
        %870 = vmatpush1.msra.mxu0 0.0
        %871 = vmatprep.subr.mxu0 0.0
        %872 = vmatpush1.msra.mxu0 0.0
        %873 = vmatprep.subr.mxu0 0.0
        %874 = vmatpush1.msra.mxu0 0.0
        %875 = vmatprep.subr.mxu0 0.0
        %876 = vmatpush1.msra.mxu0 0.0
        %877 = vmatprep.subr.mxu0 0.0
        %878 = vmatpush1.msra.mxu0 0.0
        %879 = vmatprep.subr.mxu0 0.0
        %880 = vmatpush1.msra.mxu0 %v839
        %881 = vmatprep.subr.mxu0 0.0
        %882 = vmatpush1.msra.mxu0 %v836
        %883 = vmatprep.subr.mxu0 0.0
        %884 = vmatpush1.msra.mxu0 %v422
        %885 = vmatprep.subr.mxu0 0.0
        %886 = vmatpush2.msra.mxu0 0.0
        %887 = vmatprep.subr.mxu0 0.0
        %888 = vmatpush2.msra.mxu0 0.0
        %889 = vmatprep.subr.mxu0 0.0
        %890 = vmatpush2.msra.mxu0 0.0
        %891 = vmatprep.subr.mxu0 0.0
        %892 = vmatpush2.msra.mxu0 0.0
        %893 = vmatprep.subr.mxu0 0.0
        %894 = vmatpush2.msra.mxu0 0.0
        %895 = vmatprep.subr.mxu0 0.0
        %896 = vmatpush2.msra.mxu0 0.0
        %897 = vmatprep.subr.mxu0 0.0
        %898 = vmatpush2.msra.mxu0 0.0
        %899 = vmatprep.subr.mxu0 0.0
        %900 = vmatpush2.msra.mxu0 0.0
        %901 = vmatprep.subr.mxu0 0.0
        %902 = vmatpush2.msra.mxu0 0.0
        %903 = vmatprep.subr.mxu0 0.0
        %904 = vmatpush2.msra.mxu0 0.0
        %905 = vmatprep.subr.mxu0 0.0
        %906 = vmatpush2.msra.mxu0 0.0
        %907 = vmatprep.subr.mxu0 0.0
        %908 = vmatpush2.msra.mxu0 0.0
        %909 = vmatprep.subr.mxu0 0.0
        %910 = vmatpush2.msra.mxu0 0.0
        %911 = vmatprep.subr.mxu0 0.0
        %912 = vmatpush2.msra.mxu0 0.0
        %913 = vmatprep.subr.mxu0 0.0
        %914 = vmatpush2.msra.mxu0 0.0
        %915 = vmatprep.subr.mxu0 0.0
        %916 = vmatpush2.msra.mxu0 0.0
        %917 = vmatprep.mubr.f32.mxu0 0.0
        %918 = vmatmul.mubr.f32.gmra.mxu0 %v851
        %v919 = vpop.f32.mrf.mxu0
        %v920 = vadd.f32 %v848, %v919
        %v921 = vpop.f32.mrf.mxu0
        %922 = vdwg.mxu0
        %v923 = vmax.f32 %v920, 0.0
        %v924 = vand.u32 2147483647, %v920
        %v925 = vsub.f32 0.0, %v924
        %v926 = vmul.f32 %v925, 1.442695
        %v927 = vpow.pop %v926
        %v928 = vadd.f32 %v927, 1.0
        %v929 = vlog2.pop %v928
        %v930 = vmul.f32 %v929, 0.6931472
        %v931 = vadd.f32 %v923, %v930
        %v932 = vtanh.pop %v931
        %v933 = vmul.f32 %v920, %v932
        %v934 = vmul.f32 %v933, %v340
        %936 = vrot.lane.b32.xlu0 %v934, 127
        %v937 = vpop.permute.xlu0 %936
        %939 = vrot.lane.b32.xlu0 %v934, 126
        %v940 = vpop.permute.xlu0 %939
        %s942 = scalar_lea.vmem %s5, 16
        %v943 = vld [vmem:[%s942] sm:$0xff]
        %s944 = scalar_lea.vmem %s6, 16
        %v945 = vld [vmem:[%s944] sm:$0xff]
        %947 = vset.pattern.permute.xlu0 0
        %948 = vperm.xlu0 %947, %v945
        %v949 = vpop.permute.xlu0 %948
        %v952 = vsel %vm444, %v943, 0
        %954 = vmatprep.subr.mxu0 0.0
        %955 = vmatpush1.msra.mxu0 0.0
        %956 = vmatprep.subr.mxu0 0.0
        %957 = vmatpush1.msra.mxu0 0.0
        %958 = vmatprep.subr.mxu0 0.0
        %959 = vmatpush1.msra.mxu0 0.0
        %960 = vmatprep.subr.mxu0 0.0
        %961 = vmatpush1.msra.mxu0 0.0
        %962 = vmatprep.subr.mxu0 0.0
        %963 = vmatpush1.msra.mxu0 0.0
        %964 = vmatprep.subr.mxu0 0.0
        %965 = vmatpush1.msra.mxu0 0.0
        %966 = vmatprep.subr.mxu0 0.0
        %967 = vmatpush1.msra.mxu0 0.0
        %968 = vmatprep.subr.mxu0 0.0
        %969 = vmatpush1.msra.mxu0 0.0
        %970 = vmatprep.subr.mxu0 0.0
        %971 = vmatpush1.msra.mxu0 0.0
        %972 = vmatprep.subr.mxu0 0.0
        %973 = vmatpush1.msra.mxu0 0.0
        %974 = vmatprep.subr.mxu0 0.0
        %975 = vmatpush1.msra.mxu0 0.0
        %976 = vmatprep.subr.mxu0 0.0
        %977 = vmatpush1.msra.mxu0 0.0
        %978 = vmatprep.subr.mxu0 0.0
        %979 = vmatpush1.msra.mxu0 0.0
        %980 = vmatprep.subr.mxu0 0.0
        %981 = vmatpush1.msra.mxu0 %v940
        %982 = vmatprep.subr.mxu0 0.0
        %983 = vmatpush1.msra.mxu0 %v937
        %984 = vmatprep.subr.mxu0 0.0
        %985 = vmatpush1.msra.mxu0 %v934
        %986 = vmatprep.subr.mxu0 0.0
        %987 = vmatpush2.msra.mxu0 0.0
        %988 = vmatprep.subr.mxu0 0.0
        %989 = vmatpush2.msra.mxu0 0.0
        %990 = vmatprep.subr.mxu0 0.0
        %991 = vmatpush2.msra.mxu0 0.0
        %992 = vmatprep.subr.mxu0 0.0
        %993 = vmatpush2.msra.mxu0 0.0
        %994 = vmatprep.subr.mxu0 0.0
        %995 = vmatpush2.msra.mxu0 0.0
        %996 = vmatprep.subr.mxu0 0.0
        %997 = vmatpush2.msra.mxu0 0.0
        %998 = vmatprep.subr.mxu0 0.0
        %999 = vmatpush2.msra.mxu0 0.0
        %1000 = vmatprep.subr.mxu0 0.0
        %1001 = vmatpush2.msra.mxu0 0.0
        %1002 = vmatprep.subr.mxu0 0.0
        %1003 = vmatpush2.msra.mxu0 0.0
        %1004 = vmatprep.subr.mxu0 0.0
        %1005 = vmatpush2.msra.mxu0 0.0
        %1006 = vmatprep.subr.mxu0 0.0
        %1007 = vmatpush2.msra.mxu0 0.0
        %1008 = vmatprep.subr.mxu0 0.0
        %1009 = vmatpush2.msra.mxu0 0.0
        %1010 = vmatprep.subr.mxu0 0.0
        %1011 = vmatpush2.msra.mxu0 0.0
        %1012 = vmatprep.subr.mxu0 0.0
        %1013 = vmatpush2.msra.mxu0 0.0
        %1014 = vmatprep.subr.mxu0 0.0
        %1015 = vmatpush2.msra.mxu0 0.0
        %1016 = vmatprep.subr.mxu0 0.0
        %1017 = vmatpush2.msra.mxu0 0.0
        %1018 = vmatprep.mubr.f32.mxu0 0.0
        %1019 = vmatmul.mubr.f32.gmra.mxu0 %v952
        %v1020 = vpop.f32.mrf.mxu0
        %v1021 = vadd.f32 %v949, %v1020
        %v1022 = vpop.f32.mrf.mxu0
        %1023 = vdwg.mxu0
        %v1024 = vmax.f32 %v1021, 0.0
        %v1025 = vand.u32 2147483647, %v1021
        %v1026 = vsub.f32 0.0, %v1025
        %v1027 = vmul.f32 %v1026, 1.442695
        %v1028 = vpow.pop %v1027
        %v1029 = vadd.f32 %v1028, 1.0
        %v1030 = vlog2.pop %v1029
        %v1031 = vmul.f32 %v1030, 0.6931472
        %v1032 = vadd.f32 %v1024, %v1031
        %v1033 = vtanh.pop %v1032
        %v1034 = vmul.f32 %v1021, %v1033
        %v1035 = vadd.f32 %v834, %v1034
        %v1036 = vmul.f32 %v1035, 0.33333334
        %v1037 = vld [vmem:[%s7] sm:$0xff]
        %s1038 = scalar_lea.vmem %s1, 8
        %v1039 = vld [vmem:[%s1038] sm:$0xff]
        %s1040 = scalar_lea.vmem %s2, 8
        %v1041 = vld [vmem:[%s1040] sm:$0xff]
        %1043 = vset.pattern.permute.xlu0 0
        %1044 = vperm.xlu0 %1043, %v1041
        %v1045 = vpop.permute.xlu0 %1044
        %v1048 = vsel %vm348, %v1039, 0
        %1050 = vmatprep.subr.mxu0 0.0
        %1051 = vmatpush1.msra.mxu0 0.0
        %1052 = vmatprep.subr.mxu0 0.0
        %1053 = vmatpush1.msra.mxu0 0.0
        %1054 = vmatprep.subr.mxu0 0.0
        %1055 = vmatpush1.msra.mxu0 0.0
        %1056 = vmatprep.subr.mxu0 0.0
        %1057 = vmatpush1.msra.mxu0 0.0
        %1058 = vmatprep.subr.mxu0 0.0
        %1059 = vmatpush1.msra.mxu0 0.0
        %1060 = vmatprep.subr.mxu0 0.0
        %1061 = vmatpush1.msra.mxu0 0.0
        %1062 = vmatprep.subr.mxu0 0.0
        %1063 = vmatpush1.msra.mxu0 0.0
        %1064 = vmatprep.subr.mxu0 0.0
        %1065 = vmatpush1.msra.mxu0 0.0
        %1066 = vmatprep.subr.mxu0 0.0
        %1067 = vmatpush1.msra.mxu0 0.0
        %1068 = vmatprep.subr.mxu0 0.0
        %1069 = vmatpush1.msra.mxu0 0.0
        %1070 = vmatprep.subr.mxu0 0.0
        %1071 = vmatpush1.msra.mxu0 0.0
        %1072 = vmatprep.subr.mxu0 0.0
        %1073 = vmatpush1.msra.mxu0 0.0
        %1074 = vmatprep.subr.mxu0 0.0
        %1075 = vmatpush1.msra.mxu0 0.0
        %1076 = vmatprep.subr.mxu0 0.0
        %1077 = vmatpush1.msra.mxu0 0.0
        %1078 = vmatprep.subr.mxu0 0.0
        %1079 = vmatpush1.msra.mxu0 0.0
        %1080 = vmatprep.subr.mxu0 0.0
        %1081 = vmatpush1.msra.mxu0 %v328
        %1082 = vmatprep.subr.mxu0 0.0
        %1083 = vmatpush2.msra.mxu0 0.0
        %1084 = vmatprep.subr.mxu0 0.0
        %1085 = vmatpush2.msra.mxu0 0.0
        %1086 = vmatprep.subr.mxu0 0.0
        %1087 = vmatpush2.msra.mxu0 0.0
        %1088 = vmatprep.subr.mxu0 0.0
        %1089 = vmatpush2.msra.mxu0 0.0
        %1090 = vmatprep.subr.mxu0 0.0
        %1091 = vmatpush2.msra.mxu0 0.0
        %1092 = vmatprep.subr.mxu0 0.0
        %1093 = vmatpush2.msra.mxu0 0.0
        %1094 = vmatprep.subr.mxu0 0.0
        %1095 = vmatpush2.msra.mxu0 0.0
        %1096 = vmatprep.subr.mxu0 0.0
        %1097 = vmatpush2.msra.mxu0 0.0
        %1098 = vmatprep.subr.mxu0 0.0
        %1099 = vmatpush2.msra.mxu0 0.0
        %1100 = vmatprep.subr.mxu0 0.0
        %1101 = vmatpush2.msra.mxu0 0.0
        %1102 = vmatprep.subr.mxu0 0.0
        %1103 = vmatpush2.msra.mxu0 0.0
        %1104 = vmatprep.subr.mxu0 0.0
        %1105 = vmatpush2.msra.mxu0 0.0
        %1106 = vmatprep.subr.mxu0 0.0
        %1107 = vmatpush2.msra.mxu0 0.0
        %1108 = vmatprep.subr.mxu0 0.0
        %1109 = vmatpush2.msra.mxu0 0.0
        %1110 = vmatprep.subr.mxu0 0.0
        %1111 = vmatpush2.msra.mxu0 0.0
        %1112 = vmatprep.subr.mxu0 0.0
        %1113 = vmatpush2.msra.mxu0 0.0
        %1114 = vmatprep.mubr.f32.mxu0 0.0
        %1115 = vmatmul.mubr.f32.gmra.mxu0 %v1048
        %v1116 = vpop.f32.mrf.mxu0
        %v1117 = vadd.f32 %v1045, %v1116
        %v1118 = vpop.f32.mrf.mxu0
        %1119 = vdwg.mxu0
        %v1120 = vmul.f32 %v1117, %v335
        %1122 = vrot.lane.b32.xlu0 %v1120, 127
        %v1123 = vpop.permute.xlu0 %1122
        %1124 = vrot.lane.b32.xlu0 %v1120, 126
        %v1125 = vpop.permute.xlu0 %1124
        %1126 = vrot.lane.b32.xlu0 %v1120, 124
        %v1127 = vpop.permute.xlu0 %1126
        %1128 = vrot.lane.b32.xlu0 %v1123, 124
        %v1129 = vpop.permute.xlu0 %1128
        %1130 = vrot.lane.b32.xlu0 %v1125, 124
        %v1131 = vpop.permute.xlu0 %1130
        %1135 = vmatprep.subr.mxu0 0.0
        %1136 = vmatpush1.msra.mxu0 0.0
        %1137 = vmatprep.subr.mxu0 0.0
        %1138 = vmatpush1.msra.mxu0 0.0
        %1139 = vmatprep.subr.mxu0 0.0
        %1140 = vmatpush1.msra.mxu0 0.0
        %1141 = vmatprep.subr.mxu0 0.0
        %1142 = vmatpush1.msra.mxu0 0.0
        %1143 = vmatprep.subr.mxu0 0.0
        %1144 = vmatpush1.msra.mxu0 0.0
        %1145 = vmatprep.subr.mxu0 0.0
        %1146 = vmatpush1.msra.mxu0 0.0
        %1147 = vmatprep.subr.mxu0 0.0
        %1148 = vmatpush1.msra.mxu0 0.0
        %1149 = vmatprep.subr.mxu0 0.0
        %1150 = vmatpush1.msra.mxu0 0.0
        %1151 = vmatprep.subr.mxu0 0.0
        %1152 = vmatpush1.msra.mxu0 0.0
        %1153 = vmatprep.subr.mxu0 0.0
        %1154 = vmatpush1.msra.mxu0 0.0
        %1155 = vmatprep.subr.mxu0 0.0
        %1156 = vmatpush1.msra.mxu0 0.0
        %1157 = vmatprep.subr.mxu0 0.0
        %1158 = vmatpush1.msra.mxu0 0.0
        %1159 = vmatprep.subr.mxu0 0.0
        %1160 = vmatpush1.msra.mxu0 0.0
        %1161 = vmatprep.subr.mxu0 0.0
        %1162 = vmatpush1.msra.mxu0 %v1131
        %1163 = vmatprep.subr.mxu0 0.0
        %1164 = vmatpush1.msra.mxu0 %v1129
        %1165 = vmatprep.subr.mxu0 0.0
        %1166 = vmatpush1.msra.mxu0 %v1127
        %1167 = vmatprep.subr.mxu0 0.0
        %1168 = vmatpush2.msra.mxu0 0.0
        %1169 = vmatprep.subr.mxu0 0.0
        %1170 = vmatpush2.msra.mxu0 0.0
        %1171 = vmatprep.subr.mxu0 0.0
        %1172 = vmatpush2.msra.mxu0 0.0
        %1173 = vmatprep.subr.mxu0 0.0
        %1174 = vmatpush2.msra.mxu0 0.0
        %1175 = vmatprep.subr.mxu0 0.0
        %1176 = vmatpush2.msra.mxu0 0.0
        %1177 = vmatprep.subr.mxu0 0.0
        %1178 = vmatpush2.msra.mxu0 0.0
        %1179 = vmatprep.subr.mxu0 0.0
        %1180 = vmatpush2.msra.mxu0 0.0
        %1181 = vmatprep.subr.mxu0 0.0
        %1182 = vmatpush2.msra.mxu0 0.0
        %1183 = vmatprep.subr.mxu0 0.0
        %1184 = vmatpush2.msra.mxu0 0.0
        %1185 = vmatprep.subr.mxu0 0.0
        %1186 = vmatpush2.msra.mxu0 0.0
        %1187 = vmatprep.subr.mxu0 0.0
        %1188 = vmatpush2.msra.mxu0 0.0
        %1189 = vmatprep.subr.mxu0 0.0
        %1190 = vmatpush2.msra.mxu0 0.0
        %1191 = vmatprep.subr.mxu0 0.0
        %1192 = vmatpush2.msra.mxu0 0.0
        %1193 = vmatprep.subr.mxu0 0.0
        %1194 = vmatpush2.msra.mxu0 0.0
        %1195 = vmatprep.subr.mxu0 0.0
        %1196 = vmatpush2.msra.mxu0 0.0
        %1197 = vmatprep.subr.mxu0 0.0
        %1198 = vmatpush2.msra.mxu0 0.0
        %1199 = vmatprep.mubr.f32.mxu0 0.0
        %1200 = vmatmul.mubr.f32.gmra.mxu0 %v446
        %v1201 = vpop.f32.mrf.mxu0
        %v1202 = vadd.f32 %v433, %v1201
        %v1203 = vpop.f32.mrf.mxu0
        %1204 = vdwg.mxu0
        %v1205 = vmax.f32 %v1202, 0.0
        %v1206 = vand.u32 2147483647, %v1202
        %v1207 = vsub.f32 0.0, %v1206
        %v1208 = vmul.f32 %v1207, 1.442695
        %v1209 = vpow.pop %v1208
        %v1210 = vadd.f32 %v1209, 1.0
        %v1211 = vlog2.pop %v1210
        %v1212 = vmul.f32 %v1211, 0.6931472
        %v1213 = vadd.f32 %v1205, %v1212
        %v1214 = vtanh.pop %v1213
        %v1215 = vmul.f32 %v1202, %v1214
        %v1216 = vmul.f32 %v1215, %v340
        %1218 = vrot.lane.b32.xlu0 %v1216, 127
        %v1219 = vpop.permute.xlu0 %1218
        %1221 = vrot.lane.b32.xlu0 %v1216, 126
        %v1222 = vpop.permute.xlu0 %1221
        %1224 = vmatprep.subr.mxu0 0.0
        %1225 = vmatpush1.msra.mxu0 0.0
        %1226 = vmatprep.subr.mxu0 0.0
        %1227 = vmatpush1.msra.mxu0 0.0
        %1228 = vmatprep.subr.mxu0 0.0
        %1229 = vmatpush1.msra.mxu0 0.0
        %1230 = vmatprep.subr.mxu0 0.0
        %1231 = vmatpush1.msra.mxu0 0.0
        %1232 = vmatprep.subr.mxu0 0.0
        %1233 = vmatpush1.msra.mxu0 0.0
        %1234 = vmatprep.subr.mxu0 0.0
        %1235 = vmatpush1.msra.mxu0 0.0
        %1236 = vmatprep.subr.mxu0 0.0
        %1237 = vmatpush1.msra.mxu0 0.0
        %1238 = vmatprep.subr.mxu0 0.0
        %1239 = vmatpush1.msra.mxu0 0.0
        %1240 = vmatprep.subr.mxu0 0.0
        %1241 = vmatpush1.msra.mxu0 0.0
        %1242 = vmatprep.subr.mxu0 0.0
        %1243 = vmatpush1.msra.mxu0 0.0
        %1244 = vmatprep.subr.mxu0 0.0
        %1245 = vmatpush1.msra.mxu0 0.0
        %1246 = vmatprep.subr.mxu0 0.0
        %1247 = vmatpush1.msra.mxu0 0.0
        %1248 = vmatprep.subr.mxu0 0.0
        %1249 = vmatpush1.msra.mxu0 0.0
        %1250 = vmatprep.subr.mxu0 0.0
        %1251 = vmatpush1.msra.mxu0 %v1222
        %1252 = vmatprep.subr.mxu0 0.0
        %1253 = vmatpush1.msra.mxu0 %v1219
        %1254 = vmatprep.subr.mxu0 0.0
        %1255 = vmatpush1.msra.mxu0 %v1216
        %1256 = vmatprep.subr.mxu0 0.0
        %1257 = vmatpush2.msra.mxu0 0.0
        %1258 = vmatprep.subr.mxu0 0.0
        %1259 = vmatpush2.msra.mxu0 0.0
        %1260 = vmatprep.subr.mxu0 0.0
        %1261 = vmatpush2.msra.mxu0 0.0
        %1262 = vmatprep.subr.mxu0 0.0
        %1263 = vmatpush2.msra.mxu0 0.0
        %1264 = vmatprep.subr.mxu0 0.0
        %1265 = vmatpush2.msra.mxu0 0.0
        %1266 = vmatprep.subr.mxu0 0.0
        %1267 = vmatpush2.msra.mxu0 0.0
        %1268 = vmatprep.subr.mxu0 0.0
        %1269 = vmatpush2.msra.mxu0 0.0
        %1270 = vmatprep.subr.mxu0 0.0
        %1271 = vmatpush2.msra.mxu0 0.0
        %1272 = vmatprep.subr.mxu0 0.0
        %1273 = vmatpush2.msra.mxu0 0.0
        %1274 = vmatprep.subr.mxu0 0.0
        %1275 = vmatpush2.msra.mxu0 0.0
        %1276 = vmatprep.subr.mxu0 0.0
        %1277 = vmatpush2.msra.mxu0 0.0
        %1278 = vmatprep.subr.mxu0 0.0
        %1279 = vmatpush2.msra.mxu0 0.0
        %1280 = vmatprep.subr.mxu0 0.0
        %1281 = vmatpush2.msra.mxu0 0.0
        %1282 = vmatprep.subr.mxu0 0.0
        %1283 = vmatpush2.msra.mxu0 0.0
        %1284 = vmatprep.subr.mxu0 0.0
        %1285 = vmatpush2.msra.mxu0 0.0
        %1286 = vmatprep.subr.mxu0 0.0
        %1287 = vmatpush2.msra.mxu0 0.0
        %1288 = vmatprep.mubr.f32.mxu0 0.0
        %1289 = vmatmul.mubr.f32.gmra.mxu0 %v545
        %v1290 = vpop.f32.mrf.mxu0
        %v1291 = vadd.f32 %v542, %v1290
        %v1292 = vpop.f32.mrf.mxu0
        %1293 = vdwg.mxu0
        %v1294 = vmax.f32 %v1291, 0.0
        %v1295 = vand.u32 2147483647, %v1291
        %v1296 = vsub.f32 0.0, %v1295
        %v1297 = vmul.f32 %v1296, 1.442695
        %v1298 = vpow.pop %v1297
        %v1299 = vadd.f32 %v1298, 1.0
        %v1300 = vlog2.pop %v1299
        %v1301 = vmul.f32 %v1300, 0.6931472
        %v1302 = vadd.f32 %v1294, %v1301
        %v1303 = vtanh.pop %v1302
        %v1304 = vmul.f32 %v1291, %v1303
        %v1305 = vadd.f32 %v1304, 0.0
        %1306 = vrot.lane.b32.xlu0 %v1120, 125
        %v1307 = vpop.permute.xlu0 %1306
        %1308 = vrot.lane.b32.xlu0 %v1120, 122
        %v1309 = vpop.permute.xlu0 %1308
        %1310 = vrot.lane.b32.xlu0 %v1307, 126
        %v1311 = vpop.permute.xlu0 %1310
        %1312 = vrot.lane.b32.xlu0 %v1309, 126
        %v1313 = vpop.permute.xlu0 %1312
        %1317 = vmatprep.subr.mxu0 0.0
        %1318 = vmatpush1.msra.mxu0 0.0
        %1319 = vmatprep.subr.mxu0 0.0
        %1320 = vmatpush1.msra.mxu0 0.0
        %1321 = vmatprep.subr.mxu0 0.0
        %1322 = vmatpush1.msra.mxu0 0.0
        %1323 = vmatprep.subr.mxu0 0.0
        %1324 = vmatpush1.msra.mxu0 0.0
        %1325 = vmatprep.subr.mxu0 0.0
        %1326 = vmatpush1.msra.mxu0 0.0
        %1327 = vmatprep.subr.mxu0 0.0
        %1328 = vmatpush1.msra.mxu0 0.0
        %1329 = vmatprep.subr.mxu0 0.0
        %1330 = vmatpush1.msra.mxu0 0.0
        %1331 = vmatprep.subr.mxu0 0.0
        %1332 = vmatpush1.msra.mxu0 0.0
        %1333 = vmatprep.subr.mxu0 0.0
        %1334 = vmatpush1.msra.mxu0 0.0
        %1335 = vmatprep.subr.mxu0 0.0
        %1336 = vmatpush1.msra.mxu0 0.0
        %1337 = vmatprep.subr.mxu0 0.0
        %1338 = vmatpush1.msra.mxu0 0.0
        %1339 = vmatprep.subr.mxu0 0.0
        %1340 = vmatpush1.msra.mxu0 0.0
        %1341 = vmatprep.subr.mxu0 0.0
        %1342 = vmatpush1.msra.mxu0 0.0
        %1343 = vmatprep.subr.mxu0 0.0
        %1344 = vmatpush1.msra.mxu0 %v1313
        %1345 = vmatprep.subr.mxu0 0.0
        %1346 = vmatpush1.msra.mxu0 %v1311
        %1347 = vmatprep.subr.mxu0 0.0
        %1348 = vmatpush1.msra.mxu0 %v1125
        %1349 = vmatprep.subr.mxu0 0.0
        %1350 = vmatpush2.msra.mxu0 0.0
        %1351 = vmatprep.subr.mxu0 0.0
        %1352 = vmatpush2.msra.mxu0 0.0
        %1353 = vmatprep.subr.mxu0 0.0
        %1354 = vmatpush2.msra.mxu0 0.0
        %1355 = vmatprep.subr.mxu0 0.0
        %1356 = vmatpush2.msra.mxu0 0.0
        %1357 = vmatprep.subr.mxu0 0.0
        %1358 = vmatpush2.msra.mxu0 0.0
        %1359 = vmatprep.subr.mxu0 0.0
        %1360 = vmatpush2.msra.mxu0 0.0
        %1361 = vmatprep.subr.mxu0 0.0
        %1362 = vmatpush2.msra.mxu0 0.0
        %1363 = vmatprep.subr.mxu0 0.0
        %1364 = vmatpush2.msra.mxu0 0.0
        %1365 = vmatprep.subr.mxu0 0.0
        %1366 = vmatpush2.msra.mxu0 0.0
        %1367 = vmatprep.subr.mxu0 0.0
        %1368 = vmatpush2.msra.mxu0 0.0
        %1369 = vmatprep.subr.mxu0 0.0
        %1370 = vmatpush2.msra.mxu0 0.0
        %1371 = vmatprep.subr.mxu0 0.0
        %1372 = vmatpush2.msra.mxu0 0.0
        %1373 = vmatprep.subr.mxu0 0.0
        %1374 = vmatpush2.msra.mxu0 0.0
        %1375 = vmatprep.subr.mxu0 0.0
        %1376 = vmatpush2.msra.mxu0 0.0
        %1377 = vmatprep.subr.mxu0 0.0
        %1378 = vmatpush2.msra.mxu0 0.0
        %1379 = vmatprep.subr.mxu0 0.0
        %1380 = vmatpush2.msra.mxu0 0.0
        %1381 = vmatprep.mubr.f32.mxu0 0.0
        %1382 = vmatmul.mubr.f32.gmra.mxu0 %v650
        %v1383 = vpop.f32.mrf.mxu0
        %v1384 = vadd.f32 %v640, %v1383
        %v1385 = vpop.f32.mrf.mxu0
        %1386 = vdwg.mxu0
        %v1387 = vmax.f32 %v1384, 0.0
        %v1388 = vand.u32 2147483647, %v1384
        %v1389 = vsub.f32 0.0, %v1388
        %v1390 = vmul.f32 %v1389, 1.442695
        %v1391 = vpow.pop %v1390
        %v1392 = vadd.f32 %v1391, 1.0
        %v1393 = vlog2.pop %v1392
        %v1394 = vmul.f32 %v1393, 0.6931472
        %v1395 = vadd.f32 %v1387, %v1394
        %v1396 = vtanh.pop %v1395
        %v1397 = vmul.f32 %v1384, %v1396
        %v1398 = vmul.f32 %v1397, %v340
        %1400 = vrot.lane.b32.xlu0 %v1398, 127
        %v1401 = vpop.permute.xlu0 %1400
        %1403 = vrot.lane.b32.xlu0 %v1398, 126
        %v1404 = vpop.permute.xlu0 %1403
        %1406 = vmatprep.subr.mxu0 0.0
        %1407 = vmatpush1.msra.mxu0 0.0
        %1408 = vmatprep.subr.mxu0 0.0
        %1409 = vmatpush1.msra.mxu0 0.0
        %1410 = vmatprep.subr.mxu0 0.0
        %1411 = vmatpush1.msra.mxu0 0.0
        %1412 = vmatprep.subr.mxu0 0.0
        %1413 = vmatpush1.msra.mxu0 0.0
        %1414 = vmatprep.subr.mxu0 0.0
        %1415 = vmatpush1.msra.mxu0 0.0
        %1416 = vmatprep.subr.mxu0 0.0
        %1417 = vmatpush1.msra.mxu0 0.0
        %1418 = vmatprep.subr.mxu0 0.0
        %1419 = vmatpush1.msra.mxu0 0.0
        %1420 = vmatprep.subr.mxu0 0.0
        %1421 = vmatpush1.msra.mxu0 0.0
        %1422 = vmatprep.subr.mxu0 0.0
        %1423 = vmatpush1.msra.mxu0 0.0
        %1424 = vmatprep.subr.mxu0 0.0
        %1425 = vmatpush1.msra.mxu0 0.0
        %1426 = vmatprep.subr.mxu0 0.0
        %1427 = vmatpush1.msra.mxu0 0.0
        %1428 = vmatprep.subr.mxu0 0.0
        %1429 = vmatpush1.msra.mxu0 0.0
        %1430 = vmatprep.subr.mxu0 0.0
        %1431 = vmatpush1.msra.mxu0 0.0
        %1432 = vmatprep.subr.mxu0 0.0
        %1433 = vmatpush1.msra.mxu0 %v1404
        %1434 = vmatprep.subr.mxu0 0.0
        %1435 = vmatpush1.msra.mxu0 %v1401
        %1436 = vmatprep.subr.mxu0 0.0
        %1437 = vmatpush1.msra.mxu0 %v1398
        %1438 = vmatprep.subr.mxu0 0.0
        %1439 = vmatpush2.msra.mxu0 0.0
        %1440 = vmatprep.subr.mxu0 0.0
        %1441 = vmatpush2.msra.mxu0 0.0
        %1442 = vmatprep.subr.mxu0 0.0
        %1443 = vmatpush2.msra.mxu0 0.0
        %1444 = vmatprep.subr.mxu0 0.0
        %1445 = vmatpush2.msra.mxu0 0.0
        %1446 = vmatprep.subr.mxu0 0.0
        %1447 = vmatpush2.msra.mxu0 0.0
        %1448 = vmatprep.subr.mxu0 0.0
        %1449 = vmatpush2.msra.mxu0 0.0
        %1450 = vmatprep.subr.mxu0 0.0
        %1451 = vmatpush2.msra.mxu0 0.0
        %1452 = vmatprep.subr.mxu0 0.0
        %1453 = vmatpush2.msra.mxu0 0.0
        %1454 = vmatprep.subr.mxu0 0.0
        %1455 = vmatpush2.msra.mxu0 0.0
        %1456 = vmatprep.subr.mxu0 0.0
        %1457 = vmatpush2.msra.mxu0 0.0
        %1458 = vmatprep.subr.mxu0 0.0
        %1459 = vmatpush2.msra.mxu0 0.0
        %1460 = vmatprep.subr.mxu0 0.0
        %1461 = vmatpush2.msra.mxu0 0.0
        %1462 = vmatprep.subr.mxu0 0.0
        %1463 = vmatpush2.msra.mxu0 0.0
        %1464 = vmatprep.subr.mxu0 0.0
        %1465 = vmatpush2.msra.mxu0 0.0
        %1466 = vmatprep.subr.mxu0 0.0
        %1467 = vmatpush2.msra.mxu0 0.0
        %1468 = vmatprep.subr.mxu0 0.0
        %1469 = vmatpush2.msra.mxu0 0.0
        %1470 = vmatprep.mubr.f32.mxu0 0.0
        %1471 = vmatmul.mubr.f32.gmra.mxu0 %v751
        %v1472 = vpop.f32.mrf.mxu0
        %v1473 = vadd.f32 %v748, %v1472
        %v1474 = vpop.f32.mrf.mxu0
        %1475 = vdwg.mxu0
        %v1476 = vmax.f32 %v1473, 0.0
        %v1477 = vand.u32 2147483647, %v1473
        %v1478 = vsub.f32 0.0, %v1477
        %v1479 = vmul.f32 %v1478, 1.442695
        %v1480 = vpow.pop %v1479
        %v1481 = vadd.f32 %v1480, 1.0
        %v1482 = vlog2.pop %v1481
        %v1483 = vmul.f32 %v1482, 0.6931472
        %v1484 = vadd.f32 %v1476, %v1483
        %v1485 = vtanh.pop %v1484
        %v1486 = vmul.f32 %v1473, %v1485
        %v1487 = vadd.f32 %v1305, %v1486
        %1488 = vrot.lane.b32.xlu0 %v1120, 123
        %v1489 = vpop.permute.xlu0 %1488
        %1491 = vrot.lane.b32.xlu0 %v1120, 118
        %v1492 = vpop.permute.xlu0 %1491
        %1494 = vmatprep.subr.mxu0 0.0
        %1495 = vmatpush1.msra.mxu0 0.0
        %1496 = vmatprep.subr.mxu0 0.0
        %1497 = vmatpush1.msra.mxu0 0.0
        %1498 = vmatprep.subr.mxu0 0.0
        %1499 = vmatpush1.msra.mxu0 0.0
        %1500 = vmatprep.subr.mxu0 0.0
        %1501 = vmatpush1.msra.mxu0 0.0
        %1502 = vmatprep.subr.mxu0 0.0
        %1503 = vmatpush1.msra.mxu0 0.0
        %1504 = vmatprep.subr.mxu0 0.0
        %1505 = vmatpush1.msra.mxu0 0.0
        %1506 = vmatprep.subr.mxu0 0.0
        %1507 = vmatpush1.msra.mxu0 0.0
        %1508 = vmatprep.subr.mxu0 0.0
        %1509 = vmatpush1.msra.mxu0 0.0
        %1510 = vmatprep.subr.mxu0 0.0
        %1511 = vmatpush1.msra.mxu0 0.0
        %1512 = vmatprep.subr.mxu0 0.0
        %1513 = vmatpush1.msra.mxu0 0.0
        %1514 = vmatprep.subr.mxu0 0.0
        %1515 = vmatpush1.msra.mxu0 0.0
        %1516 = vmatprep.subr.mxu0 0.0
        %1517 = vmatpush1.msra.mxu0 0.0
        %1518 = vmatprep.subr.mxu0 0.0
        %1519 = vmatpush1.msra.mxu0 0.0
        %1520 = vmatprep.subr.mxu0 0.0
        %1521 = vmatpush1.msra.mxu0 %v1492
        %1522 = vmatprep.subr.mxu0 0.0
        %1523 = vmatpush1.msra.mxu0 %v1489
        %1524 = vmatprep.subr.mxu0 0.0
        %1525 = vmatpush1.msra.mxu0 %v1120
        %1526 = vmatprep.subr.mxu0 0.0
        %1527 = vmatpush2.msra.mxu0 0.0
        %1528 = vmatprep.subr.mxu0 0.0
        %1529 = vmatpush2.msra.mxu0 0.0
        %1530 = vmatprep.subr.mxu0 0.0
        %1531 = vmatpush2.msra.mxu0 0.0
        %1532 = vmatprep.subr.mxu0 0.0
        %1533 = vmatpush2.msra.mxu0 0.0
        %1534 = vmatprep.subr.mxu0 0.0
        %1535 = vmatpush2.msra.mxu0 0.0
        %1536 = vmatprep.subr.mxu0 0.0
        %1537 = vmatpush2.msra.mxu0 0.0
        %1538 = vmatprep.subr.mxu0 0.0
        %1539 = vmatpush2.msra.mxu0 0.0
        %1540 = vmatprep.subr.mxu0 0.0
        %1541 = vmatpush2.msra.mxu0 0.0
        %1542 = vmatprep.subr.mxu0 0.0
        %1543 = vmatpush2.msra.mxu0 0.0
        %1544 = vmatprep.subr.mxu0 0.0
        %1545 = vmatpush2.msra.mxu0 0.0
        %1546 = vmatprep.subr.mxu0 0.0
        %1547 = vmatpush2.msra.mxu0 0.0
        %1548 = vmatprep.subr.mxu0 0.0
        %1549 = vmatpush2.msra.mxu0 0.0
        %1550 = vmatprep.subr.mxu0 0.0
        %1551 = vmatpush2.msra.mxu0 0.0
        %1552 = vmatprep.subr.mxu0 0.0
        %1553 = vmatpush2.msra.mxu0 0.0
        %1554 = vmatprep.subr.mxu0 0.0
        %1555 = vmatpush2.msra.mxu0 0.0
        %1556 = vmatprep.subr.mxu0 0.0
        %1557 = vmatpush2.msra.mxu0 0.0
        %1558 = vmatprep.mubr.f32.mxu0 0.0
        %1559 = vmatmul.mubr.f32.gmra.mxu0 %v851
        %v1560 = vpop.f32.mrf.mxu0
        %v1561 = vadd.f32 %v848, %v1560
        %v1562 = vpop.f32.mrf.mxu0
        %1563 = vdwg.mxu0
        %v1564 = vmax.f32 %v1561, 0.0
        %v1565 = vand.u32 2147483647, %v1561
        %v1566 = vsub.f32 0.0, %v1565
        %v1567 = vmul.f32 %v1566, 1.442695
        %v1568 = vpow.pop %v1567
        %v1569 = vadd.f32 %v1568, 1.0
        %v1570 = vlog2.pop %v1569
        %v1571 = vmul.f32 %v1570, 0.6931472
        %v1572 = vadd.f32 %v1564, %v1571
        %v1573 = vtanh.pop %v1572
        %v1574 = vmul.f32 %v1561, %v1573
        %v1575 = vmul.f32 %v1574, %v340
        %1577 = vrot.lane.b32.xlu0 %v1575, 127
        %v1578 = vpop.permute.xlu0 %1577
        %1580 = vrot.lane.b32.xlu0 %v1575, 126
        %v1581 = vpop.permute.xlu0 %1580
        %1583 = vmatprep.subr.mxu0 0.0
        %1584 = vmatpush1.msra.mxu0 0.0
        %1585 = vmatprep.subr.mxu0 0.0
        %1586 = vmatpush1.msra.mxu0 0.0
        %1587 = vmatprep.subr.mxu0 0.0
        %1588 = vmatpush1.msra.mxu0 0.0
        %1589 = vmatprep.subr.mxu0 0.0
        %1590 = vmatpush1.msra.mxu0 0.0
        %1591 = vmatprep.subr.mxu0 0.0
        %1592 = vmatpush1.msra.mxu0 0.0
        %1593 = vmatprep.subr.mxu0 0.0
        %1594 = vmatpush1.msra.mxu0 0.0
        %1595 = vmatprep.subr.mxu0 0.0
        %1596 = vmatpush1.msra.mxu0 0.0
        %1597 = vmatprep.subr.mxu0 0.0
        %1598 = vmatpush1.msra.mxu0 0.0
        %1599 = vmatprep.subr.mxu0 0.0
        %1600 = vmatpush1.msra.mxu0 0.0
        %1601 = vmatprep.subr.mxu0 0.0
        %1602 = vmatpush1.msra.mxu0 0.0
        %1603 = vmatprep.subr.mxu0 0.0
        %1604 = vmatpush1.msra.mxu0 0.0
        %1605 = vmatprep.subr.mxu0 0.0
        %1606 = vmatpush1.msra.mxu0 0.0
        %1607 = vmatprep.subr.mxu0 0.0
        %1608 = vmatpush1.msra.mxu0 0.0
        %1609 = vmatprep.subr.mxu0 0.0
        %1610 = vmatpush1.msra.mxu0 %v1581
        %1611 = vmatprep.subr.mxu0 0.0
        %1612 = vmatpush1.msra.mxu0 %v1578
        %1613 = vmatprep.subr.mxu0 0.0
        %1614 = vmatpush1.msra.mxu0 %v1575
        %1615 = vmatprep.subr.mxu0 0.0
        %1616 = vmatpush2.msra.mxu0 0.0
        %1617 = vmatprep.subr.mxu0 0.0
        %1618 = vmatpush2.msra.mxu0 0.0
        %1619 = vmatprep.subr.mxu0 0.0
        %1620 = vmatpush2.msra.mxu0 0.0
        %1621 = vmatprep.subr.mxu0 0.0
        %1622 = vmatpush2.msra.mxu0 0.0
        %1623 = vmatprep.subr.mxu0 0.0
        %1624 = vmatpush2.msra.mxu0 0.0
        %1625 = vmatprep.subr.mxu0 0.0
        %1626 = vmatpush2.msra.mxu0 0.0
        %1627 = vmatprep.subr.mxu0 0.0
        %1628 = vmatpush2.msra.mxu0 0.0
        %1629 = vmatprep.subr.mxu0 0.0
        %1630 = vmatpush2.msra.mxu0 0.0
        %1631 = vmatprep.subr.mxu0 0.0
        %1632 = vmatpush2.msra.mxu0 0.0
        %1633 = vmatprep.subr.mxu0 0.0
        %1634 = vmatpush2.msra.mxu0 0.0
        %1635 = vmatprep.subr.mxu0 0.0
        %1636 = vmatpush2.msra.mxu0 0.0
        %1637 = vmatprep.subr.mxu0 0.0
        %1638 = vmatpush2.msra.mxu0 0.0
        %1639 = vmatprep.subr.mxu0 0.0
        %1640 = vmatpush2.msra.mxu0 0.0
        %1641 = vmatprep.subr.mxu0 0.0
        %1642 = vmatpush2.msra.mxu0 0.0
        %1643 = vmatprep.subr.mxu0 0.0
        %1644 = vmatpush2.msra.mxu0 0.0
        %1645 = vmatprep.subr.mxu0 0.0
        %1646 = vmatpush2.msra.mxu0 0.0
        %1647 = vmatprep.mubr.f32.mxu0 0.0
        %1648 = vmatmul.mubr.f32.gmra.mxu0 %v952
        %v1649 = vpop.f32.mrf.mxu0
        %v1650 = vadd.f32 %v949, %v1649
        %v1651 = vpop.f32.mrf.mxu0
        %1652 = vdwg.mxu0
        %v1653 = vmax.f32 %v1650, 0.0
        %v1654 = vand.u32 2147483647, %v1650
        %v1655 = vsub.f32 0.0, %v1654
        %v1656 = vmul.f32 %v1655, 1.442695
        %v1657 = vpow.pop %v1656
        %v1658 = vadd.f32 %v1657, 1.0
        %v1659 = vlog2.pop %v1658
        %v1660 = vmul.f32 %v1659, 0.6931472
        %v1661 = vadd.f32 %v1653, %v1660
        %v1662 = vtanh.pop %v1661
        %v1663 = vmul.f32 %v1650, %v1662
        %v1664 = vadd.f32 %v1487, %v1663
        %v1665 = vmul.f32 %v1664, 0.33333334
        %1667 = vrot.lane.b32.xlu0 %v1037, 120
        %v1668 = vpop.permute.xlu0 %1667
        %v1669 = vsel %vm348, %v1668, 0
        %1671 = vmatprep.subr.mxu0 0.0
        %1672 = vmatpush1.msra.mxu0 0.0
        %1673 = vmatprep.subr.mxu0 0.0
        %1674 = vmatpush1.msra.mxu0 0.0
        %1675 = vmatprep.subr.mxu0 0.0
        %1676 = vmatpush1.msra.mxu0 0.0
        %1677 = vmatprep.subr.mxu0 0.0
        %1678 = vmatpush1.msra.mxu0 0.0
        %1679 = vmatprep.subr.mxu0 0.0
        %1680 = vmatpush1.msra.mxu0 0.0
        %1681 = vmatprep.subr.mxu0 0.0
        %1682 = vmatpush1.msra.mxu0 0.0
        %1683 = vmatprep.subr.mxu0 0.0
        %1684 = vmatpush1.msra.mxu0 0.0
        %1685 = vmatprep.subr.mxu0 0.0
        %1686 = vmatpush1.msra.mxu0 0.0
        %1687 = vmatprep.subr.mxu0 0.0
        %1688 = vmatpush1.msra.mxu0 0.0
        %1689 = vmatprep.subr.mxu0 0.0
        %1690 = vmatpush1.msra.mxu0 0.0
        %1691 = vmatprep.subr.mxu0 0.0
        %1692 = vmatpush1.msra.mxu0 0.0
        %1693 = vmatprep.subr.mxu0 0.0
        %1694 = vmatpush1.msra.mxu0 0.0
        %1695 = vmatprep.subr.mxu0 0.0
        %1696 = vmatpush1.msra.mxu0 0.0
        %1697 = vmatprep.subr.mxu0 0.0
        %1698 = vmatpush1.msra.mxu0 0.0
        %1699 = vmatprep.subr.mxu0 0.0
        %1700 = vmatpush1.msra.mxu0 0.0
        %1701 = vmatprep.subr.mxu0 0.0
        %1702 = vmatpush1.msra.mxu0 %v1665
        %1703 = vmatprep.subr.mxu0 0.0
        %1704 = vmatpush2.msra.mxu0 0.0
        %1705 = vmatprep.subr.mxu0 0.0
        %1706 = vmatpush2.msra.mxu0 0.0
        %1707 = vmatprep.subr.mxu0 0.0
        %1708 = vmatpush2.msra.mxu0 0.0
        %1709 = vmatprep.subr.mxu0 0.0
        %1710 = vmatpush2.msra.mxu0 0.0
        %1711 = vmatprep.subr.mxu0 0.0
        %1712 = vmatpush2.msra.mxu0 0.0
        %1713 = vmatprep.subr.mxu0 0.0
        %1714 = vmatpush2.msra.mxu0 0.0
        %1715 = vmatprep.subr.mxu0 0.0
        %1716 = vmatpush2.msra.mxu0 0.0
        %1717 = vmatprep.subr.mxu0 0.0
        %1718 = vmatpush2.msra.mxu0 0.0
        %1719 = vmatprep.subr.mxu0 0.0
        %1720 = vmatpush2.msra.mxu0 0.0
        %1721 = vmatprep.subr.mxu0 0.0
        %1722 = vmatpush2.msra.mxu0 0.0
        %1723 = vmatprep.subr.mxu0 0.0
        %1724 = vmatpush2.msra.mxu0 0.0
        %1725 = vmatprep.subr.mxu0 0.0
        %1726 = vmatpush2.msra.mxu0 0.0
        %1727 = vmatprep.subr.mxu0 0.0
        %1728 = vmatpush2.msra.mxu0 0.0
        %1729 = vmatprep.subr.mxu0 0.0
        %1730 = vmatpush2.msra.mxu0 0.0
        %1731 = vmatprep.subr.mxu0 0.0
        %1732 = vmatpush2.msra.mxu0 0.0
        %1733 = vmatprep.subr.mxu0 0.0
        %1734 = vmatpush2.msra.mxu0 0.0
        %1735 = vmatprep.mubr.f32.mxu0 0.0
        %1736 = vmatmul.mubr.f32.gmra.mxu0 %v1669
        %v1737 = vpop.f32.mrf.mxu0
        %v1738 = vadd.f32 0.0, %v1737
        %v1739 = vpop.f32.mrf.mxu0
        %1740 = vdwg.mxu0
        %v1741 = vsel %vm348, %v1037, 0
        %1743 = vmatprep.subr.mxu0 0.0
        %1744 = vmatpush1.msra.mxu0 0.0
        %1745 = vmatprep.subr.mxu0 0.0
        %1746 = vmatpush1.msra.mxu0 0.0
        %1747 = vmatprep.subr.mxu0 0.0
        %1748 = vmatpush1.msra.mxu0 0.0
        %1749 = vmatprep.subr.mxu0 0.0
        %1750 = vmatpush1.msra.mxu0 0.0
        %1751 = vmatprep.subr.mxu0 0.0
        %1752 = vmatpush1.msra.mxu0 0.0
        %1753 = vmatprep.subr.mxu0 0.0
        %1754 = vmatpush1.msra.mxu0 0.0
        %1755 = vmatprep.subr.mxu0 0.0
        %1756 = vmatpush1.msra.mxu0 0.0
        %1757 = vmatprep.subr.mxu0 0.0
        %1758 = vmatpush1.msra.mxu0 0.0
        %1759 = vmatprep.subr.mxu0 0.0
        %1760 = vmatpush1.msra.mxu0 0.0
        %1761 = vmatprep.subr.mxu0 0.0
        %1762 = vmatpush1.msra.mxu0 0.0
        %1763 = vmatprep.subr.mxu0 0.0
        %1764 = vmatpush1.msra.mxu0 0.0
        %1765 = vmatprep.subr.mxu0 0.0
        %1766 = vmatpush1.msra.mxu0 0.0
        %1767 = vmatprep.subr.mxu0 0.0
        %1768 = vmatpush1.msra.mxu0 0.0
        %1769 = vmatprep.subr.mxu0 0.0
        %1770 = vmatpush1.msra.mxu0 0.0
        %1771 = vmatprep.subr.mxu0 0.0
        %1772 = vmatpush1.msra.mxu0 0.0
        %1773 = vmatprep.subr.mxu0 0.0
        %1774 = vmatpush1.msra.mxu0 %v1036
        %1775 = vmatprep.subr.mxu0 0.0
        %1776 = vmatpush2.msra.mxu0 0.0
        %1777 = vmatprep.subr.mxu0 0.0
        %1778 = vmatpush2.msra.mxu0 0.0
        %1779 = vmatprep.subr.mxu0 0.0
        %1780 = vmatpush2.msra.mxu0 0.0
        %1781 = vmatprep.subr.mxu0 0.0
        %1782 = vmatpush2.msra.mxu0 0.0
        %1783 = vmatprep.subr.mxu0 0.0
        %1784 = vmatpush2.msra.mxu0 0.0
        %1785 = vmatprep.subr.mxu0 0.0
        %1786 = vmatpush2.msra.mxu0 0.0
        %1787 = vmatprep.subr.mxu0 0.0
        %1788 = vmatpush2.msra.mxu0 0.0
        %1789 = vmatprep.subr.mxu0 0.0
        %1790 = vmatpush2.msra.mxu0 0.0
        %1791 = vmatprep.subr.mxu0 0.0
        %1792 = vmatpush2.msra.mxu0 0.0
        %1793 = vmatprep.subr.mxu0 0.0
        %1794 = vmatpush2.msra.mxu0 0.0
        %1795 = vmatprep.subr.mxu0 0.0
        %1796 = vmatpush2.msra.mxu0 0.0
        %1797 = vmatprep.subr.mxu0 0.0
        %1798 = vmatpush2.msra.mxu0 0.0
        %1799 = vmatprep.subr.mxu0 0.0
        %1800 = vmatpush2.msra.mxu0 0.0
        %1801 = vmatprep.subr.mxu0 0.0
        %1802 = vmatpush2.msra.mxu0 0.0
        %1803 = vmatprep.subr.mxu0 0.0
        %1804 = vmatpush2.msra.mxu0 0.0
        %1805 = vmatprep.subr.mxu0 0.0
        %1806 = vmatpush2.msra.mxu0 0.0
        %1807 = vmatprep.mubr.f32.mxu0 0.0
        %1808 = vmatmul.mubr.f32.gmra.mxu0 %v1741
        %v1809 = vpop.f32.mrf.mxu0
        %v1810 = vadd.f32 %v1738, %v1809
        %v1811 = vpop.f32.mrf.mxu0
        %1812 = vdwg.mxu0
        %s1813 = scalar_lea.vmem %s1, 16
        %v1814 = vld [vmem:[%s1813] sm:$0xff]
        %s1815 = scalar_lea.vmem %s2, 16
        %v1816 = vld [vmem:[%s1815] sm:$0xff]
        %1818 = vset.pattern.permute.xlu0 0
        %1819 = vperm.xlu0 %1818, %v1816
        %v1820 = vpop.permute.xlu0 %1819
        %v1823 = vsel %vm348, %v1814, 0
        %1825 = vmatprep.subr.mxu0 0.0
        %1826 = vmatpush1.msra.mxu0 0.0
        %1827 = vmatprep.subr.mxu0 0.0
        %1828 = vmatpush1.msra.mxu0 0.0
        %1829 = vmatprep.subr.mxu0 0.0
        %1830 = vmatpush1.msra.mxu0 0.0
        %1831 = vmatprep.subr.mxu0 0.0
        %1832 = vmatpush1.msra.mxu0 0.0
        %1833 = vmatprep.subr.mxu0 0.0
        %1834 = vmatpush1.msra.mxu0 0.0
        %1835 = vmatprep.subr.mxu0 0.0
        %1836 = vmatpush1.msra.mxu0 0.0
        %1837 = vmatprep.subr.mxu0 0.0
        %1838 = vmatpush1.msra.mxu0 0.0
        %1839 = vmatprep.subr.mxu0 0.0
        %1840 = vmatpush1.msra.mxu0 0.0
        %1841 = vmatprep.subr.mxu0 0.0
        %1842 = vmatpush1.msra.mxu0 0.0
        %1843 = vmatprep.subr.mxu0 0.0
        %1844 = vmatpush1.msra.mxu0 0.0
        %1845 = vmatprep.subr.mxu0 0.0
        %1846 = vmatpush1.msra.mxu0 0.0
        %1847 = vmatprep.subr.mxu0 0.0
        %1848 = vmatpush1.msra.mxu0 0.0
        %1849 = vmatprep.subr.mxu0 0.0
        %1850 = vmatpush1.msra.mxu0 0.0
        %1851 = vmatprep.subr.mxu0 0.0
        %1852 = vmatpush1.msra.mxu0 0.0
        %1853 = vmatprep.subr.mxu0 0.0
        %1854 = vmatpush1.msra.mxu0 0.0
        %1855 = vmatprep.subr.mxu0 0.0
        %1856 = vmatpush1.msra.mxu0 %v328
        %1857 = vmatprep.subr.mxu0 0.0
        %1858 = vmatpush2.msra.mxu0 0.0
        %1859 = vmatprep.subr.mxu0 0.0
        %1860 = vmatpush2.msra.mxu0 0.0
        %1861 = vmatprep.subr.mxu0 0.0
        %1862 = vmatpush2.msra.mxu0 0.0
        %1863 = vmatprep.subr.mxu0 0.0
        %1864 = vmatpush2.msra.mxu0 0.0
        %1865 = vmatprep.subr.mxu0 0.0
        %1866 = vmatpush2.msra.mxu0 0.0
        %1867 = vmatprep.subr.mxu0 0.0
        %1868 = vmatpush2.msra.mxu0 0.0
        %1869 = vmatprep.subr.mxu0 0.0
        %1870 = vmatpush2.msra.mxu0 0.0
        %1871 = vmatprep.subr.mxu0 0.0
        %1872 = vmatpush2.msra.mxu0 0.0
        %1873 = vmatprep.subr.mxu0 0.0
        %1874 = vmatpush2.msra.mxu0 0.0
        %1875 = vmatprep.subr.mxu0 0.0
        %1876 = vmatpush2.msra.mxu0 0.0
        %1877 = vmatprep.subr.mxu0 0.0
        %1878 = vmatpush2.msra.mxu0 0.0
        %1879 = vmatprep.subr.mxu0 0.0
        %1880 = vmatpush2.msra.mxu0 0.0
        %1881 = vmatprep.subr.mxu0 0.0
        %1882 = vmatpush2.msra.mxu0 0.0
        %1883 = vmatprep.subr.mxu0 0.0
        %1884 = vmatpush2.msra.mxu0 0.0
        %1885 = vmatprep.subr.mxu0 0.0
        %1886 = vmatpush2.msra.mxu0 0.0
        %1887 = vmatprep.subr.mxu0 0.0
        %1888 = vmatpush2.msra.mxu0 0.0
        %1889 = vmatprep.mubr.f32.mxu0 0.0
        %1890 = vmatmul.mubr.f32.gmra.mxu0 %v1823
        %v1891 = vpop.f32.mrf.mxu0
        %v1892 = vadd.f32 %v1820, %v1891
        %v1893 = vpop.f32.mrf.mxu0
        %1894 = vdwg.mxu0
        %v1895 = vmul.f32 %v1892, %v335
        %1897 = vrot.lane.b32.xlu0 %v1895, 127
        %v1898 = vpop.permute.xlu0 %1897
        %1899 = vrot.lane.b32.xlu0 %v1895, 126
        %v1900 = vpop.permute.xlu0 %1899
        %1901 = vrot.lane.b32.xlu0 %v1895, 124
        %v1902 = vpop.permute.xlu0 %1901
        %1903 = vrot.lane.b32.xlu0 %v1898, 124
        %v1904 = vpop.permute.xlu0 %1903
        %1905 = vrot.lane.b32.xlu0 %v1900, 124
        %v1906 = vpop.permute.xlu0 %1905
        %1910 = vmatprep.subr.mxu0 0.0
        %1911 = vmatpush1.msra.mxu0 0.0
        %1912 = vmatprep.subr.mxu0 0.0
        %1913 = vmatpush1.msra.mxu0 0.0
        %1914 = vmatprep.subr.mxu0 0.0
        %1915 = vmatpush1.msra.mxu0 0.0
        %1916 = vmatprep.subr.mxu0 0.0
        %1917 = vmatpush1.msra.mxu0 0.0
        %1918 = vmatprep.subr.mxu0 0.0
        %1919 = vmatpush1.msra.mxu0 0.0
        %1920 = vmatprep.subr.mxu0 0.0
        %1921 = vmatpush1.msra.mxu0 0.0
        %1922 = vmatprep.subr.mxu0 0.0
        %1923 = vmatpush1.msra.mxu0 0.0
        %1924 = vmatprep.subr.mxu0 0.0
        %1925 = vmatpush1.msra.mxu0 0.0
        %1926 = vmatprep.subr.mxu0 0.0
        %1927 = vmatpush1.msra.mxu0 0.0
        %1928 = vmatprep.subr.mxu0 0.0
        %1929 = vmatpush1.msra.mxu0 0.0
        %1930 = vmatprep.subr.mxu0 0.0
        %1931 = vmatpush1.msra.mxu0 0.0
        %1932 = vmatprep.subr.mxu0 0.0
        %1933 = vmatpush1.msra.mxu0 0.0
        %1934 = vmatprep.subr.mxu0 0.0
        %1935 = vmatpush1.msra.mxu0 0.0
        %1936 = vmatprep.subr.mxu0 0.0
        %1937 = vmatpush1.msra.mxu0 %v1906
        %1938 = vmatprep.subr.mxu0 0.0
        %1939 = vmatpush1.msra.mxu0 %v1904
        %1940 = vmatprep.subr.mxu0 0.0
        %1941 = vmatpush1.msra.mxu0 %v1902
        %1942 = vmatprep.subr.mxu0 0.0
        %1943 = vmatpush2.msra.mxu0 0.0
        %1944 = vmatprep.subr.mxu0 0.0
        %1945 = vmatpush2.msra.mxu0 0.0
        %1946 = vmatprep.subr.mxu0 0.0
        %1947 = vmatpush2.msra.mxu0 0.0
        %1948 = vmatprep.subr.mxu0 0.0
        %1949 = vmatpush2.msra.mxu0 0.0
        %1950 = vmatprep.subr.mxu0 0.0
        %1951 = vmatpush2.msra.mxu0 0.0
        %1952 = vmatprep.subr.mxu0 0.0
        %1953 = vmatpush2.msra.mxu0 0.0
        %1954 = vmatprep.subr.mxu0 0.0
        %1955 = vmatpush2.msra.mxu0 0.0
        %1956 = vmatprep.subr.mxu0 0.0
        %1957 = vmatpush2.msra.mxu0 0.0
        %1958 = vmatprep.subr.mxu0 0.0
        %1959 = vmatpush2.msra.mxu0 0.0
        %1960 = vmatprep.subr.mxu0 0.0
        %1961 = vmatpush2.msra.mxu0 0.0
        %1962 = vmatprep.subr.mxu0 0.0
        %1963 = vmatpush2.msra.mxu0 0.0
        %1964 = vmatprep.subr.mxu0 0.0
        %1965 = vmatpush2.msra.mxu0 0.0
        %1966 = vmatprep.subr.mxu0 0.0
        %1967 = vmatpush2.msra.mxu0 0.0
        %1968 = vmatprep.subr.mxu0 0.0
        %1969 = vmatpush2.msra.mxu0 0.0
        %1970 = vmatprep.subr.mxu0 0.0
        %1971 = vmatpush2.msra.mxu0 0.0
        %1972 = vmatprep.subr.mxu0 0.0
        %1973 = vmatpush2.msra.mxu0 0.0
        %1974 = vmatprep.mubr.f32.mxu0 0.0
        %1975 = vmatmul.mubr.f32.gmra.mxu0 %v446
        %v1976 = vpop.f32.mrf.mxu0
        %v1977 = vadd.f32 %v433, %v1976
        %v1978 = vpop.f32.mrf.mxu0
        %1979 = vdwg.mxu0
        %v1980 = vmax.f32 %v1977, 0.0
        %v1981 = vand.u32 2147483647, %v1977
        %v1982 = vsub.f32 0.0, %v1981
        %v1983 = vmul.f32 %v1982, 1.442695
        %v1984 = vpow.pop %v1983
        %v1985 = vadd.f32 %v1984, 1.0
        %v1986 = vlog2.pop %v1985
        %v1987 = vmul.f32 %v1986, 0.6931472
        %v1988 = vadd.f32 %v1980, %v1987
        %v1989 = vtanh.pop %v1988
        %v1990 = vmul.f32 %v1977, %v1989
        %v1991 = vmul.f32 %v1990, %v340
        %1993 = vrot.lane.b32.xlu0 %v1991, 127
        %v1994 = vpop.permute.xlu0 %1993
        %1996 = vrot.lane.b32.xlu0 %v1991, 126
        %v1997 = vpop.permute.xlu0 %1996
        %1999 = vmatprep.subr.mxu0 0.0
        %2000 = vmatpush1.msra.mxu0 0.0
        %2001 = vmatprep.subr.mxu0 0.0
        %2002 = vmatpush1.msra.mxu0 0.0
        %2003 = vmatprep.subr.mxu0 0.0
        %2004 = vmatpush1.msra.mxu0 0.0
        %2005 = vmatprep.subr.mxu0 0.0
        %2006 = vmatpush1.msra.mxu0 0.0
        %2007 = vmatprep.subr.mxu0 0.0
        %2008 = vmatpush1.msra.mxu0 0.0
        %2009 = vmatprep.subr.mxu0 0.0
        %2010 = vmatpush1.msra.mxu0 0.0
        %2011 = vmatprep.subr.mxu0 0.0
        %2012 = vmatpush1.msra.mxu0 0.0
        %2013 = vmatprep.subr.mxu0 0.0
        %2014 = vmatpush1.msra.mxu0 0.0
        %2015 = vmatprep.subr.mxu0 0.0
        %2016 = vmatpush1.msra.mxu0 0.0
        %2017 = vmatprep.subr.mxu0 0.0
        %2018 = vmatpush1.msra.mxu0 0.0
        %2019 = vmatprep.subr.mxu0 0.0
        %2020 = vmatpush1.msra.mxu0 0.0
        %2021 = vmatprep.subr.mxu0 0.0
        %2022 = vmatpush1.msra.mxu0 0.0
        %2023 = vmatprep.subr.mxu0 0.0
        %2024 = vmatpush1.msra.mxu0 0.0
        %2025 = vmatprep.subr.mxu0 0.0
        %2026 = vmatpush1.msra.mxu0 %v1997
        %2027 = vmatprep.subr.mxu0 0.0
        %2028 = vmatpush1.msra.mxu0 %v1994
        %2029 = vmatprep.subr.mxu0 0.0
        %2030 = vmatpush1.msra.mxu0 %v1991
        %2031 = vmatprep.subr.mxu0 0.0
        %2032 = vmatpush2.msra.mxu0 0.0
        %2033 = vmatprep.subr.mxu0 0.0
        %2034 = vmatpush2.msra.mxu0 0.0
        %2035 = vmatprep.subr.mxu0 0.0
        %2036 = vmatpush2.msra.mxu0 0.0
        %2037 = vmatprep.subr.mxu0 0.0
        %2038 = vmatpush2.msra.mxu0 0.0
        %2039 = vmatprep.subr.mxu0 0.0
        %2040 = vmatpush2.msra.mxu0 0.0
        %2041 = vmatprep.subr.mxu0 0.0
        %2042 = vmatpush2.msra.mxu0 0.0
        %2043 = vmatprep.subr.mxu0 0.0
        %2044 = vmatpush2.msra.mxu0 0.0
        %2045 = vmatprep.subr.mxu0 0.0
        %2046 = vmatpush2.msra.mxu0 0.0
        %2047 = vmatprep.subr.mxu0 0.0
        %2048 = vmatpush2.msra.mxu0 0.0
        %2049 = vmatprep.subr.mxu0 0.0
        %2050 = vmatpush2.msra.mxu0 0.0
        %2051 = vmatprep.subr.mxu0 0.0
        %2052 = vmatpush2.msra.mxu0 0.0
        %2053 = vmatprep.subr.mxu0 0.0
        %2054 = vmatpush2.msra.mxu0 0.0
        %2055 = vmatprep.subr.mxu0 0.0
        %2056 = vmatpush2.msra.mxu0 0.0
        %2057 = vmatprep.subr.mxu0 0.0
        %2058 = vmatpush2.msra.mxu0 0.0
        %2059 = vmatprep.subr.mxu0 0.0
        %2060 = vmatpush2.msra.mxu0 0.0
        %2061 = vmatprep.subr.mxu0 0.0
        %2062 = vmatpush2.msra.mxu0 0.0
        %2063 = vmatprep.mubr.f32.mxu0 0.0
        %2064 = vmatmul.mubr.f32.gmra.mxu0 %v545
        %v2065 = vpop.f32.mrf.mxu0
        %v2066 = vadd.f32 %v542, %v2065
        %v2067 = vpop.f32.mrf.mxu0
        %2068 = vdwg.mxu0
        %v2069 = vmax.f32 %v2066, 0.0
        %v2070 = vand.u32 2147483647, %v2066
        %v2071 = vsub.f32 0.0, %v2070
        %v2072 = vmul.f32 %v2071, 1.442695
        %v2073 = vpow.pop %v2072
        %v2074 = vadd.f32 %v2073, 1.0
        %v2075 = vlog2.pop %v2074
        %v2076 = vmul.f32 %v2075, 0.6931472
        %v2077 = vadd.f32 %v2069, %v2076
        %v2078 = vtanh.pop %v2077
        %v2079 = vmul.f32 %v2066, %v2078
        %v2080 = vadd.f32 %v2079, 0.0
        %2081 = vrot.lane.b32.xlu0 %v1895, 125
        %v2082 = vpop.permute.xlu0 %2081
        %2083 = vrot.lane.b32.xlu0 %v1895, 122
        %v2084 = vpop.permute.xlu0 %2083
        %2085 = vrot.lane.b32.xlu0 %v2082, 126
        %v2086 = vpop.permute.xlu0 %2085
        %2087 = vrot.lane.b32.xlu0 %v2084, 126
        %v2088 = vpop.permute.xlu0 %2087
        %2092 = vmatprep.subr.mxu0 0.0
        %2093 = vmatpush1.msra.mxu0 0.0
        %2094 = vmatprep.subr.mxu0 0.0
        %2095 = vmatpush1.msra.mxu0 0.0
        %2096 = vmatprep.subr.mxu0 0.0
        %2097 = vmatpush1.msra.mxu0 0.0
        %2098 = vmatprep.subr.mxu0 0.0
        %2099 = vmatpush1.msra.mxu0 0.0
        %2100 = vmatprep.subr.mxu0 0.0
        %2101 = vmatpush1.msra.mxu0 0.0
        %2102 = vmatprep.subr.mxu0 0.0
        %2103 = vmatpush1.msra.mxu0 0.0
        %2104 = vmatprep.subr.mxu0 0.0
        %2105 = vmatpush1.msra.mxu0 0.0
        %2106 = vmatprep.subr.mxu0 0.0
        %2107 = vmatpush1.msra.mxu0 0.0
        %2108 = vmatprep.subr.mxu0 0.0
        %2109 = vmatpush1.msra.mxu0 0.0
        %2110 = vmatprep.subr.mxu0 0.0
        %2111 = vmatpush1.msra.mxu0 0.0
        %2112 = vmatprep.subr.mxu0 0.0
        %2113 = vmatpush1.msra.mxu0 0.0
        %2114 = vmatprep.subr.mxu0 0.0
        %2115 = vmatpush1.msra.mxu0 0.0
        %2116 = vmatprep.subr.mxu0 0.0
        %2117 = vmatpush1.msra.mxu0 0.0
        %2118 = vmatprep.subr.mxu0 0.0
        %2119 = vmatpush1.msra.mxu0 %v2088
        %2120 = vmatprep.subr.mxu0 0.0
        %2121 = vmatpush1.msra.mxu0 %v2086
        %2122 = vmatprep.subr.mxu0 0.0
        %2123 = vmatpush1.msra.mxu0 %v1900
        %2124 = vmatprep.subr.mxu0 0.0
        %2125 = vmatpush2.msra.mxu0 0.0
        %2126 = vmatprep.subr.mxu0 0.0
        %2127 = vmatpush2.msra.mxu0 0.0
        %2128 = vmatprep.subr.mxu0 0.0
        %2129 = vmatpush2.msra.mxu0 0.0
        %2130 = vmatprep.subr.mxu0 0.0
        %2131 = vmatpush2.msra.mxu0 0.0
        %2132 = vmatprep.subr.mxu0 0.0
        %2133 = vmatpush2.msra.mxu0 0.0
        %2134 = vmatprep.subr.mxu0 0.0
        %2135 = vmatpush2.msra.mxu0 0.0
        %2136 = vmatprep.subr.mxu0 0.0
        %2137 = vmatpush2.msra.mxu0 0.0
        %2138 = vmatprep.subr.mxu0 0.0
        %2139 = vmatpush2.msra.mxu0 0.0
        %2140 = vmatprep.subr.mxu0 0.0
        %2141 = vmatpush2.msra.mxu0 0.0
        %2142 = vmatprep.subr.mxu0 0.0
        %2143 = vmatpush2.msra.mxu0 0.0
        %2144 = vmatprep.subr.mxu0 0.0
        %2145 = vmatpush2.msra.mxu0 0.0
        %2146 = vmatprep.subr.mxu0 0.0
        %2147 = vmatpush2.msra.mxu0 0.0
        %2148 = vmatprep.subr.mxu0 0.0
        %2149 = vmatpush2.msra.mxu0 0.0
        %2150 = vmatprep.subr.mxu0 0.0
        %2151 = vmatpush2.msra.mxu0 0.0
        %2152 = vmatprep.subr.mxu0 0.0
        %2153 = vmatpush2.msra.mxu0 0.0
        %2154 = vmatprep.subr.mxu0 0.0
        %2155 = vmatpush2.msra.mxu0 0.0
        %2156 = vmatprep.mubr.f32.mxu0 0.0
        %2157 = vmatmul.mubr.f32.gmra.mxu0 %v650
        %v2158 = vpop.f32.mrf.mxu0
        %v2159 = vadd.f32 %v640, %v2158
        %v2160 = vpop.f32.mrf.mxu0
        %2161 = vdwg.mxu0
        %v2162 = vmax.f32 %v2159, 0.0
        %v2163 = vand.u32 2147483647, %v2159
        %v2164 = vsub.f32 0.0, %v2163
        %v2165 = vmul.f32 %v2164, 1.442695
        %v2166 = vpow.pop %v2165
        %v2167 = vadd.f32 %v2166, 1.0
        %v2168 = vlog2.pop %v2167
        %v2169 = vmul.f32 %v2168, 0.6931472
        %v2170 = vadd.f32 %v2162, %v2169
        %v2171 = vtanh.pop %v2170
        %v2172 = vmul.f32 %v2159, %v2171
        %v2173 = vmul.f32 %v2172, %v340
        %2175 = vrot.lane.b32.xlu0 %v2173, 127
        %v2176 = vpop.permute.xlu0 %2175
        %2178 = vrot.lane.b32.xlu0 %v2173, 126
        %v2179 = vpop.permute.xlu0 %2178
        %2181 = vmatprep.subr.mxu0 0.0
        %2182 = vmatpush1.msra.mxu0 0.0
        %2183 = vmatprep.subr.mxu0 0.0
        %2184 = vmatpush1.msra.mxu0 0.0
        %2185 = vmatprep.subr.mxu0 0.0
        %2186 = vmatpush1.msra.mxu0 0.0
        %2187 = vmatprep.subr.mxu0 0.0
        %2188 = vmatpush1.msra.mxu0 0.0
        %2189 = vmatprep.subr.mxu0 0.0
        %2190 = vmatpush1.msra.mxu0 0.0
        %2191 = vmatprep.subr.mxu0 0.0
        %2192 = vmatpush1.msra.mxu0 0.0
        %2193 = vmatprep.subr.mxu0 0.0
        %2194 = vmatpush1.msra.mxu0 0.0
        %2195 = vmatprep.subr.mxu0 0.0
        %2196 = vmatpush1.msra.mxu0 0.0
        %2197 = vmatprep.subr.mxu0 0.0
        %2198 = vmatpush1.msra.mxu0 0.0
        %2199 = vmatprep.subr.mxu0 0.0
        %2200 = vmatpush1.msra.mxu0 0.0
        %2201 = vmatprep.subr.mxu0 0.0
        %2202 = vmatpush1.msra.mxu0 0.0
        %2203 = vmatprep.subr.mxu0 0.0
        %2204 = vmatpush1.msra.mxu0 0.0
        %2205 = vmatprep.subr.mxu0 0.0
        %2206 = vmatpush1.msra.mxu0 0.0
        %2207 = vmatprep.subr.mxu0 0.0
        %2208 = vmatpush1.msra.mxu0 %v2179
        %2209 = vmatprep.subr.mxu0 0.0
        %2210 = vmatpush1.msra.mxu0 %v2176
        %2211 = vmatprep.subr.mxu0 0.0
        %2212 = vmatpush1.msra.mxu0 %v2173
        %2213 = vmatprep.subr.mxu0 0.0
        %2214 = vmatpush2.msra.mxu0 0.0
        %2215 = vmatprep.subr.mxu0 0.0
        %2216 = vmatpush2.msra.mxu0 0.0
        %2217 = vmatprep.subr.mxu0 0.0
        %2218 = vmatpush2.msra.mxu0 0.0
        %2219 = vmatprep.subr.mxu0 0.0
        %2220 = vmatpush2.msra.mxu0 0.0
        %2221 = vmatprep.subr.mxu0 0.0
        %2222 = vmatpush2.msra.mxu0 0.0
        %2223 = vmatprep.subr.mxu0 0.0
        %2224 = vmatpush2.msra.mxu0 0.0
        %2225 = vmatprep.subr.mxu0 0.0
        %2226 = vmatpush2.msra.mxu0 0.0
        %2227 = vmatprep.subr.mxu0 0.0
        %2228 = vmatpush2.msra.mxu0 0.0
        %2229 = vmatprep.subr.mxu0 0.0
        %2230 = vmatpush2.msra.mxu0 0.0
        %2231 = vmatprep.subr.mxu0 0.0
        %2232 = vmatpush2.msra.mxu0 0.0
        %2233 = vmatprep.subr.mxu0 0.0
        %2234 = vmatpush2.msra.mxu0 0.0
        %2235 = vmatprep.subr.mxu0 0.0
        %2236 = vmatpush2.msra.mxu0 0.0
        %2237 = vmatprep.subr.mxu0 0.0
        %2238 = vmatpush2.msra.mxu0 0.0
        %2239 = vmatprep.subr.mxu0 0.0
        %2240 = vmatpush2.msra.mxu0 0.0
        %2241 = vmatprep.subr.mxu0 0.0
        %2242 = vmatpush2.msra.mxu0 0.0
        %2243 = vmatprep.subr.mxu0 0.0
        %2244 = vmatpush2.msra.mxu0 0.0
        %2245 = vmatprep.mubr.f32.mxu0 0.0
        %2246 = vmatmul.mubr.f32.gmra.mxu0 %v751
        %v2247 = vpop.f32.mrf.mxu0
        %v2248 = vadd.f32 %v748, %v2247
        %v2249 = vpop.f32.mrf.mxu0
        %2250 = vdwg.mxu0
        %v2251 = vmax.f32 %v2248, 0.0
        %v2252 = vand.u32 2147483647, %v2248
        %v2253 = vsub.f32 0.0, %v2252
        %v2254 = vmul.f32 %v2253, 1.442695
        %v2255 = vpow.pop %v2254
        %v2256 = vadd.f32 %v2255, 1.0
        %v2257 = vlog2.pop %v2256
        %v2258 = vmul.f32 %v2257, 0.6931472
        %v2259 = vadd.f32 %v2251, %v2258
        %v2260 = vtanh.pop %v2259
        %v2261 = vmul.f32 %v2248, %v2260
        %v2262 = vadd.f32 %v2080, %v2261
        %2263 = vrot.lane.b32.xlu0 %v1895, 123
        %v2264 = vpop.permute.xlu0 %2263
        %2266 = vrot.lane.b32.xlu0 %v1895, 118
        %v2267 = vpop.permute.xlu0 %2266
        %2269 = vmatprep.subr.mxu0 0.0
        %2270 = vmatpush1.msra.mxu0 0.0
        %2271 = vmatprep.subr.mxu0 0.0
        %2272 = vmatpush1.msra.mxu0 0.0
        %2273 = vmatprep.subr.mxu0 0.0
        %2274 = vmatpush1.msra.mxu0 0.0
        %2275 = vmatprep.subr.mxu0 0.0
        %2276 = vmatpush1.msra.mxu0 0.0
        %2277 = vmatprep.subr.mxu0 0.0
        %2278 = vmatpush1.msra.mxu0 0.0
        %2279 = vmatprep.subr.mxu0 0.0
        %2280 = vmatpush1.msra.mxu0 0.0
        %2281 = vmatprep.subr.mxu0 0.0
        %2282 = vmatpush1.msra.mxu0 0.0
        %2283 = vmatprep.subr.mxu0 0.0
        %2284 = vmatpush1.msra.mxu0 0.0
        %2285 = vmatprep.subr.mxu0 0.0
        %2286 = vmatpush1.msra.mxu0 0.0
        %2287 = vmatprep.subr.mxu0 0.0
        %2288 = vmatpush1.msra.mxu0 0.0
        %2289 = vmatprep.subr.mxu0 0.0
        %2290 = vmatpush1.msra.mxu0 0.0
        %2291 = vmatprep.subr.mxu0 0.0
        %2292 = vmatpush1.msra.mxu0 0.0
        %2293 = vmatprep.subr.mxu0 0.0
        %2294 = vmatpush1.msra.mxu0 0.0
        %2295 = vmatprep.subr.mxu0 0.0
        %2296 = vmatpush1.msra.mxu0 %v2267
        %2297 = vmatprep.subr.mxu0 0.0
        %2298 = vmatpush1.msra.mxu0 %v2264
        %2299 = vmatprep.subr.mxu0 0.0
        %2300 = vmatpush1.msra.mxu0 %v1895
        %2301 = vmatprep.subr.mxu0 0.0
        %2302 = vmatpush2.msra.mxu0 0.0
        %2303 = vmatprep.subr.mxu0 0.0
        %2304 = vmatpush2.msra.mxu0 0.0
        %2305 = vmatprep.subr.mxu0 0.0
        %2306 = vmatpush2.msra.mxu0 0.0
        %2307 = vmatprep.subr.mxu0 0.0
        %2308 = vmatpush2.msra.mxu0 0.0
        %2309 = vmatprep.subr.mxu0 0.0
        %2310 = vmatpush2.msra.mxu0 0.0
        %2311 = vmatprep.subr.mxu0 0.0
        %2312 = vmatpush2.msra.mxu0 0.0
        %2313 = vmatprep.subr.mxu0 0.0
        %2314 = vmatpush2.msra.mxu0 0.0
        %2315 = vmatprep.subr.mxu0 0.0
        %2316 = vmatpush2.msra.mxu0 0.0
        %2317 = vmatprep.subr.mxu0 0.0
        %2318 = vmatpush2.msra.mxu0 0.0
        %2319 = vmatprep.subr.mxu0 0.0
        %2320 = vmatpush2.msra.mxu0 0.0
        %2321 = vmatprep.subr.mxu0 0.0
        %2322 = vmatpush2.msra.mxu0 0.0
        %2323 = vmatprep.subr.mxu0 0.0
        %2324 = vmatpush2.msra.mxu0 0.0
        %2325 = vmatprep.subr.mxu0 0.0
        %2326 = vmatpush2.msra.mxu0 0.0
        %2327 = vmatprep.subr.mxu0 0.0
        %2328 = vmatpush2.msra.mxu0 0.0
        %2329 = vmatprep.subr.mxu0 0.0
        %2330 = vmatpush2.msra.mxu0 0.0
        %2331 = vmatprep.subr.mxu0 0.0
        %2332 = vmatpush2.msra.mxu0 0.0
        %2333 = vmatprep.mubr.f32.mxu0 0.0
        %2334 = vmatmul.mubr.f32.gmra.mxu0 %v851
        %v2335 = vpop.f32.mrf.mxu0
        %v2336 = vadd.f32 %v848, %v2335
        %v2337 = vpop.f32.mrf.mxu0
        %2338 = vdwg.mxu0
        %v2339 = vmax.f32 %v2336, 0.0
        %v2340 = vand.u32 2147483647, %v2336
        %v2341 = vsub.f32 0.0, %v2340
        %v2342 = vmul.f32 %v2341, 1.442695
        %v2343 = vpow.pop %v2342
        %v2344 = vadd.f32 %v2343, 1.0
        %v2345 = vlog2.pop %v2344
        %v2346 = vmul.f32 %v2345, 0.6931472
        %v2347 = vadd.f32 %v2339, %v2346
        %v2348 = vtanh.pop %v2347
        %v2349 = vmul.f32 %v2336, %v2348
        %v2350 = vmul.f32 %v2349, %v340
        %2352 = vrot.lane.b32.xlu0 %v2350, 127
        %v2353 = vpop.permute.xlu0 %2352
        %2355 = vrot.lane.b32.xlu0 %v2350, 126
        %v2356 = vpop.permute.xlu0 %2355
        %2358 = vmatprep.subr.mxu0 0.0
        %2359 = vmatpush1.msra.mxu0 0.0
        %2360 = vmatprep.subr.mxu0 0.0
        %2361 = vmatpush1.msra.mxu0 0.0
        %2362 = vmatprep.subr.mxu0 0.0
        %2363 = vmatpush1.msra.mxu0 0.0
        %2364 = vmatprep.subr.mxu0 0.0
        %2365 = vmatpush1.msra.mxu0 0.0
        %2366 = vmatprep.subr.mxu0 0.0
        %2367 = vmatpush1.msra.mxu0 0.0
        %2368 = vmatprep.subr.mxu0 0.0
        %2369 = vmatpush1.msra.mxu0 0.0
        %2370 = vmatprep.subr.mxu0 0.0
        %2371 = vmatpush1.msra.mxu0 0.0
        %2372 = vmatprep.subr.mxu0 0.0
        %2373 = vmatpush1.msra.mxu0 0.0
        %2374 = vmatprep.subr.mxu0 0.0
        %2375 = vmatpush1.msra.mxu0 0.0
        %2376 = vmatprep.subr.mxu0 0.0
        %2377 = vmatpush1.msra.mxu0 0.0
        %2378 = vmatprep.subr.mxu0 0.0
        %2379 = vmatpush1.msra.mxu0 0.0
        %2380 = vmatprep.subr.mxu0 0.0
        %2381 = vmatpush1.msra.mxu0 0.0
        %2382 = vmatprep.subr.mxu0 0.0
        %2383 = vmatpush1.msra.mxu0 0.0
        %2384 = vmatprep.subr.mxu0 0.0
        %2385 = vmatpush1.msra.mxu0 %v2356
        %2386 = vmatprep.subr.mxu0 0.0
        %2387 = vmatpush1.msra.mxu0 %v2353
        %2388 = vmatprep.subr.mxu0 0.0
        %2389 = vmatpush1.msra.mxu0 %v2350
        %2390 = vmatprep.subr.mxu0 0.0
        %2391 = vmatpush2.msra.mxu0 0.0
        %2392 = vmatprep.subr.mxu0 0.0
        %2393 = vmatpush2.msra.mxu0 0.0
        %2394 = vmatprep.subr.mxu0 0.0
        %2395 = vmatpush2.msra.mxu0 0.0
        %2396 = vmatprep.subr.mxu0 0.0
        %2397 = vmatpush2.msra.mxu0 0.0
        %2398 = vmatprep.subr.mxu0 0.0
        %2399 = vmatpush2.msra.mxu0 0.0
        %2400 = vmatprep.subr.mxu0 0.0
        %2401 = vmatpush2.msra.mxu0 0.0
        %2402 = vmatprep.subr.mxu0 0.0
        %2403 = vmatpush2.msra.mxu0 0.0
        %2404 = vmatprep.subr.mxu0 0.0
        %2405 = vmatpush2.msra.mxu0 0.0
        %2406 = vmatprep.subr.mxu0 0.0
        %2407 = vmatpush2.msra.mxu0 0.0
        %2408 = vmatprep.subr.mxu0 0.0
        %2409 = vmatpush2.msra.mxu0 0.0
        %2410 = vmatprep.subr.mxu0 0.0
        %2411 = vmatpush2.msra.mxu0 0.0
        %2412 = vmatprep.subr.mxu0 0.0
        %2413 = vmatpush2.msra.mxu0 0.0
        %2414 = vmatprep.subr.mxu0 0.0
        %2415 = vmatpush2.msra.mxu0 0.0
        %2416 = vmatprep.subr.mxu0 0.0
        %2417 = vmatpush2.msra.mxu0 0.0
        %2418 = vmatprep.subr.mxu0 0.0
        %2419 = vmatpush2.msra.mxu0 0.0
        %2420 = vmatprep.subr.mxu0 0.0
        %2421 = vmatpush2.msra.mxu0 0.0
        %2422 = vmatprep.mubr.f32.mxu0 0.0
        %2423 = vmatmul.mubr.f32.gmra.mxu0 %v952
        %v2424 = vpop.f32.mrf.mxu0
        %v2425 = vadd.f32 %v949, %v2424
        %v2426 = vpop.f32.mrf.mxu0
        %2427 = vdwg.mxu0
        %v2428 = vmax.f32 %v2425, 0.0
        %v2429 = vand.u32 2147483647, %v2425
        %v2430 = vsub.f32 0.0, %v2429
        %v2431 = vmul.f32 %v2430, 1.442695
        %v2432 = vpow.pop %v2431
        %v2433 = vadd.f32 %v2432, 1.0
        %v2434 = vlog2.pop %v2433
        %v2435 = vmul.f32 %v2434, 0.6931472
        %v2436 = vadd.f32 %v2428, %v2435
        %v2437 = vtanh.pop %v2436
        %v2438 = vmul.f32 %v2425, %v2437
        %v2439 = vadd.f32 %v2262, %v2438
        %v2440 = vmul.f32 %v2439, 0.33333334
        %2441 = vrot.lane.b32.xlu0 %v1037, 112
        %v2442 = vpop.permute.xlu0 %2441
        %v2443 = vsel %vm348, %v2442, 0
        %2445 = vmatprep.subr.mxu0 0.0
        %2446 = vmatpush1.msra.mxu0 0.0
        %2447 = vmatprep.subr.mxu0 0.0
        %2448 = vmatpush1.msra.mxu0 0.0
        %2449 = vmatprep.subr.mxu0 0.0
        %2450 = vmatpush1.msra.mxu0 0.0
        %2451 = vmatprep.subr.mxu0 0.0
        %2452 = vmatpush1.msra.mxu0 0.0
        %2453 = vmatprep.subr.mxu0 0.0
        %2454 = vmatpush1.msra.mxu0 0.0
        %2455 = vmatprep.subr.mxu0 0.0
        %2456 = vmatpush1.msra.mxu0 0.0
        %2457 = vmatprep.subr.mxu0 0.0
        %2458 = vmatpush1.msra.mxu0 0.0
        %2459 = vmatprep.subr.mxu0 0.0
        %2460 = vmatpush1.msra.mxu0 0.0
        %2461 = vmatprep.subr.mxu0 0.0
        %2462 = vmatpush1.msra.mxu0 0.0
        %2463 = vmatprep.subr.mxu0 0.0
        %2464 = vmatpush1.msra.mxu0 0.0
        %2465 = vmatprep.subr.mxu0 0.0
        %2466 = vmatpush1.msra.mxu0 0.0
        %2467 = vmatprep.subr.mxu0 0.0
        %2468 = vmatpush1.msra.mxu0 0.0
        %2469 = vmatprep.subr.mxu0 0.0
        %2470 = vmatpush1.msra.mxu0 0.0
        %2471 = vmatprep.subr.mxu0 0.0
        %2472 = vmatpush1.msra.mxu0 0.0
        %2473 = vmatprep.subr.mxu0 0.0
        %2474 = vmatpush1.msra.mxu0 0.0
        %2475 = vmatprep.subr.mxu0 0.0
        %2476 = vmatpush1.msra.mxu0 %v2440
        %2477 = vmatprep.subr.mxu0 0.0
        %2478 = vmatpush2.msra.mxu0 0.0
        %2479 = vmatprep.subr.mxu0 0.0
        %2480 = vmatpush2.msra.mxu0 0.0
        %2481 = vmatprep.subr.mxu0 0.0
        %2482 = vmatpush2.msra.mxu0 0.0
        %2483 = vmatprep.subr.mxu0 0.0
        %2484 = vmatpush2.msra.mxu0 0.0
        %2485 = vmatprep.subr.mxu0 0.0
        %2486 = vmatpush2.msra.mxu0 0.0
        %2487 = vmatprep.subr.mxu0 0.0
        %2488 = vmatpush2.msra.mxu0 0.0
        %2489 = vmatprep.subr.mxu0 0.0
        %2490 = vmatpush2.msra.mxu0 0.0
        %2491 = vmatprep.subr.mxu0 0.0
        %2492 = vmatpush2.msra.mxu0 0.0
        %2493 = vmatprep.subr.mxu0 0.0
        %2494 = vmatpush2.msra.mxu0 0.0
        %2495 = vmatprep.subr.mxu0 0.0
        %2496 = vmatpush2.msra.mxu0 0.0
        %2497 = vmatprep.subr.mxu0 0.0
        %2498 = vmatpush2.msra.mxu0 0.0
        %2499 = vmatprep.subr.mxu0 0.0
        %2500 = vmatpush2.msra.mxu0 0.0
        %2501 = vmatprep.subr.mxu0 0.0
        %2502 = vmatpush2.msra.mxu0 0.0
        %2503 = vmatprep.subr.mxu0 0.0
        %2504 = vmatpush2.msra.mxu0 0.0
        %2505 = vmatprep.subr.mxu0 0.0
        %2506 = vmatpush2.msra.mxu0 0.0
        %2507 = vmatprep.subr.mxu0 0.0
        %2508 = vmatpush2.msra.mxu0 0.0
        %2509 = vmatprep.mubr.f32.mxu0 0.0
        %2510 = vmatmul.mubr.f32.gmra.mxu0 %v2443
        %v2511 = vpop.f32.mrf.mxu0
        %v2512 = vadd.f32 0.0, %v2511
        %v2513 = vpop.f32.mrf.mxu0
        %2514 = vdwg.mxu0
        %v2515 = vadd.f32 %v1810, %v2512
        %v2516 = vld [vmem:[%s8] sm:$0xff]
        %2518 = vset.pattern.permute.xlu0 0
        %2519 = vperm.xlu0 %2518, %v2516
        %v2520 = vpop.permute.xlu0 %2519
        %v2522 = vadd.f32 %v2515, %v2520
        %vm2523 = vcmask 130048
        %2524 = vst.msk [vmem:[%s323] sm:$0xff] %vm2523, %v2522
        %s2525 = sand.u32 %s225, 1
        %s2526 = scalar_lea.sflag [#allocation3], %s2525
        %s2527 = sand.u32 %s225, 1
        %s2528 = smul.addr %s2527, 8
        %s2529 = scalar_lea.vmem [#allocation2], %s2528
        // Predicated region
        $region57: #{tpu_custom_call.1} parent=55 // pred_check
          %p2530 = pneg %p235
        $region58: #{tpu_custom_call.1} parent=55 // pred_check_branch
          %2532 = sbr.rel (%p2530) target = $region60
        $region59: #{tpu_custom_call.1} parent=55 // pred_region
          %s2534 = ssub.s32 128, 128
          %2535 = vsyncadd %s2526, %s2534
          %s2536 = smul.addr %s23, 128
          %s2537 = scalar_lea.hbm %s9, %s2536
          %s2539 = sshll.u32 %s2529, 4
          %s2540 = int_to_ptr.vmem [resolvable:$true] %s2539
          %2542 = dma.vmem_to_hbm [thread:$0]  %s2540, 128, %s2537, %s2526
        $region60: #{tpu_custom_call.1} parent=55 // pred_fallthru
          _
      $region56: #{tpu_custom_call.1} parent=5 // pred_fallthru
        _
      %p2543 = scmp.le.s32.totalorder 2, %s18
      // Predicated region
      $region61: #{tpu_custom_call.1} parent=5 // pred_check
        %p2544 = pneg %p2543
      $region62: #{tpu_custom_call.1} parent=5 // pred_check_branch
        %2546 = sbr.rel (%p2544) target = $region64
      $region63: #{tpu_custom_call.1} parent=5 // pred_region
        %s2547 = ssub.s32 %s18, 2
        // Predicated region
        $region65: #{tpu_custom_call.1} parent=63 // pred_check
          %p2548 = pneg %p241
        $region66: #{tpu_custom_call.1} parent=63 // pred_check_branch
          %2550 = sbr.rel (%p2548) target = $region68
        $region67: #{tpu_custom_call.1} parent=63 // pred_region
          %s2551 = sand.u32 %s226, 1
          %s2552 = scalar_lea.sflag [#allocation3], %s2551
          %s2553 = sand.u32 %s226, 1
          %s2554 = smul.addr %s2553, 8
          %s2555 = scalar_lea.vmem [#allocation2], %s2554
          %2556 = dma.done %s2552, 128
        $region68: #{tpu_custom_call.1} parent=63 // pred_fallthru
          _
      $region64: #{tpu_custom_call.1} parent=5 // pred_fallthru
        _
    $region6: #{tpu_custom_call.1} parent=1 // loop_footer
      %s22 = sadd.s32 1, %s18
    $region7: #{tpu_custom_call.1} parent=1 // loop_footer_branch
      %17 = sbr.rel target = $region3
    $region8: #{tpu_custom_call.1} parent=1 // loop_exit
      _
    %2557 = vsyncpa [#allocation3], 1
    %s2558 = scalar_lea.sflag [#allocation3], 1
    %2559 = vsyncpa %s2558, 1

</llo_original>
